<compile_context>
chip_gen: v7x
topology: tpu7x:2x2x1
jax: 0.10.0
libtpu: 0.0.40
codegen_flags: <defaults>
</compile_context>

<pallas_src>
import functools
import math

import jax
import jax.numpy as jnp
from jax.experimental import pallas as pl
from jax.experimental.pallas import tpu as pltpu


# ----------------------------- VMEM budgeting -----------------------------

def _derive_vmem_limit():
    """Per-chip VMEM request: physical capacity minus ~16 MiB compiler headroom,
    so v5e/v6e (128 MiB) get ~110 MiB and v7x (64 MiB) gets ~48 MiB."""
    cap = None
    try:
        info = pltpu.get_tpu_info()
        cap = getattr(info, "vmem_capacity_bytes", None)
    except Exception:
        cap = None
    if not cap:
        cap = 64 * 1024 * 1024  # conservative (v7x-sized) fallback
    return int(min(max(cap - 16 * 1024 * 1024, 32 * 1024 * 1024), 110 * 1024 * 1024))


_VMEM_LIMIT = _derive_vmem_limit()
_BIG_VMEM = _VMEM_LIMIT >= 80 * 1024 * 1024  # v5e / v6e (128 MiB physical)


def _cparams(*semantics):
    return pltpu.CompilerParams(dimension_semantics=semantics,
                                vmem_limit_bytes=_VMEM_LIMIT)


# ----------------------------- tiling helpers -----------------------------

_LANE_ALIGNS = (256, 128)                 # prefer filling the 256-wide v6e/v7x MXU
_ROW_ALIGNS = (256, 128, 64, 32, 16, 8)   # bf16 rows prefer >=16; min sublane tile 8


def _pick_tile(dim, target, aligns):
    """Largest divisor of `dim` that is <= target and a multiple of one of `aligns`
    (preferred alignment first); falls back to the full dim (always a legal block)."""
    if dim <= target:
        return dim
    for align in aligns:
        t = (min(target, dim) // align) * align
        while t >= align:
            if dim % t == 0:
                return t
            t -= align
    # TODO(synk): pad + pl.cdiv grid for pathological (large-prime) dims instead of a
    # full-extent block that could blow VMEM.
    return dim


def _largest_divisor_leq(n, target):
    t = max(1, min(n, target))
    while n % t:
        t -= 1
    return t


# ----------------------------- in-kernel math -----------------------------

def _layernorm_f32(z, g, b, eps):
    mean = jnp.mean(z, axis=-1, keepdims=True)
    var = jnp.mean(jnp.square(z - mean), axis=-1, keepdims=True)
    return (z - mean) * jax.lax.rsqrt(var + eps) * g + b


def _gelu_exact(x):
    # exact (erf-based) GELU, matching torch.nn.functional.gelu default
    return 0.5 * x * (1.0 + jax.lax.erf(x * 0.7071067811865476))


# ----------------------------- tiled matmul + bias -----------------------------

def _matmul_bias_kernel(x_ref, w_ref, b_ref, o_ref, acc_ref, *, activation):
    @pl.when(pl.program_id(2) == 0)
    def _():
        acc_ref[...] = jnp.zeros_like(acc_ref)

    acc_ref[...] += jnp.dot(x_ref[...], w_ref[...],
                            preferred_element_type=jnp.float32)

    @pl.when(pl.program_id(2) == pl.num_programs(2) - 1)
    def _():
        acc = acc_ref[...] + b_ref[...]
        if activation == "gelu":
            acc = _gelu_exact(acc)
        o_ref[...] = acc.astype(o_ref.dtype)


def matmul_bias(x, w, b, activation=None, out_dtype=jnp.bfloat16,
                tm=256, tn=None, tk=512):
    """o = activation(x @ w + b); x:(M,K) bf16, w:(K,N) bf16, b:(N,) f32."""
    M, K = x.shape
    K2, N = w.shape
    assert K == K2
    if tn is None:
        tn = 1024 if _BIG_VMEM else 512  # bigger N tiles on 128 MiB-VMEM chips
    tm = _pick_tile(M, tm, _ROW_ALIGNS)
    tk = _pick_tile(K, tk, _LANE_ALIGNS)
    tn = _pick_tile(N, tn, _LANE_ALIGNS)
    grid = (M // tm, N // tn, K // tk)
    return pl.pallas_call(
        functools.partial(_matmul_bias_kernel, activation=activation),
        out_shape=jax.ShapeDtypeStruct((M, N), out_dtype),
        grid=grid,
        in_specs=[
            pl.BlockSpec((tm, tk), lambda i, j, k: (i, k)),
            pl.BlockSpec((tk, tn), lambda i, j, k: (k, j)),
            pl.BlockSpec((1, tn), lambda i, j, k: (0, j)),
        ],
        out_specs=pl.BlockSpec((tm, tn), lambda i, j, k: (i, j)),
        scratch_shapes=[pltpu.VMEM((tm, tn), jnp.float32)],
        compiler_params=_cparams("parallel", "parallel", "arbitrary"),
    )(x, w, b.reshape(1, N))


# -------------------- fused patch-embed matmul + LN + posEmbed --------------------

def _patch_ln_pos_kernel(p_ref, w_ref, b_ref, g_ref, beta_ref, pos_ref, o_ref, *, eps):
    t = jnp.dot(p_ref[...], w_ref[...], preferred_element_type=jnp.float32) + b_ref[...]
    # pos_ref is the (1, D) row for this patch; broadcast over the batch rows in-kernel
    out = _layernorm_f32(t, g_ref[...], beta_ref[...], eps) + pos_ref[...]
    o_ref[...] = out.astype(o_ref.dtype)


def patch_embed_ln_pos(patches, w, b, gamma, beta, pos, eps=1e-5):
    """LayerNorm(patches @ w + b) + pos  (posDropout = identity).

    patches: (nPatches, B, patch_dim) bf16 (patch-major token order);
    pos:     (nPatches, 1, d_model) f32 — read as a small table, never broadcast in HBM."""
    Np, B, pdim = patches.shape
    D = w.shape[1]
    tb = _pick_tile(B, 256, _ROW_ALIGNS)
    nb = B // tb
    return pl.pallas_call(
        functools.partial(_patch_ln_pos_kernel, eps=eps),
        out_shape=jax.ShapeDtypeStruct((Np, B, D), jnp.bfloat16),
        grid=(Np, nb),
        in_specs=[
            pl.BlockSpec((None, tb, pdim), lambda n, j: (n, j, 0)),
            pl.BlockSpec((pdim, D), lambda n, j: (0, 0)),
            pl.BlockSpec((1, D), lambda n, j: (0, 0)),
            pl.BlockSpec((1, D), lambda n, j: (0, 0)),
            pl.BlockSpec((1, D), lambda n, j: (0, 0)),
            pl.BlockSpec((None, 1, D), lambda n, j: (n, 0, 0)),
        ],
        out_specs=pl.BlockSpec((None, tb, D), lambda n, j: (n, j, 0)),
        compiler_params=_cparams("parallel", "parallel"),
    )(patches, w, b.reshape(1, D), gamma.reshape(1, D), beta.reshape(1, D), pos)


# ---------------- fused attention out-projection + residual + LN1 ----------------

def _proj_res_ln_kernel(a_ref, w_ref, b_ref, res_ref, g_ref, beta_ref, o_ref, *, eps):
    y = jnp.dot(a_ref[...], w_ref[...], preferred_element_type=jnp.float32) + b_ref[...]
    z = res_ref[...].astype(jnp.float32) + y
    o_ref[...] = _layernorm_f32(z, g_ref[...], beta_ref[...], eps).astype(o_ref.dtype)


def proj_residual_layernorm(a, w, b, res, gamma, beta, eps=1e-5):
    """LayerNorm(res + (a @ w + b)) — post-norm residual epilogue, row-tiled."""
    M, K = a.shape
    D = w.shape[1]
    tm = _pick_tile(M, 256, _ROW_ALIGNS)
    return pl.pallas_call(
        functools.partial(_proj_res_ln_kernel, eps=eps),
        out_shape=jax.ShapeDtypeStruct((M, D), jnp.bfloat16),
        grid=(M // tm,),
        in_specs=[
            pl.BlockSpec((tm, K), lambda i: (i, 0)),
            pl.BlockSpec((K, D), lambda i: (0, 0)),
            pl.BlockSpec((1, D), lambda i: (0, 0)),
            pl.BlockSpec((tm, D), lambda i: (i, 0)),
            pl.BlockSpec((1, D), lambda i: (0, 0)),
            pl.BlockSpec((1, D), lambda i: (0, 0)),
        ],
        out_specs=pl.BlockSpec((tm, D), lambda i: (i, 0)),
        compiler_params=_cparams("parallel"),
    )(a, w, b.reshape(1, D), res, gamma.reshape(1, D), beta.reshape(1, D))


# --------- fused FFN: linear1 + GELU + linear2 + residual + LN2 (d_ff streamed) ---------

def _ffn_ln_kernel(x_ref, w1_ref, b1_ref, w2_ref, b2_ref, g_ref, beta_ref, o_ref,
                   acc_ref, *, eps):
    f = pl.program_id(1)

    @pl.when(f == 0)
    def _():
        acc_ref[...] = jnp.zeros_like(acc_ref)

    h = jnp.dot(x_ref[...], w1_ref[...], preferred_element_type=jnp.float32) + b1_ref[...]
    h = _gelu_exact(h)
    acc_ref[...] += jnp.dot(h.astype(w2_ref.dtype), w2_ref[...],
                            preferred_element_type=jnp.float32)

    @pl.when(f == pl.num_programs(1) - 1)
    def _():
        z = x_ref[...].astype(jnp.float32) + acc_ref[...] + b2_ref[...]
        o_ref[...] = _layernorm_f32(z, g_ref[...], beta_ref[...], eps).astype(o_ref.dtype)


def ffn_layernorm(x, w1, b1, w2, b2, gamma, beta, eps=1e-5):
    """LayerNorm(x + linear2(gelu(linear1(x)))).

    d_ff is a grid axis: w1/w2 blocks are streamed (never fully VMEM-resident), the
    (tm, tf) GELU intermediate stays small, and the linear2 partial products accumulate
    in an f32 VMEM scratch — fits v7x VMEM and overlaps GELU (VPU) with the MXU."""
    M, D = x.shape
    F = w1.shape[1]
    tm = _pick_tile(M, 256, _ROW_ALIGNS)
    tf = _pick_tile(F, 512, _LANE_ALIGNS)
    grid = (M // tm, F // tf)
    return pl.pallas_call(
        functools.partial(_ffn_ln_kernel, eps=eps),
        out_shape=jax.ShapeDtypeStruct((M, D), jnp.bfloat16),
        grid=grid,
        in_specs=[
            pl.BlockSpec((tm, D), lambda i, f: (i, 0)),
            pl.BlockSpec((D, tf), lambda i, f: (0, f)),
            pl.BlockSpec((1, tf), lambda i, f: (0, f)),
            pl.BlockSpec((tf, D), lambda i, f: (f, 0)),
            pl.BlockSpec((1, D), lambda i, f: (0, 0)),
            pl.BlockSpec((1, D), lambda i, f: (0, 0)),
            pl.BlockSpec((1, D), lambda i, f: (0, 0)),
        ],
        out_specs=pl.BlockSpec((tm, D), lambda i, f: (i, 0)),
        scratch_shapes=[pltpu.VMEM((tm, D), jnp.float32)],
        compiler_params=_cparams("parallel", "arbitrary"),
    )(x, w1, b1.reshape(1, F), w2, b2.reshape(1, D),
      gamma.reshape(1, D), beta.reshape(1, D))


# ----------------------------- softmax attention -----------------------------

def _attention_kernel(qkv_ref, o_ref, *, n_heads, d_model):
    E = d_model
    dh = E // n_heads
    outs = []
    for h in range(n_heads):
        # q scale (1/sqrt(dh)) is pre-folded into Wq, so no per-element multiply here.
        q_h = qkv_ref[:, :, h * dh:(h + 1) * dh]                  # (tp, S, dh) bf16
        k_h = qkv_ref[:, :, E + h * dh:E + (h + 1) * dh]
        v_h = qkv_ref[:, :, 2 * E + h * dh:2 * E + (h + 1) * dh]
        s = jnp.einsum("psd,ptd->pst", q_h, k_h,
                       preferred_element_type=jnp.float32)        # (tp, S, S) f32
        s = s - jnp.max(s, axis=-1, keepdims=True)
        p = jnp.exp(s)
        p = p / jnp.sum(p, axis=-1, keepdims=True)                # exact softmax
        outs.append(jnp.einsum("pst,ptd->psd", p.astype(v_h.dtype), v_h,
                               preferred_element_type=jnp.float32))
    # single lane-dense (width d_model) store instead of per-head masked stores
    o_ref[...] = jnp.concatenate(outs, axis=-1).astype(o_ref.dtype)


def attention(qkv, n_heads, d_model):
    """Per-(patch, head) softmax attention over the sequence axis S (= image batch B,
    the batch_first=False quirk of nn.TransformerEncoderLayer).

    qkv: (nPatches, S, 3*d_model) — q/k/v are read straight out of the fused QKV slab
    (no XLA transposes) and the output is written directly in the (nPatches, S, d_model)
    token layout consumed by the out-projection.
    TODO(synk): dh (<128) per-head slices still under-fill the lane axis inside the
    kernel; packing two heads per 128-lane group would raise MXU column utilization."""
    Np, S, E3 = qkv.shape
    # keep ~<=6 MiB of qkv+out per grid step, and >=2 steps for 2-core sharding on v7x
    bytes_per_patch = S * (E3 + d_model) * 2
    tp_target = max(1, (6 * 1024 * 1024) // max(bytes_per_patch, 1))
    if Np > 1:
        tp_target = min(tp_target, max(1, Np // 2))
    tp = _largest_divisor_leq(Np, tp_target)
    return pl.pallas_call(
        functools.partial(_attention_kernel, n_heads=n_heads, d_model=d_model),
        out_shape=jax.ShapeDtypeStruct((Np, S, d_model), jnp.bfloat16),
        grid=(Np // tp,),
        in_specs=[pl.BlockSpec((tp, S, E3), lambda i: (i, 0, 0))],
        out_specs=pl.BlockSpec((tp, S, d_model), lambda i: (i, 0, 0)),
        compiler_params=_cparams("parallel"),
    )(qkv)


# ----------------------------- parameter init -----------------------------

def init_params(key, *, in_chans, patch_size, d_model, n_patches, depth, d_ff):
    patch_dim = in_chans * patch_size * patch_size
    keys = jax.random.split(key, 2 + depth)

    def dense(k, fan_in, fan_out):
        kw, kb = jax.random.split(k)
        lim = 1.0 / math.sqrt(fan_in)
        w = jax.random.uniform(kw, (fan_in, fan_out), jnp.float32, -lim, lim)
        b = jax.random.uniform(kb, (fan_out,), jnp.float32, -lim, lim)
        return w.astype(jnp.bfloat16), b  # MXU weights bf16, biases stay f32

    params = {}
    # Conv2d(inChans, dModel, kernel=patch, stride=patch) stored as an im2col matmul weight
    # (patch_dim, d_model); patch vector order is (C, ph, pw) matching the flattened
    # PyTorch conv weight (out, in, kh, kw).
    params["patch_w"], params["patch_b"] = dense(keys[0], patch_dim, d_model)
    params["norm_g"] = jnp.ones((d_model,), jnp.float32)
    params["norm_b"] = jnp.zeros((d_model,), jnp.float32)
    params["pos_embed"] = jax.random.normal(keys[1], (1, n_patches, d_model), jnp.float32)

    layers = []
    for i in range(depth):
        k1, k2, k3, k4 = jax.random.split(keys[2 + i], 4)
        wqkv, bqkv = dense(k1, d_model, 3 * d_model)  # in_proj (q|k|v stacked on out dim)
        wo, bo = dense(k2, d_model, d_model)          # attention out_proj
        w1, b1 = dense(k3, d_model, d_ff)             # FFN linear1
        w2, b2 = dense(k4, d_ff, d_model)             # FFN linear2
        layers.append(dict(
            wqkv=wqkv, bqkv=bqkv, wo=wo, bo=bo,
            ln1_g=jnp.ones((d_model,), jnp.float32), ln1_b=jnp.zeros((d_model,), jnp.float32),
            w1=w1, b1=b1, w2=w2, b2=b2,
            ln2_g=jnp.ones((d_model,), jnp.float32), ln2_b=jnp.zeros((d_model,), jnp.float32),
        ))
    params["layers"] = layers
    return params


# ----------------------------- forward pass -----------------------------

def vit_encoder_forward(x, params, *, patch_size, n_heads):
    # TODO(synk): all Dropout layers (posDropout, attn/FFN dropouts) are identity here
    # (eval/inference semantics); no training-mode RNG path is implemented.
    B, C, H, W = x.shape
    p = patch_size
    gh, gw = H // p, W // p
    n_patches = gh * gw
    d_model = params["patch_w"].shape[1]
    dh = d_model // n_heads
    scale = 1.0 / math.sqrt(dh)

    # --- PatchEmbed (strided conv == im2col matmul) + LayerNorm + posEmbed, fused ---
    # Tokens are PATCH-MAJOR (row = patch*B + b): row-wise ops (matmuls/LN/FFN) don't care
    # about row order, and the per-patch attention (seq axis = B) becomes a contiguous
    # block read — no per-layer XLA transposes.
    patches = x.reshape(B, C, gh, p, gw, p).transpose(2, 4, 0, 1, 3, 5)
    patches = patches.reshape(n_patches, B, C * p * p).astype(jnp.bfloat16)
    pos = params["pos_embed"].reshape(n_patches, 1, d_model)
    xt = patch_embed_ln_pos(patches, params["patch_w"], params["patch_b"],
                            params["norm_g"], params["norm_b"], pos)  # (P, B, E) bf16
    xt = xt.reshape(n_patches * B, d_model)

    # fold 1/sqrt(dh) into the q slice of the QKV projection (one-off, weight-sized)
    col_scale = jnp.concatenate([jnp.full((d_model,), scale, jnp.float32),
                                 jnp.ones((2 * d_model,), jnp.float32)])

    # --- TransformerEncoder (post-norm layers; batch_first=False => seq axis = B) ---
    for lyr in params["layers"]:
        wqkv = (lyr["wqkv"].astype(jnp.float32) * col_scale).astype(jnp.bfloat16)
        bqkv = lyr["bqkv"] * col_scale
        qkv = matmul_bias(xt, wqkv, bqkv)                               # (P*B, 3E) bf16
        o = attention(qkv.reshape(n_patches, B, 3 * d_model), n_heads, d_model)
        o = o.reshape(n_patches * B, d_model)                           # free reshape
        # out-projection + residual + LayerNorm1, fused in one kernel
        xt = proj_residual_layernorm(o, lyr["wo"], lyr["bo"], xt,
                                     lyr["ln1_g"], lyr["ln1_b"])
        # FFN (linear1 + GELU + linear2) + residual + LayerNorm2, fused, d_ff streamed
        xt = ffn_layernorm(xt, lyr["w1"], lyr["b1"], lyr["w2"], lyr["b2"],
                           lyr["ln2_g"], lyr["ln2_b"])

    # back to the module's (B, nPatches, dModel) output layout (single final transpose)
    out = xt.reshape(n_patches, B, d_model).transpose(1, 0, 2)
    return out.astype(jnp.float32)


# ----------------------------- demo -----------------------------

if __name__ == "__main__":
    # Small shapes consistent with the module's forward:
    B, C, IMG, PATCH = 2, 3, 16, 4
    D_MODEL, DEPTH, HEADS, D_FF = 32, 2, 4, 64
    N_PATCHES = (IMG // PATCH) ** 2  # 16

    key = jax.random.PRNGKey(0)
    kx, kp = jax.random.split(key)
    x = jax.random.normal(kx, (B, C, IMG, IMG), jnp.float32)
    params = init_params(kp, in_chans=C, patch_size=PATCH, d_model=D_MODEL,
                         n_patches=N_PATCHES, depth=DEPTH, d_ff=D_FF)

    fwd = jax.jit(functools.partial(vit_encoder_forward, patch_size=PATCH, n_heads=HEADS))
    out = fwd(x, params)
    jax.block_until_ready(out)
    assert out.shape == (B, N_PATCHES, D_MODEL), out.shape
    assert bool(jnp.all(jnp.isfinite(out)))
    print("KERNEL_OK")
</pallas_src>

<mosaic_0001>
module attributes {stable_mosaic.version = 11 : i64} {
  func.func @_patch_ln_pos_kernel(%arg0: i32, %arg1: i32, %arg2: memref<1x2x48xbf16, #tpu.memory_space<vmem>>, %arg3: memref<48x32xbf16, #tpu.memory_space<vmem>>, %arg4: memref<1x32xf32, #tpu.memory_space<vmem>>, %arg5: memref<1x32xf32, #tpu.memory_space<vmem>>, %arg6: memref<1x32xf32, #tpu.memory_space<vmem>>, %arg7: memref<1x1x32xf32, #tpu.memory_space<vmem>>, %arg8: memref<1x2x32xbf16, #tpu.memory_space<vmem>>) attributes {dimension_semantics = [#tpu.dimension_semantics<parallel>, #tpu.dimension_semantics<parallel>], iteration_bounds = array<i64: 16, 1>, scalar_prefetch = 0 : i64, scratch_operands = 0 : i64, tpu.core_type = #tpu.core_type<tc>, window_params = [{transform_indices = @transform_0, window_bounds = array<i64: 1, 2, 48>}, {pipeline_mode = #tpu.pipeline_mode<synchronous>, transform_indices = @transform_1, window_bounds = array<i64: 48, 32>}, {pipeline_mode = #tpu.pipeline_mode<synchronous>, transform_indices = @transform_2, window_bounds = array<i64: 1, 32>}, {pipeline_mode = #tpu.pipeline_mode<synchronous>, transform_indices = @transform_3, window_bounds = array<i64: 1, 32>}, {pipeline_mode = #tpu.pipeline_mode<synchronous>, transform_indices = @transform_4, window_bounds = array<i64: 1, 32>}, {transform_indices = @transform_5, window_bounds = array<i64: 1, 1, 32>}, {transform_indices = @transform_6, window_bounds = array<i64: 1, 2, 32>}]} {
    %c0 = arith.constant 0 : index
    %c0_0 = arith.constant 0 : index
    %c0_1 = arith.constant 0 : index
    %0 = vector.load %arg2[%c0, %c0_0, %c0_1] : memref<1x2x48xbf16, #tpu.memory_space<vmem>>, vector<1x2x48xbf16>
    %1 = vector.shape_cast %0 : vector<1x2x48xbf16> to vector<2x48xbf16>
    %c0_2 = arith.constant 0 : index
    %c0_3 = arith.constant 0 : index
    %2 = vector.load %arg3[%c0_2, %c0_3] : memref<48x32xbf16, #tpu.memory_space<vmem>>, vector<48x32xbf16>
    %cst = arith.constant dense<0.000000e+00> : vector<2x32xf32>
    %3 = tpu.matmul %1, %2, %cst {dimension_numbers = #tpu.dot_dimension_numbers<[1], [0], [0], [1], [0, 0, 1, 1], [], []>} : vector<2x48xbf16>, vector<48x32xbf16>, vector<2x32xf32> -> vector<2x32xf32>
    %c0_4 = arith.constant 0 : index
    %c0_5 = arith.constant 0 : index
    %4 = vector.load %arg4[%c0_4, %c0_5] : memref<1x32xf32, #tpu.memory_space<vmem>>, vector<1x32xf32>
    %5 = vector.broadcast %4 : vector<1x32xf32> to vector<2x32xf32>
    %6 = arith.addf %3, %5 : vector<2x32xf32>
    %c0_6 = arith.constant 0 : index
    %c0_7 = arith.constant 0 : index
    %7 = vector.load %arg5[%c0_6, %c0_7] : memref<1x32xf32, #tpu.memory_space<vmem>>, vector<1x32xf32>
    %c0_8 = arith.constant 0 : index
    %c0_9 = arith.constant 0 : index
    %8 = vector.load %arg6[%c0_8, %c0_9] : memref<1x32xf32, #tpu.memory_space<vmem>>, vector<1x32xf32>
    %cst_10 = arith.constant dense<0.000000e+00> : vector<2xf32>
    %9 = vector.multi_reduction <add>, %6, %cst_10 [1] : vector<2x32xf32> to vector<2xf32>
    %10 = vector.shape_cast %9 : vector<2xf32> to vector<2x1xf32>
    %cst_11 = arith.constant 3.200000e+01 : f32
    %11 = vector.broadcast %cst_11 : f32 to vector<2x1xf32>
    %12 = arith.divf %10, %11 : vector<2x1xf32>
    %13 = vector.broadcast %12 : vector<2x1xf32> to vector<2x32xf32>
    %14 = arith.subf %6, %13 : vector<2x32xf32>
    %15 = arith.mulf %14, %14 : vector<2x32xf32>
    %cst_12 = arith.constant dense<0.000000e+00> : vector<2xf32>
    %16 = vector.multi_reduction <add>, %15, %cst_12 [1] : vector<2x32xf32> to vector<2xf32>
    %17 = vector.shape_cast %16 : vector<2xf32> to vector<2x1xf32>
    %cst_13 = arith.constant 3.200000e+01 : f32
    %18 = vector.broadcast %cst_13 : f32 to vector<2x1xf32>
    %19 = arith.divf %17, %18 : vector<2x1xf32>
    %20 = vector.broadcast %12 : vector<2x1xf32> to vector<2x32xf32>
    %21 = arith.subf %6, %20 : vector<2x32xf32>
    %cst_14 = arith.constant 9.99999974E-6 : f32
    %22 = vector.broadcast %cst_14 : f32 to vector<2x1xf32>
    %23 = arith.addf %19, %22 : vector<2x1xf32>
    %24 = math.rsqrt %23 : vector<2x1xf32>
    %25 = vector.broadcast %24 : vector<2x1xf32> to vector<2x32xf32>
    %26 = arith.mulf %21, %25 : vector<2x32xf32>
    %27 = vector.broadcast %7 : vector<1x32xf32> to vector<2x32xf32>
    %28 = arith.mulf %26, %27 : vector<2x32xf32>
    %29 = vector.broadcast %8 : vector<1x32xf32> to vector<2x32xf32>
    %30 = arith.addf %28, %29 : vector<2x32xf32>
    %c0_15 = arith.constant 0 : index
    %c0_16 = arith.constant 0 : index
    %c0_17 = arith.constant 0 : index
    %31 = vector.load %arg7[%c0_15, %c0_16, %c0_17] : memref<1x1x32xf32, #tpu.memory_space<vmem>>, vector<1x1x32xf32>
    %32 = vector.shape_cast %31 : vector<1x1x32xf32> to vector<1x32xf32>
    %33 = vector.broadcast %32 : vector<1x32xf32> to vector<2x32xf32>
    %34 = arith.addf %30, %33 : vector<2x32xf32>
    %35 = arith.truncf %34 : vector<2x32xf32> to vector<2x32xbf16>
    %c0_18 = arith.constant 0 : index
    %c0_19 = arith.constant 0 : index
    %c0_20 = arith.constant 0 : index
    %36 = vector.load %arg8[%c0_18, %c0_19, %c0_20] : memref<1x2x32xbf16, #tpu.memory_space<vmem>>, vector<1x2x32xbf16>
    %37 = vector.shape_cast %36 : vector<1x2x32xbf16> to vector<2x32xbf16>
    %38 = vector.shape_cast %35 : vector<2x32xbf16> to vector<1x2x32xbf16>
    tpu.vector_store %arg8[%c0_18, %c0_19, %c0_20], %38 {strides = array<i32>} : memref<1x2x32xbf16, #tpu.memory_space<vmem>>, vector<1x2x32xbf16>,
    return
  }
  func.func @transform_0(%arg0: i32, %arg1: i32) -> (i32, i32, i32) {
    %c0_i32 = arith.constant 0 : i32
    %c0_i32_0 = arith.constant 0 : i32
    return %arg0, %arg1, %c0_i32 : i32, i32, i32
  }
  func.func @transform_1(%arg0: i32, %arg1: i32) -> (i32, i32) {
    %c0_i32 = arith.constant 0 : i32
    %c0_i32_0 = arith.constant 0 : i32
    %c0_i32_1 = arith.constant 0 : i32
    return %c0_i32, %c0_i32_0 : i32, i32
  }
  func.func @transform_2(%arg0: i32, %arg1: i32) -> (i32, i32) {
    %c0_i32 = arith.constant 0 : i32
    %c0_i32_0 = arith.constant 0 : i32
    %c0_i32_1 = arith.constant 0 : i32
    return %c0_i32, %c0_i32_0 : i32, i32
  }
  func.func @transform_3(%arg0: i32, %arg1: i32) -> (i32, i32) {
    %c0_i32 = arith.constant 0 : i32
    %c0_i32_0 = arith.constant 0 : i32
    %c0_i32_1 = arith.constant 0 : i32
    return %c0_i32, %c0_i32_0 : i32, i32
  }
  func.func @transform_4(%arg0: i32, %arg1: i32) -> (i32, i32) {
    %c0_i32 = arith.constant 0 : i32
    %c0_i32_0 = arith.constant 0 : i32
    %c0_i32_1 = arith.constant 0 : i32
    return %c0_i32, %c0_i32_0 : i32, i32
  }
  func.func @transform_5(%arg0: i32, %arg1: i32) -> (i32, i32, i32) {
    %c0_i32 = arith.constant 0 : i32
    %c0_i32_0 = arith.constant 0 : i32
    %c0_i32_1 = arith.constant 0 : i32
    return %arg0, %c0_i32, %c0_i32_0 : i32, i32, i32
  }
  func.func @transform_6(%arg0: i32, %arg1: i32) -> (i32, i32, i32) {
    %c0_i32 = arith.constant 0 : i32
    %c0_i32_0 = arith.constant 0 : i32
    return %arg0, %arg1, %c0_i32 : i32, i32, i32
  }
}

module attributes {stable_mosaic.version = 11 : i64} {
  func.func @_attention_kernel(%arg0: i32, %arg1: memref<8x2x96xbf16, #tpu.memory_space<vmem>>, %arg2: memref<8x2x32xbf16, #tpu.memory_space<vmem>>) attributes {dimension_semantics = [#tpu.dimension_semantics<parallel>], iteration_bounds = array<i64: 2>, scalar_prefetch = 0 : i64, scratch_operands = 0 : i64, tpu.core_type = #tpu.core_type<tc>, window_params = [{transform_indices = @transform_0, window_bounds = array<i64: 8, 2, 96>}, {transform_indices = @transform_1, window_bounds = array<i64: 8, 2, 32>}]} {
    %c0 = arith.constant 0 : index
    %c0_0 = arith.constant 0 : index
    %c0_1 = arith.constant 0 : index
    %0 = vector.load %arg1[%c0, %c0_0, %c0_1] : memref<8x2x96xbf16, #tpu.memory_space<vmem>>, vector<8x2x8xbf16>
    %c0_2 = arith.constant 0 : index
    %c0_3 = arith.constant 0 : index
    %c32 = arith.constant 32 : index
    %1 = vector.load %arg1[%c0_2, %c0_3, %c32] : memref<8x2x96xbf16, #tpu.memory_space<vmem>>, vector<8x2x8xbf16>
    %c0_4 = arith.constant 0 : index
    %c0_5 = arith.constant 0 : index
    %c64 = arith.constant 64 : index
    %2 = vector.load %arg1[%c0_4, %c0_5, %c64] : memref<8x2x96xbf16, #tpu.memory_space<vmem>>, vector<8x2x8xbf16>
    "tpu.trace_start"() <{level = 10 : i32, message = "psd,ptd->pst"}> : () -> ()
    %cst = arith.constant dense<0.000000e+00> : vector<8x2x2xf32>
    %3 = tpu.matmul %0, %1, %cst {dimension_numbers = #tpu.dot_dimension_numbers<[2], [2], [1], [1], [0, 0, 0, 1, 1, 1], [0], [0]>} : vector<8x2x8xbf16>, vector<8x2x8xbf16>, vector<8x2x2xf32> -> vector<8x2x2xf32>
    "tpu.trace_stop"() : () -> ()
    %cst_6 = arith.constant dense<0xFF800000> : vector<8x2xf32>
    %4 = vector.multi_reduction <maximumf>, %3, %cst_6 [2] : vector<8x2x2xf32> to vector<8x2xf32>
    %5 = vector.shape_cast %4 : vector<8x2xf32> to vector<8x2x1xf32>
    %6 = vector.broadcast %5 : vector<8x2x1xf32> to vector<8x2x2xf32>
    %7 = arith.subf %3, %6 : vector<8x2x2xf32>
    %8 = math.exp %7 : vector<8x2x2xf32>
    %cst_7 = arith.constant dense<0.000000e+00> : vector<8x2xf32>
    %9 = vector.multi_reduction <add>, %8, %cst_7 [2] : vector<8x2x2xf32> to vector<8x2xf32>
    %10 = vector.shape_cast %9 : vector<8x2xf32> to vector<8x2x1xf32>
    %11 = vector.broadcast %10 : vector<8x2x1xf32> to vector<8x2x2xf32>
    %12 = arith.divf %8, %11 : vector<8x2x2xf32>
    %13 = arith.truncf %12 : vector<8x2x2xf32> to vector<8x2x2xbf16>
    "tpu.trace_start"() <{level = 10 : i32, message = "pst,ptd->psd"}> : () -> ()
    %cst_8 = arith.constant dense<0.000000e+00> : vector<8x2x8xf32>
    %14 = tpu.matmul %13, %2, %cst_8 {dimension_numbers = #tpu.dot_dimension_numbers<[2], [1], [1], [2], [0, 0, 0, 1, 1, 2], [0], [0]>} : vector<8x2x2xbf16>, vector<8x2x8xbf16>, vector<8x2x8xf32> -> vector<8x2x8xf32>
    "tpu.trace_stop"() : () -> ()
    %c0_9 = arith.constant 0 : index
    %c0_10 = arith.constant 0 : index
    %c8 = arith.constant 8 : index
    %15 = vector.load %arg1[%c0_9, %c0_10, %c8] : memref<8x2x96xbf16, #tpu.memory_space<vmem>>, vector<8x2x8xbf16>
    %c0_11 = arith.constant 0 : index
    %c0_12 = arith.constant 0 : index
    %c40 = arith.constant 40 : index
    %16 = vector.load %arg1[%c0_11, %c0_12, %c40] : memref<8x2x96xbf16, #tpu.memory_space<vmem>>, vector<8x2x8xbf16>
    %c0_13 = arith.constant 0 : index
    %c0_14 = arith.constant 0 : index
    %c72 = arith.constant 72 : index
    %17 = vector.load %arg1[%c0_13, %c0_14, %c72] : memref<8x2x96xbf16, #tpu.memory_space<vmem>>, vector<8x2x8xbf16>
    "tpu.trace_start"() <{level = 10 : i32, message = "psd,ptd->pst"}> : () -> ()
    %cst_15 = arith.constant dense<0.000000e+00> : vector<8x2x2xf32>
    %18 = tpu.matmul %15, %16, %cst_15 {dimension_numbers = #tpu.dot_dimension_numbers<[2], [2], [1], [1], [0, 0, 0, 1, 1, 1], [0], [0]>} : vector<8x2x8xbf16>, vector<8x2x8xbf16>, vector<8x2x2xf32> -> vector<8x2x2xf32>
    "tpu.trace_stop"() : () -> ()
    %cst_16 = arith.constant dense<0xFF800000> : vector<8x2xf32>
    %19 = vector.multi_reduction <maximumf>, %18, %cst_16 [2] : vector<8x2x2xf32> to vector<8x2xf32>
    %20 = vector.shape_cast %19 : vector<8x2xf32> to vector<8x2x1xf32>
    %21 = vector.broadcast %20 : vector<8x2x1xf32> to vector<8x2x2xf32>
    %22 = arith.subf %18, %21 : vector<8x2x2xf32>
    %23 = math.exp %22 : vector<8x2x2xf32>
    %cst_17 = arith.constant dense<0.000000e+00> : vector<8x2xf32>
    %24 = vector.multi_reduction <add>, %23, %cst_17 [2] : vector<8x2x2xf32> to vector<8x2xf32>
    %25 = vector.shape_cast %24 : vector<8x2xf32> to vector<8x2x1xf32>
    %26 = vector.broadcast %25 : vector<8x2x1xf32> to vector<8x2x2xf32>
    %27 = arith.divf %23, %26 : vector<8x2x2xf32>
    %28 = arith.truncf %27 : vector<8x2x2xf32> to vector<8x2x2xbf16>
    "tpu.trace_start"() <{level = 10 : i32, message = "pst,ptd->psd"}> : () -> ()
    %cst_18 = arith.constant dense<0.000000e+00> : vector<8x2x8xf32>
    %29 = tpu.matmul %28, %17, %cst_18 {dimension_numbers = #tpu.dot_dimension_numbers<[2], [1], [1], [2], [0, 0, 0, 1, 1, 2], [0], [0]>} : vector<8x2x2xbf16>, vector<8x2x8xbf16>, vector<8x2x8xf32> -> vector<8x2x8xf32>
    "tpu.trace_stop"() : () -> ()
    %c0_19 = arith.constant 0 : index
    %c0_20 = arith.constant 0 : index
    %c16 = arith.constant 16 : index
    %30 = vector.load %arg1[%c0_19, %c0_20, %c16] : memref<8x2x96xbf16, #tpu.memory_space<vmem>>, vector<8x2x8xbf16>
    %c0_21 = arith.constant 0 : index
    %c0_22 = arith.constant 0 : index
    %c48 = arith.constant 48 : index
    %31 = vector.load %arg1[%c0_21, %c0_22, %c48] : memref<8x2x96xbf16, #tpu.memory_space<vmem>>, vector<8x2x8xbf16>
    %c0_23 = arith.constant 0 : index
    %c0_24 = arith.constant 0 : index
    %c80 = arith.constant 80 : index
    %32 = vector.load %arg1[%c0_23, %c0_24, %c80] : memref<8x2x96xbf16, #tpu.memory_space<vmem>>, vector<8x2x8xbf16>
    "tpu.trace_start"() <{level = 10 : i32, message = "psd,ptd->pst"}> : () -> ()
    %cst_25 = arith.constant dense<0.000000e+00> : vector<8x2x2xf32>
    %33 = tpu.matmul %30, %31, %cst_25 {dimension_numbers = #tpu.dot_dimension_numbers<[2], [2], [1], [1], [0, 0, 0, 1, 1, 1], [0], [0]>} : vector<8x2x8xbf16>, vector<8x2x8xbf16>, vector<8x2x2xf32> -> vector<8x2x2xf32>
    "tpu.trace_stop"() : () -> ()
    %cst_26 = arith.constant dense<0xFF800000> : vector<8x2xf32>
    %34 = vector.multi_reduction <maximumf>, %33, %cst_26 [2] : vector<8x2x2xf32> to vector<8x2xf32>
    %35 = vector.shape_cast %34 : vector<8x2xf32> to vector<8x2x1xf32>
    %36 = vector.broadcast %35 : vector<8x2x1xf32> to vector<8x2x2xf32>
    %37 = arith.subf %33, %36 : vector<8x2x2xf32>
    %38 = math.exp %37 : vector<8x2x2xf32>
    %cst_27 = arith.constant dense<0.000000e+00> : vector<8x2xf32>
    %39 = vector.multi_reduction <add>, %38, %cst_27 [2] : vector<8x2x2xf32> to vector<8x2xf32>
    %40 = vector.shape_cast %39 : vector<8x2xf32> to vector<8x2x1xf32>
    %41 = vector.broadcast %40 : vector<8x2x1xf32> to vector<8x2x2xf32>
    %42 = arith.divf %38, %41 : vector<8x2x2xf32>
    %43 = arith.truncf %42 : vector<8x2x2xf32> to vector<8x2x2xbf16>
    "tpu.trace_start"() <{level = 10 : i32, message = "pst,ptd->psd"}> : () -> ()
    %cst_28 = arith.constant dense<0.000000e+00> : vector<8x2x8xf32>
    %44 = tpu.matmul %43, %32, %cst_28 {dimension_numbers = #tpu.dot_dimension_numbers<[2], [1], [1], [2], [0, 0, 0, 1, 1, 2], [0], [0]>} : vector<8x2x2xbf16>, vector<8x2x8xbf16>, vector<8x2x8xf32> -> vector<8x2x8xf32>
    "tpu.trace_stop"() : () -> ()
    %c0_29 = arith.constant 0 : index
    %c0_30 = arith.constant 0 : index
    %c24 = arith.constant 24 : index
    %45 = vector.load %arg1[%c0_29, %c0_30, %c24] : memref<8x2x96xbf16, #tpu.memory_space<vmem>>, vector<8x2x8xbf16>
    %c0_31 = arith.constant 0 : index
    %c0_32 = arith.constant 0 : index
    %c56 = arith.constant 56 : index
    %46 = vector.load %arg1[%c0_31, %c0_32, %c56] : memref<8x2x96xbf16, #tpu.memory_space<vmem>>, vector<8x2x8xbf16>
    %c0_33 = arith.constant 0 : index
    %c0_34 = arith.constant 0 : index
    %c88 = arith.constant 88 : index
    %47 = vector.load %arg1[%c0_33, %c0_34, %c88] : memref<8x2x96xbf16, #tpu.memory_space<vmem>>, vector<8x2x8xbf16>
    "tpu.trace_start"() <{level = 10 : i32, message = "psd,ptd->pst"}> : () -> ()
    %cst_35 = arith.constant dense<0.000000e+00> : vector<8x2x2xf32>
    %48 = tpu.matmul %45, %46, %cst_35 {dimension_numbers = #tpu.dot_dimension_numbers<[2], [2], [1], [1], [0, 0, 0, 1, 1, 1], [0], [0]>} : vector<8x2x8xbf16>, vector<8x2x8xbf16>, vector<8x2x2xf32> -> vector<8x2x2xf32>
    "tpu.trace_stop"() : () -> ()
    %cst_36 = arith.constant dense<0xFF800000> : vector<8x2xf32>
    %49 = vector.multi_reduction <maximumf>, %48, %cst_36 [2] : vector<8x2x2xf32> to vector<8x2xf32>
    %50 = vector.shape_cast %49 : vector<8x2xf32> to vector<8x2x1xf32>
    %51 = vector.broadcast %50 : vector<8x2x1xf32> to vector<8x2x2xf32>
    %52 = arith.subf %48, %51 : vector<8x2x2xf32>
    %53 = math.exp %52 : vector<8x2x2xf32>
    %cst_37 = arith.constant dense<0.000000e+00> : vector<8x2xf32>
    %54 = vector.multi_reduction <add>, %53, %cst_37 [2] : vector<8x2x2xf32> to vector<8x2xf32>
    %55 = vector.shape_cast %54 : vector<8x2xf32> to vector<8x2x1xf32>
    %56 = vector.broadcast %55 : vector<8x2x1xf32> to vector<8x2x2xf32>
    %57 = arith.divf %53, %56 : vector<8x2x2xf32>
    %58 = arith.truncf %57 : vector<8x2x2xf32> to vector<8x2x2xbf16>
    "tpu.trace_start"() <{level = 10 : i32, message = "pst,ptd->psd"}> : () -> ()
    %cst_38 = arith.constant dense<0.000000e+00> : vector<8x2x8xf32>
    %59 = tpu.matmul %58, %47, %cst_38 {dimension_numbers = #tpu.dot_dimension_numbers<[2], [1], [1], [2], [0, 0, 0, 1, 1, 2], [0], [0]>} : vector<8x2x2xbf16>, vector<8x2x8xbf16>, vector<8x2x8xf32> -> vector<8x2x8xf32>
    "tpu.trace_stop"() : () -> ()
    %60 = tpu.concatenate %14, %29, %44, %59 in 2 : vector<8x2x8xf32>, vector<8x2x8xf32>, vector<8x2x8xf32>, vector<8x2x8xf32> -> vector<8x2x32xf32>
    %61 = arith.truncf %60 : vector<8x2x32xf32> to vector<8x2x32xbf16>
    %c0_39 = arith.constant 0 : index
    %c0_40 = arith.constant 0 : index
    %c0_41 = arith.constant 0 : index
    %62 = vector.load %arg2[%c0_39, %c0_40, %c0_41] : memref<8x2x32xbf16, #tpu.memory_space<vmem>>, vector<8x2x32xbf16>
    tpu.vector_store %arg2[%c0_39, %c0_40, %c0_41], %61 {strides = array<i32>} : memref<8x2x32xbf16, #tpu.memory_space<vmem>>, vector<8x2x32xbf16>,
    return
  }
  func.func @transform_0(%arg0: i32) -> (i32, i32, i32) {
    %c0_i32 = arith.constant 0 : i32
    %c0_i32_0 = arith.constant 0 : i32
    %c0_i32_1 = arith.constant 0 : i32
    return %arg0, %c0_i32, %c0_i32_0 : i32, i32, i32
  }
  func.func @transform_1(%arg0: i32) -> (i32, i32, i32) {
    %c0_i32 = arith.constant 0 : i32
    %c0_i32_0 = arith.constant 0 : i32
    %c0_i32_1 = arith.constant 0 : i32
    return %arg0, %c0_i32, %c0_i32_0 : i32, i32, i32
  }
}

module attributes {stable_mosaic.version = 11 : i64} {
  func.func @_proj_res_ln_kernel(%arg0: i32, %arg1: memref<32x32xbf16, #tpu.memory_space<vmem>>, %arg2: memref<32x32xbf16, #tpu.memory_space<vmem>>, %arg3: memref<1x32xf32, #tpu.memory_space<vmem>>, %arg4: memref<32x32xbf16, #tpu.memory_space<vmem>>, %arg5: memref<1x32xf32, #tpu.memory_space<vmem>>, %arg6: memref<1x32xf32, #tpu.memory_space<vmem>>, %arg7: memref<32x32xbf16, #tpu.memory_space<vmem>>) attributes {dimension_semantics = [#tpu.dimension_semantics<parallel>], iteration_bounds = array<i64: 1>, scalar_prefetch = 0 : i64, scratch_operands = 0 : i64, tpu.core_type = #tpu.core_type<tc>, window_params = [{transform_indices = @transform_0, window_bounds = array<i64: 32, 32>}, {pipeline_mode = #tpu.pipeline_mode<synchronous>, transform_indices = @transform_1, window_bounds = array<i64: 32, 32>}, {pipeline_mode = #tpu.pipeline_mode<synchronous>, transform_indices = @transform_2, window_bounds = array<i64: 1, 32>}, {transform_indices = @transform_3, window_bounds = array<i64: 32, 32>}, {pipeline_mode = #tpu.pipeline_mode<synchronous>, transform_indices = @transform_4, window_bounds = array<i64: 1, 32>}, {pipeline_mode = #tpu.pipeline_mode<synchronous>, transform_indices = @transform_5, window_bounds = array<i64: 1, 32>}, {transform_indices = @transform_6, window_bounds = array<i64: 32, 32>}]} {
    %c0 = arith.constant 0 : index
    %c0_0 = arith.constant 0 : index
    %0 = vector.load %arg1[%c0, %c0_0] : memref<32x32xbf16, #tpu.memory_space<vmem>>, vector<32x32xbf16>
    %c0_1 = arith.constant 0 : index
    %c0_2 = arith.constant 0 : index
    %1 = vector.load %arg2[%c0_1, %c0_2] : memref<32x32xbf16, #tpu.memory_space<vmem>>, vector<32x32xbf16>
    %cst = arith.constant dense<0.000000e+00> : vector<32x32xf32>
    %2 = tpu.matmul %0, %1, %cst {dimension_numbers = #tpu.dot_dimension_numbers<[1], [0], [0], [1], [0, 0, 1, 1], [], []>} : vector<32x32xbf16>, vector<32x32xbf16>, vector<32x32xf32> -> vector<32x32xf32>
    %c0_3 = arith.constant 0 : index
    %c0_4 = arith.constant 0 : index
    %3 = vector.load %arg3[%c0_3, %c0_4] : memref<1x32xf32, #tpu.memory_space<vmem>>, vector<1x32xf32>
    %4 = vector.broadcast %3 : vector<1x32xf32> to vector<32x32xf32>
    %5 = arith.addf %2, %4 : vector<32x32xf32>
    %c0_5 = arith.constant 0 : index
    %c0_6 = arith.constant 0 : index
    %6 = vector.load %arg4[%c0_5, %c0_6] : memref<32x32xbf16, #tpu.memory_space<vmem>>, vector<32x32xbf16>
    %7 = arith.extf %6 : vector<32x32xbf16> to vector<32x32xf32>
    %8 = arith.addf %7, %5 : vector<32x32xf32>
    %c0_7 = arith.constant 0 : index
    %c0_8 = arith.constant 0 : index
    %9 = vector.load %arg5[%c0_7, %c0_8] : memref<1x32xf32, #tpu.memory_space<vmem>>, vector<1x32xf32>
    %c0_9 = arith.constant 0 : index
    %c0_10 = arith.constant 0 : index
    %10 = vector.load %arg6[%c0_9, %c0_10] : memref<1x32xf32, #tpu.memory_space<vmem>>, vector<1x32xf32>
    %cst_11 = arith.constant dense<0.000000e+00> : vector<32xf32>
    %11 = vector.multi_reduction <add>, %8, %cst_11 [1] : vector<32x32xf32> to vector<32xf32>
    %12 = vector.shape_cast %11 : vector<32xf32> to vector<32x1xf32>
    %cst_12 = arith.constant 3.200000e+01 : f32
    %13 = vector.broadcast %cst_12 : f32 to vector<32x1xf32>
    %14 = arith.divf %12, %13 : vector<32x1xf32>
    %15 = vector.broadcast %14 : vector<32x1xf32> to vector<32x32xf32>
    %16 = arith.subf %8, %15 : vector<32x32xf32>
    %17 = arith.mulf %16, %16 : vector<32x32xf32>
    %cst_13 = arith.constant dense<0.000000e+00> : vector<32xf32>
    %18 = vector.multi_reduction <add>, %17, %cst_13 [1] : vector<32x32xf32> to vector<32xf32>
    %19 = vector.shape_cast %18 : vector<32xf32> to vector<32x1xf32>
    %cst_14 = arith.constant 3.200000e+01 : f32
    %20 = vector.broadcast %cst_14 : f32 to vector<32x1xf32>
    %21 = arith.divf %19, %20 : vector<32x1xf32>
    %22 = vector.broadcast %14 : vector<32x1xf32> to vector<32x32xf32>
    %23 = arith.subf %8, %22 : vector<32x32xf32>
    %cst_15 = arith.constant 9.99999974E-6 : f32
    %24 = vector.broadcast %cst_15 : f32 to vector<32x1xf32>
    %25 = arith.addf %21, %24 : vector<32x1xf32>
    %26 = math.rsqrt %25 : vector<32x1xf32>
    %27 = vector.broadcast %26 : vector<32x1xf32> to vector<32x32xf32>
    %28 = arith.mulf %23, %27 : vector<32x32xf32>
    %29 = vector.broadcast %9 : vector<1x32xf32> to vector<32x32xf32>
    %30 = arith.mulf %28, %29 : vector<32x32xf32>
    %31 = vector.broadcast %10 : vector<1x32xf32> to vector<32x32xf32>
    %32 = arith.addf %30, %31 : vector<32x32xf32>
    %33 = arith.truncf %32 : vector<32x32xf32> to vector<32x32xbf16>
    %c0_16 = arith.constant 0 : index
    %c0_17 = arith.constant 0 : index
    %34 = vector.load %arg7[%c0_16, %c0_17] : memref<32x32xbf16, #tpu.memory_space<vmem>>, vector<32x32xbf16>
    tpu.vector_store %arg7[%c0_16, %c0_17], %33 {strides = array<i32>} : memref<32x32xbf16, #tpu.memory_space<vmem>>, vector<32x32xbf16>,
    return
  }
  func.func @transform_0(%arg0: i32) -> (i32, i32) {
    %c0_i32 = arith.constant 0 : i32
    %c0_i32_0 = arith.constant 0 : i32
    return %arg0, %c0_i32 : i32, i32
  }
  func.func @transform_1(%arg0: i32) -> (i32, i32) {
    %c0_i32 = arith.constant 0 : i32
    %c0_i32_0 = arith.constant 0 : i32
    %c0_i32_1 = arith.constant 0 : i32
    return %c0_i32, %c0_i32_0 : i32, i32
  }
  func.func @transform_2(%arg0: i32) -> (i32, i32) {
    %c0_i32 = arith.constant 0 : i32
    %c0_i32_0 = arith.constant 0 : i32
    %c0_i32_1 = arith.constant 0 : i32
    return %c0_i32, %c0_i32_0 : i32, i32
  }
  func.func @transform_3(%arg0: i32) -> (i32, i32) {
    %c0_i32 = arith.constant 0 : i32
    %c0_i32_0 = arith.constant 0 : i32
    return %arg0, %c0_i32 : i32, i32
  }
  func.func @transform_4(%arg0: i32) -> (i32, i32) {
    %c0_i32 = arith.constant 0 : i32
    %c0_i32_0 = arith.constant 0 : i32
    %c0_i32_1 = arith.constant 0 : i32
    return %c0_i32, %c0_i32_0 : i32, i32
  }
  func.func @transform_5(%arg0: i32) -> (i32, i32) {
    %c0_i32 = arith.constant 0 : i32
    %c0_i32_0 = arith.constant 0 : i32
    %c0_i32_1 = arith.constant 0 : i32
    return %c0_i32, %c0_i32_0 : i32, i32
  }
  func.func @transform_6(%arg0: i32) -> (i32, i32) {
    %c0_i32 = arith.constant 0 : i32
    %c0_i32_0 = arith.constant 0 : i32
    return %arg0, %c0_i32 : i32, i32
  }
}

module attributes {stable_mosaic.version = 11 : i64} {
  func.func @_matmul_bias_kernel(%arg0: i32, %arg1: i32, %arg2: i32, %arg3: memref<32x32xbf16, #tpu.memory_space<vmem>>, %arg4: memref<32x96xbf16, #tpu.memory_space<vmem>>, %arg5: memref<1x96xf32, #tpu.memory_space<vmem>>, %arg6: memref<32x96xbf16, #tpu.memory_space<vmem>>, %arg7: memref<32x96xf32, #tpu.memory_space<vmem>>) attributes {dimension_semantics = [#tpu.dimension_semantics<parallel>, #tpu.dimension_semantics<parallel>, #tpu.dimension_semantics<arbitrary>], iteration_bounds = array<i64: 1, 1, 1>, scalar_prefetch = 0 : i64, scratch_operands = 1 : i64, tpu.core_type = #tpu.core_type<tc>, window_params = [{transform_indices = @transform_0, window_bounds = array<i64: 32, 32>}, {transform_indices = @transform_1, window_bounds = array<i64: 32, 96>}, {transform_indices = @transform_2, window_bounds = array<i64: 1, 96>}, {transform_indices = @transform_3, window_bounds = array<i64: 32, 96>}]} {
    %c0_i32 = arith.constant 0 : i32
    %0 = arith.cmpi eq, %arg2, %c0_i32 : i32
    %1 = arith.extui %0 : i1 to i32
    %c0_i32_0 = arith.constant 0 : i32
    %2 = arith.cmpi ne, %1, %c0_i32_0 : i32
    scf.if %2 {
      %cst_10 = arith.constant 0.000000e+00 : f32
      %12 = vector.broadcast %cst_10 : f32 to vector<32x96xf32>
      %c0_11 = arith.constant 0 : index
      %c0_12 = arith.constant 0 : index
      %13 = vector.load %arg7[%c0_11, %c0_12] : memref<32x96xf32, #tpu.memory_space<vmem>>, vector<32x96xf32>
      tpu.vector_store %arg7[%c0_11, %c0_12], %12 {strides = array<i32>} : memref<32x96xf32, #tpu.memory_space<vmem>>, vector<32x96xf32>,
    } else {
    }
    %c0 = arith.constant 0 : index
    %c0_1 = arith.constant 0 : index
    %3 = vector.load %arg7[%c0, %c0_1] : memref<32x96xf32, #tpu.memory_space<vmem>>, vector<32x96xf32>
    %c0_2 = arith.constant 0 : index
    %c0_3 = arith.constant 0 : index
    %4 = vector.load %arg3[%c0_2, %c0_3] : memref<32x32xbf16, #tpu.memory_space<vmem>>, vector<32x32xbf16>
    %c0_4 = arith.constant 0 : index
    %c0_5 = arith.constant 0 : index
    %5 = vector.load %arg4[%c0_4, %c0_5] : memref<32x96xbf16, #tpu.memory_space<vmem>>, vector<32x96xbf16>
    %cst = arith.constant dense<0.000000e+00> : vector<32x96xf32>
    %6 = tpu.matmul %4, %5, %cst {dimension_numbers = #tpu.dot_dimension_numbers<[1], [0], [0], [1], [0, 0, 1, 1], [], []>} : vector<32x32xbf16>, vector<32x96xbf16>, vector<32x96xf32> -> vector<32x96xf32>
    %7 = arith.addf %3, %6 : vector<32x96xf32>
    %c0_6 = arith.constant 0 : index
    %c0_7 = arith.constant 0 : index
    %8 = vector.load %arg7[%c0_6, %c0_7] : memref<32x96xf32, #tpu.memory_space<vmem>>, vector<32x96xf32>
    tpu.vector_store %arg7[%c0_6, %c0_7], %7 {strides = array<i32>} : memref<32x96xf32, #tpu.memory_space<vmem>>, vector<32x96xf32>,
    %c0_i32_8 = arith.constant 0 : i32
    %9 = arith.cmpi eq, %arg2, %c0_i32_8 : i32
    %10 = arith.extui %9 : i1 to i32
    %c0_i32_9 = arith.constant 0 : i32
    %11 = arith.cmpi ne, %10, %c0_i32_9 : i32
    scf.if %11 {
      %c0_10 = arith.constant 0 : index
      %c0_11 = arith.constant 0 : index
      %12 = vector.load %arg7[%c0_10, %c0_11] : memref<32x96xf32, #tpu.memory_space<vmem>>, vector<32x96xf32>
      %c0_12 = arith.constant 0 : index
      %c0_13 = arith.constant 0 : index
      %13 = vector.load %arg5[%c0_12, %c0_13] : memref<1x96xf32, #tpu.memory_space<vmem>>, vector<1x96xf32>
      %14 = vector.broadcast %13 : vector<1x96xf32> to vector<32x96xf32>
      %15 = arith.addf %12, %14 : vector<32x96xf32>
      %16 = arith.truncf %15 : vector<32x96xf32> to vector<32x96xbf16>
      %c0_14 = arith.constant 0 : index
      %c0_15 = arith.constant 0 : index
      %17 = vector.load %arg6[%c0_14, %c0_15] : memref<32x96xbf16, #tpu.memory_space<vmem>>, vector<32x96xbf16>
      tpu.vector_store %arg6[%c0_14, %c0_15], %16 {strides = array<i32>} : memref<32x96xbf16, #tpu.memory_space<vmem>>, vector<32x96xbf16>,
    } else {
    }
    return
  }
  func.func @transform_0(%arg0: i32, %arg1: i32, %arg2: i32) -> (i32, i32) {
    %c0_i32 = arith.constant 0 : i32
    return %arg0, %arg2 : i32, i32
  }
  func.func @transform_1(%arg0: i32, %arg1: i32, %arg2: i32) -> (i32, i32) {
    %c0_i32 = arith.constant 0 : i32
    return %arg2, %arg1 : i32, i32
  }
  func.func @transform_2(%arg0: i32, %arg1: i32, %arg2: i32) -> (i32, i32) {
    %c0_i32 = arith.constant 0 : i32
    %c0_i32_0 = arith.constant 0 : i32
    return %c0_i32, %arg1 : i32, i32
  }
  func.func @transform_3(%arg0: i32, %arg1: i32, %arg2: i32) -> (i32, i32) {
    %c0_i32 = arith.constant 0 : i32
    return %arg0, %arg1 : i32, i32
  }
}

module attributes {stable_mosaic.version = 11 : i64} {
  func.func @_ffn_ln_kernel(%arg0: i32, %arg1: i32, %arg2: memref<32x32xbf16, #tpu.memory_space<vmem>>, %arg3: memref<32x64xbf16, #tpu.memory_space<vmem>>, %arg4: memref<1x64xf32, #tpu.memory_space<vmem>>, %arg5: memref<64x32xbf16, #tpu.memory_space<vmem>>, %arg6: memref<1x32xf32, #tpu.memory_space<vmem>>, %arg7: memref<1x32xf32, #tpu.memory_space<vmem>>, %arg8: memref<1x32xf32, #tpu.memory_space<vmem>>, %arg9: memref<32x32xbf16, #tpu.memory_space<vmem>>, %arg10: memref<32x32xf32, #tpu.memory_space<vmem>>) attributes {dimension_semantics = [#tpu.dimension_semantics<parallel>, #tpu.dimension_semantics<arbitrary>], iteration_bounds = array<i64: 1, 1>, scalar_prefetch = 0 : i64, scratch_operands = 1 : i64, tpu.core_type = #tpu.core_type<tc>, window_params = [{transform_indices = @transform_0, window_bounds = array<i64: 32, 32>}, {transform_indices = @transform_1, window_bounds = array<i64: 32, 64>}, {transform_indices = @transform_2, window_bounds = array<i64: 1, 64>}, {transform_indices = @transform_3, window_bounds = array<i64: 64, 32>}, {pipeline_mode = #tpu.pipeline_mode<synchronous>, transform_indices = @transform_4, window_bounds = array<i64: 1, 32>}, {pipeline_mode = #tpu.pipeline_mode<synchronous>, transform_indices = @transform_5, window_bounds = array<i64: 1, 32>}, {pipeline_mode = #tpu.pipeline_mode<synchronous>, transform_indices = @transform_6, window_bounds = array<i64: 1, 32>}, {transform_indices = @transform_7, window_bounds = array<i64: 32, 32>}]} {
    %c0_i32 = arith.constant 0 : i32
    %0 = arith.cmpi eq, %arg1, %c0_i32 : i32
    %1 = arith.extui %0 : i1 to i32
    %c0_i32_0 = arith.constant 0 : i32
    %2 = arith.cmpi ne, %1, %c0_i32_0 : i32
    scf.if %2 {
      %cst_18 = arith.constant 0.000000e+00 : f32
      %26 = vector.broadcast %cst_18 : f32 to vector<32x32xf32>
      %c0_19 = arith.constant 0 : index
      %c0_20 = arith.constant 0 : index
      %27 = vector.load %arg10[%c0_19, %c0_20] : memref<32x32xf32, #tpu.memory_space<vmem>>, vector<32x32xf32>
      tpu.vector_store %arg10[%c0_19, %c0_20], %26 {strides = array<i32>} : memref<32x32xf32, #tpu.memory_space<vmem>>, vector<32x32xf32>,
    } else {
    }
    %c0 = arith.constant 0 : index
    %c0_1 = arith.constant 0 : index
    %3 = vector.load %arg2[%c0, %c0_1] : memref<32x32xbf16, #tpu.memory_space<vmem>>, vector<32x32xbf16>
    %c0_2 = arith.constant 0 : index
    %c0_3 = arith.constant 0 : index
    %4 = vector.load %arg3[%c0_2, %c0_3] : memref<32x64xbf16, #tpu.memory_space<vmem>>, vector<32x64xbf16>
    %cst = arith.constant dense<0.000000e+00> : vector<32x64xf32>
    %5 = tpu.matmul %3, %4, %cst {dimension_numbers = #tpu.dot_dimension_numbers<[1], [0], [0], [1], [0, 0, 1, 1], [], []>} : vector<32x32xbf16>, vector<32x64xbf16>, vector<32x64xf32> -> vector<32x64xf32>
    %c0_4 = arith.constant 0 : index
    %c0_5 = arith.constant 0 : index
    %6 = vector.load %arg4[%c0_4, %c0_5] : memref<1x64xf32, #tpu.memory_space<vmem>>, vector<1x64xf32>
    %7 = vector.broadcast %6 : vector<1x64xf32> to vector<32x64xf32>
    %8 = arith.addf %5, %7 : vector<32x64xf32>
    %cst_6 = arith.constant 5.000000e-01 : f32
    %9 = vector.broadcast %cst_6 : f32 to vector<32x64xf32>
    %10 = arith.mulf %9, %8 : vector<32x64xf32>
    %cst_7 = arith.constant 0.707106769 : f32
    %11 = vector.broadcast %cst_7 : f32 to vector<32x64xf32>
    %12 = arith.mulf %8, %11 : vector<32x64xf32>
    %13 = math.erf %12 : vector<32x64xf32>
    %cst_8 = arith.constant 1.000000e+00 : f32
    %14 = vector.broadcast %cst_8 : f32 to vector<32x64xf32>
    %15 = arith.addf %14, %13 : vector<32x64xf32>
    %16 = arith.mulf %10, %15 : vector<32x64xf32>
    %c0_9 = arith.constant 0 : index
    %c0_10 = arith.constant 0 : index
    %17 = vector.load %arg10[%c0_9, %c0_10] : memref<32x32xf32, #tpu.memory_space<vmem>>, vector<32x32xf32>
    %18 = arith.truncf %16 : vector<32x64xf32> to vector<32x64xbf16>
    %c0_11 = arith.constant 0 : index
    %c0_12 = arith.constant 0 : index
    %19 = vector.load %arg5[%c0_11, %c0_12] : memref<64x32xbf16, #tpu.memory_space<vmem>>, vector<64x32xbf16>
    %cst_13 = arith.constant dense<0.000000e+00> : vector<32x32xf32>
    %20 = tpu.matmul %18, %19, %cst_13 {dimension_numbers = #tpu.dot_dimension_numbers<[1], [0], [0], [1], [0, 0, 1, 1], [], []>} : vector<32x64xbf16>, vector<64x32xbf16>, vector<32x32xf32> -> vector<32x32xf32>
    %21 = arith.addf %17, %20 : vector<32x32xf32>
    %c0_14 = arith.constant 0 : index
    %c0_15 = arith.constant 0 : index
    %22 = vector.load %arg10[%c0_14, %c0_15] : memref<32x32xf32, #tpu.memory_space<vmem>>, vector<32x32xf32>
    tpu.vector_store %arg10[%c0_14, %c0_15], %21 {strides = array<i32>} : memref<32x32xf32, #tpu.memory_space<vmem>>, vector<32x32xf32>,
    %c0_i32_16 = arith.constant 0 : i32
    %23 = arith.cmpi eq, %arg1, %c0_i32_16 : i32
    %24 = arith.extui %23 : i1 to i32
    %c0_i32_17 = arith.constant 0 : i32
    %25 = arith.cmpi ne, %24, %c0_i32_17 : i32
    scf.if %25 {
      %c0_18 = arith.constant 0 : index
      %c0_19 = arith.constant 0 : index
      %26 = vector.load %arg2[%c0_18, %c0_19] : memref<32x32xbf16, #tpu.memory_space<vmem>>, vector<32x32xbf16>
      %27 = arith.extf %26 : vector<32x32xbf16> to vector<32x32xf32>
      %c0_20 = arith.constant 0 : index
      %c0_21 = arith.constant 0 : index
      %28 = vector.load %arg10[%c0_20, %c0_21] : memref<32x32xf32, #tpu.memory_space<vmem>>, vector<32x32xf32>
      %29 = arith.addf %27, %28 : vector<32x32xf32>
      %c0_22 = arith.constant 0 : index
      %c0_23 = arith.constant 0 : index
      %30 = vector.load %arg6[%c0_22, %c0_23] : memref<1x32xf32, #tpu.memory_space<vmem>>, vector<1x32xf32>
      %31 = vector.broadcast %30 : vector<1x32xf32> to vector<32x32xf32>
      %32 = arith.addf %29, %31 : vector<32x32xf32>
      %c0_24 = arith.constant 0 : index
      %c0_25 = arith.constant 0 : index
      %33 = vector.load %arg7[%c0_24, %c0_25] : memref<1x32xf32, #tpu.memory_space<vmem>>, vector<1x32xf32>
      %c0_26 = arith.constant 0 : index
      %c0_27 = arith.constant 0 : index
      %34 = vector.load %arg8[%c0_26, %c0_27] : memref<1x32xf32, #tpu.memory_space<vmem>>, vector<1x32xf32>
      %cst_28 = arith.constant dense<0.000000e+00> : vector<32xf32>
      %35 = vector.multi_reduction <add>, %32, %cst_28 [1] : vector<32x32xf32> to vector<32xf32>
      %36 = vector.shape_cast %35 : vector<32xf32> to vector<32x1xf32>
      %cst_29 = arith.constant 3.200000e+01 : f32
      %37 = vector.broadcast %cst_29 : f32 to vector<32x1xf32>
      %38 = arith.divf %36, %37 : vector<32x1xf32>
      %39 = vector.broadcast %38 : vector<32x1xf32> to vector<32x32xf32>
      %40 = arith.subf %32, %39 : vector<32x32xf32>
      %41 = arith.mulf %40, %40 : vector<32x32xf32>
      %cst_30 = arith.constant dense<0.000000e+00> : vector<32xf32>
      %42 = vector.multi_reduction <add>, %41, %cst_30 [1] : vector<32x32xf32> to vector<32xf32>
      %43 = vector.shape_cast %42 : vector<32xf32> to vector<32x1xf32>
      %cst_31 = arith.constant 3.200000e+01 : f32
      %44 = vector.broadcast %cst_31 : f32 to vector<32x1xf32>
      %45 = arith.divf %43, %44 : vector<32x1xf32>
      %46 = vector.broadcast %38 : vector<32x1xf32> to vector<32x32xf32>
      %47 = arith.subf %32, %46 : vector<32x32xf32>
      %cst_32 = arith.constant 9.99999974E-6 : f32
      %48 = vector.broadcast %cst_32 : f32 to vector<32x1xf32>
      %49 = arith.addf %45, %48 : vector<32x1xf32>
      %50 = math.rsqrt %49 : vector<32x1xf32>
      %51 = vector.broadcast %50 : vector<32x1xf32> to vector<32x32xf32>
      %52 = arith.mulf %47, %51 : vector<32x32xf32>
      %53 = vector.broadcast %33 : vector<1x32xf32> to vector<32x32xf32>
      %54 = arith.mulf %52, %53 : vector<32x32xf32>
      %55 = vector.broadcast %34 : vector<1x32xf32> to vector<32x32xf32>
      %56 = arith.addf %54, %55 : vector<32x32xf32>
      %57 = arith.truncf %56 : vector<32x32xf32> to vector<32x32xbf16>
      %c0_33 = arith.constant 0 : index
      %c0_34 = arith.constant 0 : index
      %58 = vector.load %arg9[%c0_33, %c0_34] : memref<32x32xbf16, #tpu.memory_space<vmem>>, vector<32x32xbf16>
      tpu.vector_store %arg9[%c0_33, %c0_34], %57 {strides = array<i32>} : memref<32x32xbf16, #tpu.memory_space<vmem>>, vector<32x32xbf16>,
    } else {
    }
    return
  }
  func.func @transform_0(%arg0: i32, %arg1: i32) -> (i32, i32) {
    %c0_i32 = arith.constant 0 : i32
    %c0_i32_0 = arith.constant 0 : i32
    return %arg0, %c0_i32 : i32, i32
  }
  func.func @transform_1(%arg0: i32, %arg1: i32) -> (i32, i32) {
    %c0_i32 = arith.constant 0 : i32
    %c0_i32_0 = arith.constant 0 : i32
    return %c0_i32, %arg1 : i32, i32
  }
  func.func @transform_2(%arg0: i32, %arg1: i32) -> (i32, i32) {
    %c0_i32 = arith.constant 0 : i32
    %c0_i32_0 = arith.constant 0 : i32
    return %c0_i32, %arg1 : i32, i32
  }
  func.func @transform_3(%arg0: i32, %arg1: i32) -> (i32, i32) {
    %c0_i32 = arith.constant 0 : i32
    %c0_i32_0 = arith.constant 0 : i32
    return %arg1, %c0_i32 : i32, i32
  }
  func.func @transform_4(%arg0: i32, %arg1: i32) -> (i32, i32) {
    %c0_i32 = arith.constant 0 : i32
    %c0_i32_0 = arith.constant 0 : i32
    %c0_i32_1 = arith.constant 0 : i32
    return %c0_i32, %c0_i32_0 : i32, i32
  }
  func.func @transform_5(%arg0: i32, %arg1: i32) -> (i32, i32) {
    %c0_i32 = arith.constant 0 : i32
    %c0_i32_0 = arith.constant 0 : i32
    %c0_i32_1 = arith.constant 0 : i32
    return %c0_i32, %c0_i32_0 : i32, i32
  }
  func.func @transform_6(%arg0: i32, %arg1: i32) -> (i32, i32) {
    %c0_i32 = arith.constant 0 : i32
    %c0_i32_0 = arith.constant 0 : i32
    %c0_i32_1 = arith.constant 0 : i32
    return %c0_i32, %c0_i32_0 : i32, i32
  }
  func.func @transform_7(%arg0: i32, %arg1: i32) -> (i32, i32) {
    %c0_i32 = arith.constant 0 : i32
    %c0_i32_0 = arith.constant 0 : i32
    return %arg0, %c0_i32 : i32, i32
  }
}

</mosaic_0001>

<llo_original>
// kernel: vit_encoder_forward.12
$region0: #{vit_encoder_forward.12}
  #allocation0 [shape = 'u32[]', space=smem, size = 0x4, offset = 0x4, fixed_abs, tag = 'smem constant byte address 0x4 - core index']
  #allocation1 [shape = 'u32[144,128]{1,0:T(1,128)}', space=vmem, size = 0x12000, scoped, tag = 'internal scratch']
  %s0 = inlined_call_operand.vmem [shape: bf16[32,32], index: 0, kind: input, shape index: {}]
  %s1 = inlined_call_operand.vmem [shape: bf16[32,32], index: 1, kind: input, shape index: {}]
  %s2 = inlined_call_operand.vmem [shape: f32[1,32], index: 2, kind: input, shape index: {}]
  %s3 = inlined_call_operand.vmem [shape: bf16[32,32], index: 3, kind: input, shape index: {}]
  %s4 = inlined_call_operand.vmem [shape: f32[1,32], index: 4, kind: input, shape index: {}]
  %s5 = inlined_call_operand.vmem [shape: f32[1,32], index: 5, kind: input, shape index: {}]
  %s6 = inlined_call_operand.vmem [shape: bf16[32,32], index: 6, kind: output, shape index: {}]
  %s7 = sld [smem:[#allocation0]]
  $region34: #{vit_encoder_forward.12} parent=0
    _
  %s9 = ssub.s32 1, %s7
  %s10 = scalar_select 0, %s9, %s7
  // Predicated region
  $region2: #{vit_encoder_forward.12} parent=0 // pred_check
    _
  $region3: #{vit_encoder_forward.12} parent=0 // pred_check_branch
    %12 = sbr.rel (0) target = $region5
  $region4: #{vit_encoder_forward.12} parent=0 // pred_region
    _
  $region5: #{vit_encoder_forward.12} parent=0 // pred_fallthru
    _
  // Predicated region
  $region6: #{vit_encoder_forward.12} parent=0 // pred_check
    _
  $region7: #{vit_encoder_forward.12} parent=0 // pred_check_branch
    %14 = sbr.rel (0) target = $region9
  $region8: #{vit_encoder_forward.12} parent=0 // pred_region
    _
  $region9: #{vit_encoder_forward.12} parent=0 // pred_fallthru
    _
  // Predicated region
  $region10: #{vit_encoder_forward.12} parent=0 // pred_check
    _
  $region11: #{vit_encoder_forward.12} parent=0 // pred_check_branch
    %16 = sbr.rel (0) target = $region13
  $region12: #{vit_encoder_forward.12} parent=0 // pred_region
    _
  $region13: #{vit_encoder_forward.12} parent=0 // pred_fallthru
    _
  // Predicated region
  $region14: #{vit_encoder_forward.12} parent=0 // pred_check
    _
  $region15: #{vit_encoder_forward.12} parent=0 // pred_check_branch
    %18 = sbr.rel (0) target = $region17
  $region16: #{vit_encoder_forward.12} parent=0 // pred_region
    _
  $region17: #{vit_encoder_forward.12} parent=0 // pred_fallthru
    _
  // Predicated region
  $region18: #{vit_encoder_forward.12} parent=0 // pred_check
    _
  $region19: #{vit_encoder_forward.12} parent=0 // pred_check_branch
    %20 = sbr.rel (0) target = $region21
  $region20: #{vit_encoder_forward.12} parent=0 // pred_region
    _
  $region21: #{vit_encoder_forward.12} parent=0 // pred_fallthru
    _
  // Predicated region
  $region22: #{vit_encoder_forward.12} parent=0 // pred_check
    _
  $region23: #{vit_encoder_forward.12} parent=0 // pred_check_branch
    %22 = sbr.rel (0) target = $region25
  $region24: #{vit_encoder_forward.12} parent=0 // pred_region
    _
  $region25: #{vit_encoder_forward.12} parent=0 // pred_fallthru
    _
  %v24 = vld [vmem:[%s0] sm:$0xf]
  %v25 = vld [vmem:[%s0 + $0x4] sm:$0xf]
  %v26 = vld [vmem:[%s0 + $0x8] sm:$0xf]
  %v27 = vld [vmem:[%s0 + $0xc] sm:$0xf]
  %v28 = vld [vmem:[%s1] sm:$0xf]
  %v29 = vld [vmem:[%s1 + $0x4] sm:$0xf]
  %v30 = vld [vmem:[%s1 + $0x8] sm:$0xf]
  %v31 = vld [vmem:[%s1 + $0xc] sm:$0xf]
  %v32 = vld [vmem:[%s2] sm:$0x1]
  %v34 = vlaneseq
  %v35 = vshrl.u32 %v34, 7
  %v36 = vsub.s32 0, %v35
  %v37 = vrot.slane %v32, %v36
  %v43 = vunpack.c.l.b16 %v24
  %v44 = vunpack.c.l.b16 %v25
  %v45 = vunpack.c.l.b16 %v26
  %v46 = vunpack.c.l.b16 %v27
  %v47 = vpack.c.b16 %v44, %v43
  %v48 = vpack.c.b16 %v46, %v45
  %v53 = vunpack.c.l.b16 %v28
  %v54 = vunpack.c.l.b16 %v29
  %v55 = vunpack.c.l.b16 %v30
  %v56 = vunpack.c.l.b16 %v31
  %v57 = vpack.c.b16 %v54, %v53
  %v58 = vpack.c.b16 %v56, %v55
  %vm61 = vcmask 261120
  %v63 = vsel %vm61, %v47, 0
  %v66 = vsel %vm61, %v48, 0
  %68 = vmatprep.subr.bf16.mxu0 0
  %69 = vmatpush1.bf16.msra.mxu0 %v57
  %70 = vmatprep.subr.bf16.mxu0 0
  %71 = vmatpush1.bf16.msra.mxu0 %v58
  %72 = vmatprep.subr.bf16.mxu0 0
  %73 = vmatpush1.bf16.msra.mxu0 0
  %74 = vmatprep.subr.bf16.mxu0 0
  %75 = vmatpush1.bf16.msra.mxu0 0
  %76 = vmatprep.subr.bf16.mxu0 0
  %77 = vmatpush1.bf16.msra.mxu0 0
  %78 = vmatprep.subr.bf16.mxu0 0
  %79 = vmatpush1.bf16.msra.mxu0 0
  %80 = vmatprep.subr.bf16.mxu0 0
  %81 = vmatpush1.bf16.msra.mxu0 0
  %82 = vmatprep.subr.bf16.mxu0 0
  %83 = vmatpush1.bf16.msra.mxu0 0
  %84 = vmatprep.subr.bf16.mxu0 0
  %85 = vmatpush1.bf16.msra.mxu0 0
  %86 = vmatprep.subr.bf16.mxu0 0
  %87 = vmatpush1.bf16.msra.mxu0 0
  %88 = vmatprep.subr.bf16.mxu0 0
  %89 = vmatpush1.bf16.msra.mxu0 0
  %90 = vmatprep.subr.bf16.mxu0 0
  %91 = vmatpush1.bf16.msra.mxu0 0
  %92 = vmatprep.subr.bf16.mxu0 0
  %93 = vmatpush1.bf16.msra.mxu0 0
  %94 = vmatprep.subr.bf16.mxu0 0
  %95 = vmatpush1.bf16.msra.mxu0 0
  %96 = vmatprep.subr.bf16.mxu0 0
  %97 = vmatpush1.bf16.msra.mxu0 0
  %98 = vmatprep.subr.bf16.mxu0 0
  %99 = vmatpush1.bf16.msra.mxu0 0
  %100 = vmatprep.mubr.bf16.mxu0 0
  %101 = vmatmul.mubr.bf16.gmra.mrb[0].mxu0 %v63
  %v102 = vpop.f32.mrb[0].mxu0
  %v103 = vadd.f32 %v37, %v102
  %v104 = vpop.f32.mrb[0].mxu0
  %v105 = vpop.f32.mrb[0].mxu0
  %v106 = vadd.f32 %v37, %v105
  %v107 = vpop.f32.mrb[0].mxu0
  %108 = vmatprep.mubr.bf16.mxu0 0
  %109 = vmatmul.mubr.bf16.gmra.mrb[0].mxu0 %v66
  %v110 = vpop.f32.mrb[0].mxu0
  %v111 = vadd.f32 %v37, %v110
  %v112 = vpop.f32.mrb[0].mxu0
  %v113 = vpop.f32.mrb[0].mxu0
  %v114 = vadd.f32 %v37, %v113
  %v115 = vpop.f32.mrb[0].mxu0
  %116 = vdwg.mxu0
  %v117 = vld [vmem:[%s3] sm:$0xf]
  %v118 = vld [vmem:[%s3 + $0x4] sm:$0xf]
  %v119 = vld [vmem:[%s3 + $0x8] sm:$0xf]
  %v120 = vld [vmem:[%s3 + $0xc] sm:$0xf]
  %v121 = vunpack.c.l.bf16 %v117
  %v122 = vunpack.c.l.bf16 %v118
  %v123 = vunpack.c.l.bf16 %v119
  %v124 = vunpack.c.l.bf16 %v120
  %v125 = vadd.f32 %v121, %v103
  %v126 = vadd.f32 %v122, %v106
  %v127 = vadd.f32 %v123, %v111
  %v128 = vadd.f32 %v124, %v114
  %v129 = vld [vmem:[%s4] sm:$0x1]
  %v130 = vld [vmem:[%s5] sm:$0x1]
  %v131 = vsel %vm61, %v125, 0.0
  %132 = vadd.xlane.f32.xlu0 %v131
  %v133 = vpop.xlane.xlu0 %132
  %v134 = vsel %vm61, %v126, 0.0
  %135 = vadd.xlane.f32.xlu0 %v134
  %v136 = vpop.xlane.xlu0 %135
  %v137 = vsel %vm61, %v127, 0.0
  %138 = vadd.xlane.f32.xlu0 %v137
  %v139 = vpop.xlane.xlu0 %138
  %v140 = vsel %vm61, %v128, 0.0
  %141 = vadd.xlane.f32.xlu0 %v140
  %v142 = vpop.xlane.xlu0 %141
  %v143 = vrcp.pop 32.0
  %v144 = vmul.f32 %v133, %v143
  %v145 = vmul.f32 %v136, %v143
  %v146 = vmul.f32 %v139, %v143
  %v147 = vmul.f32 %v142, %v143
  %v148 = vsub.f32 %v125, %v144
  %v149 = vsub.f32 %v126, %v145
  %v150 = vsub.f32 %v127, %v146
  %v151 = vsub.f32 %v128, %v147
  %v152 = vmul.f32 %v148, %v148
  %v153 = vmul.f32 %v149, %v149
  %v154 = vmul.f32 %v150, %v150
  %v155 = vmul.f32 %v151, %v151
  %v156 = vsel %vm61, %v152, 0.0
  %157 = vadd.xlane.f32.xlu0 %v156
  %v158 = vpop.xlane.xlu0 %157
  %v159 = vsel %vm61, %v153, 0.0
  %160 = vadd.xlane.f32.xlu0 %v159
  %v161 = vpop.xlane.xlu0 %160
  %v162 = vsel %vm61, %v154, 0.0
  %163 = vadd.xlane.f32.xlu0 %v162
  %v164 = vpop.xlane.xlu0 %163
  %v165 = vsel %vm61, %v155, 0.0
  %166 = vadd.xlane.f32.xlu0 %v165
  %v167 = vpop.xlane.xlu0 %166
  %v168 = vmul.f32 %v158, %v143
  %v169 = vmul.f32 %v161, %v143
  %v170 = vmul.f32 %v164, %v143
  %v171 = vmul.f32 %v167, %v143
  %v172 = vadd.f32 %v168, 1e-05
  %v173 = vadd.f32 %v169, 1e-05
  %v174 = vadd.f32 %v170, 1e-05
  %v175 = vadd.f32 %v171, 1e-05
  %v176 = vrsqrt.pop %v172
  %v177 = vrsqrt.pop %v173
  %v178 = vrsqrt.pop %v174
  %v179 = vrsqrt.pop %v175
  %v180 = vmul.f32 %v148, %v176
  %v181 = vmul.f32 %v149, %v177
  %v182 = vmul.f32 %v150, %v178
  %v183 = vmul.f32 %v151, %v179
  %v185 = vlaneseq
  %v186 = vshrl.u32 %v185, 7
  %v187 = vsub.s32 0, %v186
  %v188 = vrot.slane %v129, %v187
  %v190 = vmul.f32 %v180, %v188
  %v191 = vmul.f32 %v181, %v188
  %v192 = vmul.f32 %v182, %v188
  %v193 = vmul.f32 %v183, %v188
  %v195 = vlaneseq
  %v196 = vshrl.u32 %v195, 7
  %v197 = vsub.s32 0, %v196
  %v198 = vrot.slane %v130, %v197
  %v200 = vadd.f32 %v190, %v198
  %v201 = vadd.f32 %v191, %v198
  %v202 = vadd.f32 %v192, %v198
  %v203 = vadd.f32 %v193, %v198
  %v204 = vpack.c.bf16 %v201, %v200
  %v205 = vpack.c.bf16 %v203, %v202
  %v208 = vunpack.c.l.b16 %v204
  %v209 = vunpack.c.h.b16 %v204
  %v210 = vunpack.c.l.b16 %v205
  %v211 = vunpack.c.h.b16 %v205
  %v212 = vpack.c.b16 %v208, %v208
  %v213 = vpack.c.b16 %v209, %v209
  %v214 = vpack.c.b16 %v210, %v210
  %v215 = vpack.c.b16 %v211, %v211
  %vm220 = vcmask 257024
  %221 = vst.msk [vmem:[%s6] sm:$0xf] %vm220, %v212
  %222 = vst.msk [vmem:[%s6 + $0x4] sm:$0xf] %vm220, %v213
  %223 = vst.msk [vmem:[%s6 + $0x8] sm:$0xf] %vm220, %v214
  %224 = vst.msk [vmem:[%s6 + $0xc] sm:$0xf] %vm220, %v215
  // Predicated region
  $region26: #{vit_encoder_forward.12} parent=0 // pred_check
    _
  $region27: #{vit_encoder_forward.12} parent=0 // pred_check_branch
    %226 = sbr.rel (0) target = $region29
  $region28: #{vit_encoder_forward.12} parent=0 // pred_region
    _
  $region29: #{vit_encoder_forward.12} parent=0 // pred_fallthru
    _
  // Predicated region
  $region30: #{vit_encoder_forward.12} parent=0 // pred_check
    _
  $region31: #{vit_encoder_forward.12} parent=0 // pred_check_branch
    %228 = sbr.rel (0) target = $region33
  $region32: #{vit_encoder_forward.12} parent=0 // pred_region
    _
  $region33: #{vit_encoder_forward.12} parent=0 // pred_fallthru
    _

// kernel: vit_encoder_forward.9
$region0: #{vit_encoder_forward.9}
  #allocation0 [shape = 'u32[]', space=smem, size = 0x4, offset = 0x4, fixed_abs, tag = 'smem constant byte address 0x4 - core index']
  #allocation1 [shape = 'u32[144,128]{1,0:T(1,128)}', space=vmem, size = 0x12000, scoped, tag = 'internal scratch']
  %s0 = inlined_call_operand.vmem [shape: bf16[16,2,48], index: 0, kind: input, shape index: {}]
  %s1 = inlined_call_operand.vmem [shape: bf16[48,32], index: 1, kind: input, shape index: {}]
  %s2 = inlined_call_operand.vmem [shape: f32[1,32], index: 2, kind: input, shape index: {}]
  %s3 = inlined_call_operand.vmem [shape: f32[1,32], index: 3, kind: input, shape index: {}]
  %s4 = inlined_call_operand.vmem [shape: f32[1,32], index: 4, kind: input, shape index: {}]
  %s5 = inlined_call_operand.vmem [shape: f32[16,1,32], index: 5, kind: input, shape index: {}]
  %s6 = inlined_call_operand.vmem [shape: bf16[16,2,32], index: 6, kind: output, shape index: {}]
  %s7 = sld [smem:[#allocation0]]
  $region57: #{vit_encoder_forward.9} parent=0
    _
  %s9 = ssub.s32 1, %s7
  %s10 = scalar_select 0, %s9, %s7
  loop: start=0, step=1, limit=18
  $region2: #{vit_encoder_forward.9} parent=0 // loop_pre_header
    _
  $region3: #{vit_encoder_forward.9} parent=0 // loop_header
    %s12 = sphi 0, %s16
    %p13 = scmp.ge.s32.totalorder %s12, 18
    %s19 = sphi 0, %s31
    %s20 = sphi 0, %s27
    %s21 = sphi 0, %s19
    %s22 = sphi 0, %s20
    %s23 = sphi 0, %s21
    %s24 = sphi 0, %s22
    %s36 = sphi 0, %s38
    %s39 = sphi 0, %s36
    %s40 = sphi 0, %s39
    %s56 = sphi 0, %s40
    %s60 = sphi 0, %s60
    %s62 = sphi 0, %s60
    %s63 = sphi 0, %s62
    %s77 = sphi 0, %s63
    %s81 = sphi 0, %s81
    %s83 = sphi 0, %s81
    %s84 = sphi 0, %s83
    %s98 = sphi 0, %s84
    %s102 = sphi 0, %s102
    %s104 = sphi 0, %s102
    %s105 = sphi 0, %s104
    %s119 = sphi 0, %s105
    %s123 = sphi 0, %s123
    %s125 = sphi 0, %s123
    %s126 = sphi 0, %s125
    %s140 = sphi 0, %s126
    %s146 = sphi 0, %s148
    %s149 = sphi 0, %s146
    %s150 = sphi 0, %s149
    %s166 = sphi 0, %s150
    %s174 = sphi 0, %s176
    %s177 = sphi 0, %s174
    %s178 = sphi 0, %s177
    %s194 = sphi 0, %s178
  $region4: #{vit_encoder_forward.9} parent=0 // loop_header_branch
    %15 = sbr.rel (%p13) target = $region8
  $region5: #{vit_encoder_forward.9} parent=0 // loop_body
    %s17 = ssub.s32 %s12, 1
    %s18 = ssub.s32 %s12, 2
    %s25 = sadd.s32 1, %s20
    %p26 = scmp.ge.s32.totalorder %s25, 1
    %s27 = scalar_select %p26, 0, %s25
    %s28 = sadd.s32 1, %s19
    %s29 = scalar_select %p26, %s28, %s19
    %p30 = scmp.ge.s32.totalorder %s29, 16
    %s31 = scalar_select %p30, 0, %s29
    %s32 = ssub.s32 %s19, %s31
    %s33 = ssub.s32 %s20, %s27
    %s34 = sor.u32 %s32, %s33
    %p35 = scmp.eq.s32.totalorder %s34, 0
    %s37 = sadd.s32 %s36, 1
    %s38 = scalar_select %p35, %s36, %s37
    %p41 = pneg %p35
    %p42 = scmp.eq.s32.totalorder %s12, 15
    %p43 = por %p41, %p42
    %p44 = scmp.ne.s32.totalorder %s36, %s39
    %p45 = scmp.eq.s32.totalorder %s12, 0
    %p46 = por %p44, %p45
    %p47 = scmp.ne.s32.totalorder %s36, %s39
    %p48 = scmp.eq.s32.totalorder %s17, 15
    %p49 = por %p47, %p48
    %p50 = scmp.ne.s32.totalorder %s39, %s40
    %p51 = scmp.eq.s32.totalorder %s17, 0
    %p52 = por %p50, %p51
    %p53 = scmp.ne.s32.totalorder %s39, %s40
    %p54 = scmp.eq.s32.totalorder %s18, 15
    %p55 = por %p53, %p54
    %p57 = scmp.ne.s32.totalorder %s40, %s56
    %p58 = scmp.eq.s32.totalorder %s18, 0
    %p59 = por %p57, %p58
    %s61 = sadd.s32 %s60, 1
    %p64 = scmp.eq.s32.totalorder %s12, 15
    %p65 = scmp.ne.s32.totalorder %s60, %s62
    %p66 = scmp.eq.s32.totalorder %s12, 0
    %p67 = por %p65, %p66
    %p68 = scmp.ne.s32.totalorder %s60, %s62
    %p69 = scmp.eq.s32.totalorder %s17, 15
    %p70 = por %p68, %p69
    %p71 = scmp.ne.s32.totalorder %s62, %s63
    %p72 = scmp.eq.s32.totalorder %s17, 0
    %p73 = por %p71, %p72
    %p74 = scmp.ne.s32.totalorder %s62, %s63
    %p75 = scmp.eq.s32.totalorder %s18, 15
    %p76 = por %p74, %p75
    %p78 = scmp.ne.s32.totalorder %s63, %s77
    %p79 = scmp.eq.s32.totalorder %s18, 0
    %p80 = por %p78, %p79
    %s82 = sadd.s32 %s81, 1
    %p85 = scmp.eq.s32.totalorder %s12, 15
    %p86 = scmp.ne.s32.totalorder %s81, %s83
    %p87 = scmp.eq.s32.totalorder %s12, 0
    %p88 = por %p86, %p87
    %p89 = scmp.ne.s32.totalorder %s81, %s83
    %p90 = scmp.eq.s32.totalorder %s17, 15
    %p91 = por %p89, %p90
    %p92 = scmp.ne.s32.totalorder %s83, %s84
    %p93 = scmp.eq.s32.totalorder %s17, 0
    %p94 = por %p92, %p93
    %p95 = scmp.ne.s32.totalorder %s83, %s84
    %p96 = scmp.eq.s32.totalorder %s18, 15
    %p97 = por %p95, %p96
    %p99 = scmp.ne.s32.totalorder %s84, %s98
    %p100 = scmp.eq.s32.totalorder %s18, 0
    %p101 = por %p99, %p100
    %s103 = sadd.s32 %s102, 1
    %p106 = scmp.eq.s32.totalorder %s12, 15
    %p107 = scmp.ne.s32.totalorder %s102, %s104
    %p108 = scmp.eq.s32.totalorder %s12, 0
    %p109 = por %p107, %p108
    %p110 = scmp.ne.s32.totalorder %s102, %s104
    %p111 = scmp.eq.s32.totalorder %s17, 15
    %p112 = por %p110, %p111
    %p113 = scmp.ne.s32.totalorder %s104, %s105
    %p114 = scmp.eq.s32.totalorder %s17, 0
    %p115 = por %p113, %p114
    %p116 = scmp.ne.s32.totalorder %s104, %s105
    %p117 = scmp.eq.s32.totalorder %s18, 15
    %p118 = por %p116, %p117
    %p120 = scmp.ne.s32.totalorder %s105, %s119
    %p121 = scmp.eq.s32.totalorder %s18, 0
    %p122 = por %p120, %p121
    %s124 = sadd.s32 %s123, 1
    %p127 = scmp.eq.s32.totalorder %s12, 15
    %p128 = scmp.ne.s32.totalorder %s123, %s125
    %p129 = scmp.eq.s32.totalorder %s12, 0
    %p130 = por %p128, %p129
    %p131 = scmp.ne.s32.totalorder %s123, %s125
    %p132 = scmp.eq.s32.totalorder %s17, 15
    %p133 = por %p131, %p132
    %p134 = scmp.ne.s32.totalorder %s125, %s126
    %p135 = scmp.eq.s32.totalorder %s17, 0
    %p136 = por %p134, %p135
    %p137 = scmp.ne.s32.totalorder %s125, %s126
    %p138 = scmp.eq.s32.totalorder %s18, 15
    %p139 = por %p137, %p138
    %p141 = scmp.ne.s32.totalorder %s126, %s140
    %p142 = scmp.eq.s32.totalorder %s18, 0
    %p143 = por %p141, %p142
    %s144 = ssub.s32 %s19, %s31
    %p145 = scmp.eq.s32.totalorder %s144, 0
    %s147 = sadd.s32 %s146, 1
    %s148 = scalar_select %p145, %s146, %s147
    %p151 = pneg %p145
    %p152 = scmp.eq.s32.totalorder %s12, 15
    %p153 = por %p151, %p152
    %p154 = scmp.ne.s32.totalorder %s146, %s149
    %p155 = scmp.eq.s32.totalorder %s12, 0
    %p156 = por %p154, %p155
    %p157 = scmp.ne.s32.totalorder %s146, %s149
    %p158 = scmp.eq.s32.totalorder %s17, 15
    %p159 = por %p157, %p158
    %p160 = scmp.ne.s32.totalorder %s149, %s150
    %p161 = scmp.eq.s32.totalorder %s17, 0
    %p162 = por %p160, %p161
    %p163 = scmp.ne.s32.totalorder %s149, %s150
    %p164 = scmp.eq.s32.totalorder %s18, 15
    %p165 = por %p163, %p164
    %p167 = scmp.ne.s32.totalorder %s150, %s166
    %p168 = scmp.eq.s32.totalorder %s18, 0
    %p169 = por %p167, %p168
    %s170 = ssub.s32 %s19, %s31
    %s171 = ssub.s32 %s20, %s27
    %s172 = sor.u32 %s170, %s171
    %p173 = scmp.eq.s32.totalorder %s172, 0
    %s175 = sadd.s32 %s174, 1
    %s176 = scalar_select %p173, %s174, %s175
    %p179 = pneg %p173
    %p180 = scmp.eq.s32.totalorder %s12, 15
    %p181 = por %p179, %p180
    %p182 = scmp.ne.s32.totalorder %s174, %s177
    %p183 = scmp.eq.s32.totalorder %s12, 0
    %p184 = por %p182, %p183
    %p185 = scmp.ne.s32.totalorder %s174, %s177
    %p186 = scmp.eq.s32.totalorder %s17, 15
    %p187 = por %p185, %p186
    %p188 = scmp.ne.s32.totalorder %s177, %s178
    %p189 = scmp.eq.s32.totalorder %s17, 0
    %p190 = por %p188, %p189
    %p191 = scmp.ne.s32.totalorder %s177, %s178
    %p192 = scmp.eq.s32.totalorder %s18, 15
    %p193 = por %p191, %p192
    %p195 = scmp.ne.s32.totalorder %s178, %s194
    %p196 = scmp.eq.s32.totalorder %s18, 0
    %p197 = por %p195, %p196
    %p198 = scmp.le.s32.totalorder 1, %s12
    %p199 = scmp.lt.s32.totalorder %s12, 17
    %p200 = pnand %p198, %p199
    %p201 = pneg %p200
    // Predicated region
    $region9: #{vit_encoder_forward.9} parent=5 // pred_check
      _
    $region10: #{vit_encoder_forward.9} parent=5 // pred_check_branch
      %203 = sbr.rel (%p200) target = $region12
    $region11: #{vit_encoder_forward.9} parent=5 // pred_region
      %s204 = ssub.s32 %s12, 1
      // Predicated region
      $region13: #{vit_encoder_forward.9} parent=11 // pred_check
        %p205 = pneg %p73
      $region14: #{vit_encoder_forward.9} parent=11 // pred_check_branch
        %207 = sbr.rel (%p205) target = $region16
      $region15: #{vit_encoder_forward.9} parent=11 // pred_region
        _
      $region16: #{vit_encoder_forward.9} parent=11 // pred_fallthru
        _
      // Predicated region
      $region17: #{vit_encoder_forward.9} parent=11 // pred_check
        %p208 = pneg %p94
      $region18: #{vit_encoder_forward.9} parent=11 // pred_check_branch
        %210 = sbr.rel (%p208) target = $region20
      $region19: #{vit_encoder_forward.9} parent=11 // pred_region
        _
      $region20: #{vit_encoder_forward.9} parent=11 // pred_fallthru
        _
      // Predicated region
      $region21: #{vit_encoder_forward.9} parent=11 // pred_check
        %p211 = pneg %p115
      $region22: #{vit_encoder_forward.9} parent=11 // pred_check_branch
        %213 = sbr.rel (%p211) target = $region24
      $region23: #{vit_encoder_forward.9} parent=11 // pred_region
        _
      $region24: #{vit_encoder_forward.9} parent=11 // pred_fallthru
        _
      // Predicated region
      $region25: #{vit_encoder_forward.9} parent=11 // pred_check
        %p214 = pneg %p136
      $region26: #{vit_encoder_forward.9} parent=11 // pred_check_branch
        %216 = sbr.rel (%p214) target = $region28
      $region27: #{vit_encoder_forward.9} parent=11 // pred_region
        _
      $region28: #{vit_encoder_forward.9} parent=11 // pred_fallthru
        _
    $region12: #{vit_encoder_forward.9} parent=5 // pred_fallthru
      _
    %p217 = scmp.lt.s32.totalorder %s12, 16
    // Predicated region
    $region29: #{vit_encoder_forward.9} parent=5 // pred_check
      %p218 = pneg %p217
    $region30: #{vit_encoder_forward.9} parent=5 // pred_check_branch
      %220 = sbr.rel (%p218) target = $region32
    $region31: #{vit_encoder_forward.9} parent=5 // pred_region
      // Predicated region
      $region33: #{vit_encoder_forward.9} parent=31 // pred_check
        %p221 = pneg %p46
      $region34: #{vit_encoder_forward.9} parent=31 // pred_check_branch
        %223 = sbr.rel (%p221) target = $region36
      $region35: #{vit_encoder_forward.9} parent=31 // pred_region
        %p224 = scmp.lt.s32.totalorder %s19, 15
        %s225 = scalar_select %p224, %s19, 15
        %p226 = scmp.lt.s32.totalorder %s20, 0
        %s227 = scalar_select %p226, %s20, 0
        %s228 = sadd.s32 %s227, %s225
        %s229 = scalar_lea.vmem %s0, %s228
      $region36: #{vit_encoder_forward.9} parent=31 // pred_fallthru
        _
      // Predicated region
      $region37: #{vit_encoder_forward.9} parent=31 // pred_check
        %p230 = pneg %p156
      $region38: #{vit_encoder_forward.9} parent=31 // pred_check_branch
        %232 = sbr.rel (%p230) target = $region40
      $region39: #{vit_encoder_forward.9} parent=31 // pred_region
        %p233 = scmp.lt.s32.totalorder %s19, 15
        %s234 = scalar_select %p233, %s19, 15
        %s235 = scalar_lea.vmem %s5, %s234
      $region40: #{vit_encoder_forward.9} parent=31 // pred_fallthru
        _
    $region32: #{vit_encoder_forward.9} parent=5 // pred_fallthru
      _
    %p236 = scmp.le.s32.totalorder 1, %s12
    %p237 = scmp.lt.s32.totalorder %s12, 17
    %p238 = pnand %p236, %p237
    %p239 = pneg %p238
    // Predicated region
    $region41: #{vit_encoder_forward.9} parent=5 // pred_check
      _
    $region42: #{vit_encoder_forward.9} parent=5 // pred_check_branch
      %241 = sbr.rel (%p238) target = $region44
    $region43: #{vit_encoder_forward.9} parent=5 // pred_region
      %s242 = ssub.s32 %s12, 1
      %p243 = scmp.lt.s32.totalorder %s21, 15
      %s244 = scalar_select %p243, %s21, 15
      %p245 = scmp.lt.s32.totalorder %s22, 0
      %s246 = scalar_select %p245, %s22, 0
      %s247 = sadd.s32 %s246, %s244
      %s248 = scalar_lea.vmem %s0, %s247
      %p249 = pneg %p52
      %p250 = pneg %p49
      %p251 = pneg %p73
      %p252 = pneg %p70
      %p253 = pneg %p94
      %p254 = pneg %p91
      %p255 = pneg %p115
      %p256 = pneg %p112
      %p257 = pneg %p136
      %p258 = pneg %p133
      %p259 = scmp.lt.s32.totalorder %s21, 15
      %s260 = scalar_select %p259, %s21, 15
      %s261 = scalar_lea.vmem %s5, %s260
      %p262 = pneg %p162
      %p263 = pneg %p159
      %p264 = pneg %p190
      %p265 = pneg %p187
      %p266 = scmp.lt.s32.totalorder %s21, 15
      %s267 = scalar_select %p266, %s21, 15
      %p268 = scmp.lt.s32.totalorder %s22, 0
      %s269 = scalar_select %p268, %s22, 0
      %s270 = sadd.s32 %s269, %s267
      %s271 = scalar_lea.vmem %s6, %s270
      %p272 = scmp.lt.s32.totalorder %s21, 15
      %s273 = scalar_select %p272, %s21, 15
      %p274 = scmp.lt.s32.totalorder %s22, 0
      %s275 = scalar_select %p274, %s22, 0
      %s276 = sadd.s32 %s275, %s273
      %s277 = scalar_lea.vmem %s0, %s276
      %p278 = scmp.lt.s32.totalorder %s21, 15
      %s279 = scalar_select %p278, %s21, 15
      %s280 = scalar_lea.vmem %s5, %s279
      %p281 = scmp.lt.s32.totalorder %s21, 15
      %s282 = scalar_select %p281, %s21, 15
      %p283 = scmp.lt.s32.totalorder %s22, 0
      %s284 = scalar_select %p283, %s22, 0
      %s285 = sadd.s32 %s284, %s282
      %s286 = scalar_lea.vmem %s6, %s285
      %v288 = vld [vmem:[%s277] sm:$0x1]
      %v289 = vld [vmem:[%s1] sm:$0xf]
      %v290 = vld [vmem:[%s1 + $0x4] sm:$0xf]
      %v291 = vld [vmem:[%s1 + $0x8] sm:$0xf]
      %v292 = vld [vmem:[%s1 + $0xc] sm:$0xf]
      %v293 = vld [vmem:[%s1 + $0x10] sm:$0xf]
      %v294 = vld [vmem:[%s1 + $0x14] sm:$0xf]
      %v295 = vld [vmem:[%s2] sm:$0x1]
      %v297 = vlaneseq
      %v298 = vshrl.u32 %v297, 7
      %v299 = vsub.s32 0, %v298
      %v300 = vrot.slane %v295, %v299
      %v308 = vunpack.c.l.b16 %v289
      %v309 = vunpack.c.l.b16 %v290
      %v310 = vunpack.c.l.b16 %v291
      %v311 = vunpack.c.l.b16 %v292
      %v312 = vunpack.c.l.b16 %v293
      %v313 = vunpack.c.l.b16 %v294
      %v314 = vpack.c.b16 %v309, %v308
      %v315 = vpack.c.b16 %v311, %v310
      %v316 = vpack.c.b16 %v313, %v312
      %vm320 = vcmask 392192
      %v322 = vsel %vm320, %v288, 0
      %324 = vmatprep.subr.bf16.mxu0 0
      %325 = vmatpush1.bf16.msra.mxu0 %v314
      %326 = vmatprep.subr.bf16.mxu0 0
      %327 = vmatpush1.bf16.msra.mxu0 %v315
      %328 = vmatprep.subr.bf16.mxu0 0
      %329 = vmatpush1.bf16.msra.mxu0 %v316
      %330 = vmatprep.subr.bf16.mxu0 0
      %331 = vmatpush1.bf16.msra.mxu0 0
      %332 = vmatprep.subr.bf16.mxu0 0
      %333 = vmatpush1.bf16.msra.mxu0 0
      %334 = vmatprep.subr.bf16.mxu0 0
      %335 = vmatpush1.bf16.msra.mxu0 0
      %336 = vmatprep.subr.bf16.mxu0 0
      %337 = vmatpush1.bf16.msra.mxu0 0
      %338 = vmatprep.subr.bf16.mxu0 0
      %339 = vmatpush1.bf16.msra.mxu0 0
      %340 = vmatprep.subr.bf16.mxu0 0
      %341 = vmatpush1.bf16.msra.mxu0 0
      %342 = vmatprep.subr.bf16.mxu0 0
      %343 = vmatpush1.bf16.msra.mxu0 0
      %344 = vmatprep.subr.bf16.mxu0 0
      %345 = vmatpush1.bf16.msra.mxu0 0
      %346 = vmatprep.subr.bf16.mxu0 0
      %347 = vmatpush1.bf16.msra.mxu0 0
      %348 = vmatprep.subr.bf16.mxu0 0
      %349 = vmatpush1.bf16.msra.mxu0 0
      %350 = vmatprep.subr.bf16.mxu0 0
      %351 = vmatpush1.bf16.msra.mxu0 0
      %352 = vmatprep.subr.bf16.mxu0 0
      %353 = vmatpush1.bf16.msra.mxu0 0
      %354 = vmatprep.subr.bf16.mxu0 0
      %355 = vmatpush1.bf16.msra.mxu0 0
      %356 = vmatprep.mubr.bf16.mxu0 0
      %357 = vmatmul.mubr.bf16.gmra.mrb[0].mxu0 %v322
      %v358 = vpop.f32.mrb[0].mxu0
      %v359 = vadd.f32 %v300, %v358
      %v360 = vpop.f32.mrb[0].mxu0
      %v361 = vpop.f32.mrb[0].mxu0
      %v362 = vpop.f32.mrb[0].mxu0
      %363 = vdwg.mxu0
      %v364 = vld [vmem:[%s3] sm:$0x1]
      %v365 = vld [vmem:[%s4] sm:$0x1]
      %vm366 = vcmask 254976
      %v367 = vsel %vm366, %v359, 0.0
      %368 = vadd.xlane.f32.xlu0 %v367
      %v369 = vpop.xlane.xlu0 %368
      %v370 = vrcp.pop 32.0
      %v371 = vmul.f32 %v369, %v370
      %v372 = vsub.f32 %v359, %v371
      %v373 = vmul.f32 %v372, %v372
      %v374 = vsel %vm366, %v373, 0.0
      %375 = vadd.xlane.f32.xlu0 %v374
      %v376 = vpop.xlane.xlu0 %375
      %v377 = vmul.f32 %v376, %v370
      %v378 = vadd.f32 %v377, 1e-05
      %v379 = vrsqrt.pop %v378
      %v380 = vmul.f32 %v372, %v379
      %v382 = vlaneseq
      %v383 = vshrl.u32 %v382, 7
      %v384 = vsub.s32 0, %v383
      %v385 = vrot.slane %v364, %v384
      %v387 = vmul.f32 %v380, %v385
      %v389 = vlaneseq
      %v390 = vshrl.u32 %v389, 7
      %v391 = vsub.s32 0, %v390
      %v392 = vrot.slane %v365, %v391
      %v394 = vadd.f32 %v387, %v392
      %v395 = vld [vmem:[%s280] sm:$0x1]
      %v397 = vlaneseq
      %v398 = vshrl.u32 %v397, 7
      %v399 = vsub.s32 0, %v398
      %v400 = vrot.slane %v395, %v399
      %v402 = vadd.f32 %v394, %v400
      %v403 = vpack.c.bf16 %v402, %v402
      %vm404 = vcmask 253952
      %405 = vst.msk [vmem:[%s286] sm:$0x1] %vm404, %v403
      %p406 = scmp.lt.s32.totalorder %s21, 15
      %s407 = scalar_select %p406, %s21, 15
      %p408 = scmp.lt.s32.totalorder %s22, 0
      %s409 = scalar_select %p408, %s22, 0
      %s410 = sadd.s32 %s409, %s407
      %s411 = scalar_lea.vmem %s6, %s410
      // Predicated region
      $region45: #{vit_encoder_forward.9} parent=43 // pred_check
        %p412 = pneg %p187
      $region46: #{vit_encoder_forward.9} parent=43 // pred_check_branch
        %414 = sbr.rel (%p412) target = $region48
      $region47: #{vit_encoder_forward.9} parent=43 // pred_region
        _
      $region48: #{vit_encoder_forward.9} parent=43 // pred_fallthru
        _
    $region44: #{vit_encoder_forward.9} parent=5 // pred_fallthru
      _
    %p415 = scmp.le.s32.totalorder 2, %s12
    // Predicated region
    $region49: #{vit_encoder_forward.9} parent=5 // pred_check
      %p416 = pneg %p415
    $region50: #{vit_encoder_forward.9} parent=5 // pred_check_branch
      %418 = sbr.rel (%p416) target = $region52
    $region51: #{vit_encoder_forward.9} parent=5 // pred_region
      %s419 = ssub.s32 %s12, 2
      // Predicated region
      $region53: #{vit_encoder_forward.9} parent=51 // pred_check
        %p420 = pneg %p193
      $region54: #{vit_encoder_forward.9} parent=51 // pred_check_branch
        %422 = sbr.rel (%p420) target = $region56
      $region55: #{vit_encoder_forward.9} parent=51 // pred_region
        %p423 = scmp.lt.s32.totalorder %s23, 15
        %s424 = scalar_select %p423, %s23, 15
        %p425 = scmp.lt.s32.totalorder %s24, 0
        %s426 = scalar_select %p425, %s24, 0
        %s427 = sadd.s32 %s426, %s424
        %s428 = scalar_lea.vmem %s6, %s427
      $region56: #{vit_encoder_forward.9} parent=51 // pred_fallthru
        _
    $region52: #{vit_encoder_forward.9} parent=5 // pred_fallthru
      _
  $region6: #{vit_encoder_forward.9} parent=0 // loop_footer
    %s16 = sadd.s32 1, %s12
  $region7: #{vit_encoder_forward.9} parent=0 // loop_footer_branch
    %11 = sbr.rel target = $region3
  $region8: #{vit_encoder_forward.9} parent=0 // loop_exit
    _

// kernel: vit_encoder_forward.10
$region0: #{vit_encoder_forward.10}
  #allocation0 [shape = 'u32[]', space=smem, size = 0x4, offset = 0x4, fixed_abs, tag = 'smem constant byte address 0x4 - core index']
  #allocation1 [shape = 'u32[144,128]{1,0:T(1,128)}', space=vmem, size = 0x12000, scoped, tag = 'internal scratch']
  #allocation2 [shape = 'f32[32,96]{1,0:T(8,128)}', space=vmem, size = 0x4000, scoped, tag = 'scratch operand']
  %s0 = inlined_call_operand.vmem [shape: bf16[32,32], index: 0, kind: input, shape index: {}]
  %s1 = inlined_call_operand.vmem [shape: bf16[32,96], index: 1, kind: input, shape index: {}]
  %s2 = inlined_call_operand.vmem [shape: f32[1,96], index: 2, kind: input, shape index: {}]
  %s3 = inlined_call_operand.vmem [shape: bf16[32,96], index: 3, kind: output, shape index: {}]
  %s4 = sld [smem:[#allocation0]]
  $region30: #{vit_encoder_forward.10} parent=0
    _
  %s6 = ssub.s32 1, %s4
  %s7 = scalar_select 0, %s6, %s4
  // Predicated region
  $region2: #{vit_encoder_forward.10} parent=0 // pred_check
    _
  $region3: #{vit_encoder_forward.10} parent=0 // pred_check_branch
    %9 = sbr.rel (0) target = $region5
  $region4: #{vit_encoder_forward.10} parent=0 // pred_region
    _
  $region5: #{vit_encoder_forward.10} parent=0 // pred_fallthru
    _
  // Predicated region
  $region6: #{vit_encoder_forward.10} parent=0 // pred_check
    _
  $region7: #{vit_encoder_forward.10} parent=0 // pred_check_branch
    %11 = sbr.rel (0) target = $region9
  $region8: #{vit_encoder_forward.10} parent=0 // pred_region
    _
  $region9: #{vit_encoder_forward.10} parent=0 // pred_fallthru
    _
  // Predicated region
  $region10: #{vit_encoder_forward.10} parent=0 // pred_check
    _
  $region11: #{vit_encoder_forward.10} parent=0 // pred_check_branch
    %13 = sbr.rel (0) target = $region13
  $region12: #{vit_encoder_forward.10} parent=0 // pred_region
    _
  $region13: #{vit_encoder_forward.10} parent=0 // pred_fallthru
    _
  %p15 = scmp.eq.s32.totalorder 0, 0
  // Predicated region
  $region14: #{vit_encoder_forward.10} parent=0 // pred_check
    %p16 = pneg %p15
  $region15: #{vit_encoder_forward.10} parent=0 // pred_check_branch
    %18 = sbr.rel (%p16) target = $region17
  $region16: #{vit_encoder_forward.10} parent=0 // pred_region
    %vm19 = vcmask 785408
    %20 = vst.msk [vmem:[#allocation2] sm:$0xff] %vm19, 0.0
    %21 = vst.msk [vmem:[#allocation2 + $0x8] sm:$0xff] %vm19, 0.0
    %22 = vst.msk [vmem:[#allocation2 + $0x10] sm:$0xff] %vm19, 0.0
    %23 = vst.msk [vmem:[#allocation2 + $0x18] sm:$0xff] %vm19, 0.0
  $region17: #{vit_encoder_forward.10} parent=0 // pred_fallthru
    _
  %v24 = vld [vmem:[#allocation2] sm:$0xff]
  %v25 = vld [vmem:[#allocation2 + $0x8] sm:$0xff]
  %v26 = vld [vmem:[#allocation2 + $0x10] sm:$0xff]
  %v27 = vld [vmem:[#allocation2 + $0x18] sm:$0xff]
  %v28 = vld [vmem:[%s0] sm:$0xf]
  %v29 = vld [vmem:[%s0 + $0x4] sm:$0xf]
  %v30 = vld [vmem:[%s0 + $0x8] sm:$0xf]
  %v31 = vld [vmem:[%s0 + $0xc] sm:$0xf]
  %v32 = vld [vmem:[%s1] sm:$0xf]
  %v33 = vld [vmem:[%s1 + $0x4] sm:$0xf]
  %v34 = vld [vmem:[%s1 + $0x8] sm:$0xf]
  %v35 = vld [vmem:[%s1 + $0xc] sm:$0xf]
  %v40 = vunpack.c.l.b16 %v28
  %v41 = vunpack.c.l.b16 %v29
  %v42 = vunpack.c.l.b16 %v30
  %v43 = vunpack.c.l.b16 %v31
  %v44 = vpack.c.b16 %v41, %v40
  %v45 = vpack.c.b16 %v43, %v42
  %v50 = vunpack.c.l.b16 %v32
  %v51 = vunpack.c.l.b16 %v33
  %v52 = vunpack.c.l.b16 %v34
  %v53 = vunpack.c.l.b16 %v35
  %v54 = vpack.c.b16 %v51, %v50
  %v55 = vpack.c.b16 %v53, %v52
  %vm58 = vcmask 261120
  %v60 = vsel %vm58, %v44, 0
  %v63 = vsel %vm58, %v45, 0
  %65 = vmatprep.subr.bf16.mxu0 0
  %66 = vmatpush1.bf16.msra.mxu0 %v54
  %67 = vmatprep.subr.bf16.mxu0 0
  %68 = vmatpush1.bf16.msra.mxu0 %v55
  %69 = vmatprep.subr.bf16.mxu0 0
  %70 = vmatpush1.bf16.msra.mxu0 0
  %71 = vmatprep.subr.bf16.mxu0 0
  %72 = vmatpush1.bf16.msra.mxu0 0
  %73 = vmatprep.subr.bf16.mxu0 0
  %74 = vmatpush1.bf16.msra.mxu0 0
  %75 = vmatprep.subr.bf16.mxu0 0
  %76 = vmatpush1.bf16.msra.mxu0 0
  %77 = vmatprep.subr.bf16.mxu0 0
  %78 = vmatpush1.bf16.msra.mxu0 0
  %79 = vmatprep.subr.bf16.mxu0 0
  %80 = vmatpush1.bf16.msra.mxu0 0
  %81 = vmatprep.subr.bf16.mxu0 0
  %82 = vmatpush1.bf16.msra.mxu0 0
  %83 = vmatprep.subr.bf16.mxu0 0
  %84 = vmatpush1.bf16.msra.mxu0 0
  %85 = vmatprep.subr.bf16.mxu0 0
  %86 = vmatpush1.bf16.msra.mxu0 0
  %87 = vmatprep.subr.bf16.mxu0 0
  %88 = vmatpush1.bf16.msra.mxu0 0
  %89 = vmatprep.subr.bf16.mxu0 0
  %90 = vmatpush1.bf16.msra.mxu0 0
  %91 = vmatprep.subr.bf16.mxu0 0
  %92 = vmatpush1.bf16.msra.mxu0 0
  %93 = vmatprep.subr.bf16.mxu0 0
  %94 = vmatpush1.bf16.msra.mxu0 0
  %95 = vmatprep.subr.bf16.mxu0 0
  %96 = vmatpush1.bf16.msra.mxu0 0
  %97 = vmatprep.mubr.bf16.mxu0 0
  %98 = vmatmul.mubr.bf16.gmra.mrb[0].mxu0 %v60
  %v99 = vpop.f32.mrb[0].mxu0
  %v100 = vadd.f32 0.0, %v99
  %v101 = vpop.f32.mrb[0].mxu0
  %v102 = vpop.f32.mrb[0].mxu0
  %v103 = vadd.f32 0.0, %v102
  %v104 = vpop.f32.mrb[0].mxu0
  %105 = vmatprep.mubr.bf16.mxu0 0
  %106 = vmatmul.mubr.bf16.gmra.mrb[0].mxu0 %v63
  %v107 = vpop.f32.mrb[0].mxu0
  %v108 = vadd.f32 0.0, %v107
  %v109 = vpop.f32.mrb[0].mxu0
  %v110 = vpop.f32.mrb[0].mxu0
  %v111 = vadd.f32 0.0, %v110
  %v112 = vpop.f32.mrb[0].mxu0
  %113 = vdwg.mxu0
  %v114 = vadd.f32 %v24, %v100
  %v115 = vadd.f32 %v25, %v103
  %v116 = vadd.f32 %v26, %v108
  %v117 = vadd.f32 %v27, %v111
  %vm118 = vcmask 785408
  %119 = vst.msk [vmem:[#allocation2] sm:$0xff] %vm118, %v114
  %120 = vst.msk [vmem:[#allocation2 + $0x8] sm:$0xff] %vm118, %v115
  %121 = vst.msk [vmem:[#allocation2 + $0x10] sm:$0xff] %vm118, %v116
  %122 = vst.msk [vmem:[#allocation2 + $0x18] sm:$0xff] %vm118, %v117
  // Predicated region
  $region18: #{vit_encoder_forward.10} parent=0 // pred_check
    %p123 = pneg %p15
  $region19: #{vit_encoder_forward.10} parent=0 // pred_check_branch
    %125 = sbr.rel (%p123) target = $region21
  $region20: #{vit_encoder_forward.10} parent=0 // pred_region
    %v126 = vld [vmem:[#allocation2] sm:$0xff]
    %v127 = vld [vmem:[#allocation2 + $0x8] sm:$0xff]
    %v128 = vld [vmem:[#allocation2 + $0x10] sm:$0xff]
    %v129 = vld [vmem:[#allocation2 + $0x18] sm:$0xff]
    %v130 = vld [vmem:[%s2] sm:$0x1]
    %v132 = vlaneseq
    %v133 = vshrl.u32 %v132, 7
    %v134 = vsub.s32 0, %v133
    %v135 = vrot.slane %v130, %v134
    %v137 = vadd.f32 %v126, %v135
    %v138 = vadd.f32 %v127, %v135
    %v139 = vadd.f32 %v128, %v135
    %v140 = vadd.f32 %v129, %v135
    %v141 = vpack.c.bf16 %v138, %v137
    %v142 = vpack.c.bf16 %v140, %v139
    %v145 = vunpack.c.l.b16 %v141
    %v146 = vunpack.c.h.b16 %v141
    %v147 = vunpack.c.l.b16 %v142
    %v148 = vunpack.c.h.b16 %v142
    %v149 = vpack.c.b16 %v145, %v145
    %v150 = vpack.c.b16 %v146, %v146
    %v151 = vpack.c.b16 %v147, %v147
    %v152 = vpack.c.b16 %v148, %v148
    %vm157 = vcmask 781312
    %158 = vst.msk [vmem:[%s3] sm:$0xf] %vm157, %v149
    %159 = vst.msk [vmem:[%s3 + $0x4] sm:$0xf] %vm157, %v150
    %160 = vst.msk [vmem:[%s3 + $0x8] sm:$0xf] %vm157, %v151
    %161 = vst.msk [vmem:[%s3 + $0xc] sm:$0xf] %vm157, %v152
  $region21: #{vit_encoder_forward.10} parent=0 // pred_fallthru
    _
  // Predicated region
  $region22: #{vit_encoder_forward.10} parent=0 // pred_check
    _
  $region23: #{vit_encoder_forward.10} parent=0 // pred_check_branch
    %163 = sbr.rel (0) target = $region25
  $region24: #{vit_encoder_forward.10} parent=0 // pred_region
    _
  $region25: #{vit_encoder_forward.10} parent=0 // pred_fallthru
    _
  // Predicated region
  $region26: #{vit_encoder_forward.10} parent=0 // pred_check
    _
  $region27: #{vit_encoder_forward.10} parent=0 // pred_check_branch
    %165 = sbr.rel (0) target = $region29
  $region28: #{vit_encoder_forward.10} parent=0 // pred_region
    _
  $region29: #{vit_encoder_forward.10} parent=0 // pred_fallthru
    _

// kernel: vit_encoder_forward.13
$region0: #{vit_encoder_forward.13}
  #allocation0 [shape = 'u32[]', space=smem, size = 0x4, offset = 0x4, fixed_abs, tag = 'smem constant byte address 0x4 - core index']
  #allocation1 [shape = 'u32[144,128]{1,0:T(1,128)}', space=vmem, size = 0x12000, scoped, tag = 'internal scratch']
  #allocation2 [shape = 'f32[32,32]{1,0:T(8,128)}', space=vmem, size = 0x4000, scoped, tag = 'scratch operand']
  %s0 = inlined_call_operand.vmem [shape: bf16[32,32], index: 0, kind: input, shape index: {}]
  %s1 = inlined_call_operand.vmem [shape: bf16[32,64], index: 1, kind: input, shape index: {}]
  %s2 = inlined_call_operand.vmem [shape: f32[1,64], index: 2, kind: input, shape index: {}]
  %s3 = inlined_call_operand.vmem [shape: bf16[64,32], index: 3, kind: input, shape index: {}]
  %s4 = inlined_call_operand.vmem [shape: f32[1,32], index: 4, kind: input, shape index: {}]
  %s5 = inlined_call_operand.vmem [shape: f32[1,32], index: 5, kind: input, shape index: {}]
  %s6 = inlined_call_operand.vmem [shape: f32[1,32], index: 6, kind: input, shape index: {}]
  %s7 = inlined_call_operand.vmem [shape: bf16[32,32], index: 7, kind: output, shape index: {}]
  %s8 = sld [smem:[#allocation0]]
  $region46: #{vit_encoder_forward.13} parent=0
    _
  %s10 = ssub.s32 1, %s8
  %s11 = scalar_select 0, %s10, %s8
  // Predicated region
  $region2: #{vit_encoder_forward.13} parent=0 // pred_check
    _
  $region3: #{vit_encoder_forward.13} parent=0 // pred_check_branch
    %13 = sbr.rel (0) target = $region5
  $region4: #{vit_encoder_forward.13} parent=0 // pred_region
    _
  $region5: #{vit_encoder_forward.13} parent=0 // pred_fallthru
    _
  // Predicated region
  $region6: #{vit_encoder_forward.13} parent=0 // pred_check
    _
  $region7: #{vit_encoder_forward.13} parent=0 // pred_check_branch
    %15 = sbr.rel (0) target = $region9
  $region8: #{vit_encoder_forward.13} parent=0 // pred_region
    _
  $region9: #{vit_encoder_forward.13} parent=0 // pred_fallthru
    _
  // Predicated region
  $region10: #{vit_encoder_forward.13} parent=0 // pred_check
    _
  $region11: #{vit_encoder_forward.13} parent=0 // pred_check_branch
    %17 = sbr.rel (0) target = $region13
  $region12: #{vit_encoder_forward.13} parent=0 // pred_region
    _
  $region13: #{vit_encoder_forward.13} parent=0 // pred_fallthru
    _
  // Predicated region
  $region14: #{vit_encoder_forward.13} parent=0 // pred_check
    _
  $region15: #{vit_encoder_forward.13} parent=0 // pred_check_branch
    %19 = sbr.rel (0) target = $region17
  $region16: #{vit_encoder_forward.13} parent=0 // pred_region
    _
  $region17: #{vit_encoder_forward.13} parent=0 // pred_fallthru
    _
  // Predicated region
  $region18: #{vit_encoder_forward.13} parent=0 // pred_check
    _
  $region19: #{vit_encoder_forward.13} parent=0 // pred_check_branch
    %21 = sbr.rel (0) target = $region21
  $region20: #{vit_encoder_forward.13} parent=0 // pred_region
    _
  $region21: #{vit_encoder_forward.13} parent=0 // pred_fallthru
    _
  // Predicated region
  $region22: #{vit_encoder_forward.13} parent=0 // pred_check
    _
  $region23: #{vit_encoder_forward.13} parent=0 // pred_check_branch
    %23 = sbr.rel (0) target = $region25
  $region24: #{vit_encoder_forward.13} parent=0 // pred_region
    _
  $region25: #{vit_encoder_forward.13} parent=0 // pred_fallthru
    _
  // Predicated region
  $region26: #{vit_encoder_forward.13} parent=0 // pred_check
    _
  $region27: #{vit_encoder_forward.13} parent=0 // pred_check_branch
    %25 = sbr.rel (0) target = $region29
  $region28: #{vit_encoder_forward.13} parent=0 // pred_region
    _
  $region29: #{vit_encoder_forward.13} parent=0 // pred_fallthru
    _
  %p27 = scmp.eq.s32.totalorder 0, 0
  // Predicated region
  $region30: #{vit_encoder_forward.13} parent=0 // pred_check
    %p28 = pneg %p27
  $region31: #{vit_encoder_forward.13} parent=0 // pred_check_branch
    %30 = sbr.rel (%p28) target = $region33
  $region32: #{vit_encoder_forward.13} parent=0 // pred_region
    %vm31 = vcmask 261120
    %32 = vst.msk [vmem:[#allocation2] sm:$0xff] %vm31, 0.0
    %33 = vst.msk [vmem:[#allocation2 + $0x8] sm:$0xff] %vm31, 0.0
    %34 = vst.msk [vmem:[#allocation2 + $0x10] sm:$0xff] %vm31, 0.0
    %35 = vst.msk [vmem:[#allocation2 + $0x18] sm:$0xff] %vm31, 0.0
  $region33: #{vit_encoder_forward.13} parent=0 // pred_fallthru
    _
  %v36 = vld [vmem:[%s0] sm:$0xf]
  %v37 = vld [vmem:[%s0 + $0x4] sm:$0xf]
  %v38 = vld [vmem:[%s0 + $0x8] sm:$0xf]
  %v39 = vld [vmem:[%s0 + $0xc] sm:$0xf]
  %v40 = vld [vmem:[%s1] sm:$0xf]
  %v41 = vld [vmem:[%s1 + $0x4] sm:$0xf]
  %v42 = vld [vmem:[%s1 + $0x8] sm:$0xf]
  %v43 = vld [vmem:[%s1 + $0xc] sm:$0xf]
  %v44 = vld [vmem:[%s2] sm:$0x1]
  %v46 = vlaneseq
  %v47 = vshrl.u32 %v46, 7
  %v48 = vsub.s32 0, %v47
  %v49 = vrot.slane %v44, %v48
  %v55 = vunpack.c.l.b16 %v36
  %v56 = vunpack.c.l.b16 %v37
  %v57 = vunpack.c.l.b16 %v38
  %v58 = vunpack.c.l.b16 %v39
  %v59 = vpack.c.b16 %v56, %v55
  %v60 = vpack.c.b16 %v58, %v57
  %v65 = vunpack.c.l.b16 %v40
  %v66 = vunpack.c.l.b16 %v41
  %v67 = vunpack.c.l.b16 %v42
  %v68 = vunpack.c.l.b16 %v43
  %v69 = vpack.c.b16 %v66, %v65
  %v70 = vpack.c.b16 %v68, %v67
  %vm73 = vcmask 261120
  %v75 = vsel %vm73, %v59, 0
  %v78 = vsel %vm73, %v60, 0
  %80 = vmatprep.subr.bf16.mxu0 0
  %81 = vmatpush1.bf16.msra.mxu0 %v69
  %82 = vmatprep.subr.bf16.mxu0 0
  %83 = vmatpush1.bf16.msra.mxu0 %v70
  %84 = vmatprep.subr.bf16.mxu0 0
  %85 = vmatpush1.bf16.msra.mxu0 0
  %86 = vmatprep.subr.bf16.mxu0 0
  %87 = vmatpush1.bf16.msra.mxu0 0
  %88 = vmatprep.subr.bf16.mxu0 0
  %89 = vmatpush1.bf16.msra.mxu0 0
  %90 = vmatprep.subr.bf16.mxu0 0
  %91 = vmatpush1.bf16.msra.mxu0 0
  %92 = vmatprep.subr.bf16.mxu0 0
  %93 = vmatpush1.bf16.msra.mxu0 0
  %94 = vmatprep.subr.bf16.mxu0 0
  %95 = vmatpush1.bf16.msra.mxu0 0
  %96 = vmatprep.subr.bf16.mxu0 0
  %97 = vmatpush1.bf16.msra.mxu0 0
  %98 = vmatprep.subr.bf16.mxu0 0
  %99 = vmatpush1.bf16.msra.mxu0 0
  %100 = vmatprep.subr.bf16.mxu0 0
  %101 = vmatpush1.bf16.msra.mxu0 0
  %102 = vmatprep.subr.bf16.mxu0 0
  %103 = vmatpush1.bf16.msra.mxu0 0
  %104 = vmatprep.subr.bf16.mxu0 0
  %105 = vmatpush1.bf16.msra.mxu0 0
  %106 = vmatprep.subr.bf16.mxu0 0
  %107 = vmatpush1.bf16.msra.mxu0 0
  %108 = vmatprep.subr.bf16.mxu0 0
  %109 = vmatpush1.bf16.msra.mxu0 0
  %110 = vmatprep.subr.bf16.mxu0 0
  %111 = vmatpush1.bf16.msra.mxu0 0
  %112 = vmatprep.mubr.bf16.mxu0 0
  %113 = vmatmul.mubr.bf16.gmra.mrb[0].mxu0 %v75
  %v114 = vpop.f32.mrb[0].mxu0
  %v115 = vadd.f32 %v49, %v114
  %v116 = vpop.f32.mrb[0].mxu0
  %v117 = vpop.f32.mrb[0].mxu0
  %v118 = vadd.f32 %v49, %v117
  %v119 = vpop.f32.mrb[0].mxu0
  %120 = vmatprep.mubr.bf16.mxu0 0
  %121 = vmatmul.mubr.bf16.gmra.mrb[0].mxu0 %v78
  %v122 = vpop.f32.mrb[0].mxu0
  %v123 = vadd.f32 %v49, %v122
  %v124 = vpop.f32.mrb[0].mxu0
  %v125 = vpop.f32.mrb[0].mxu0
  %v126 = vadd.f32 %v49, %v125
  %v127 = vpop.f32.mrb[0].mxu0
  %128 = vdwg.mxu0
  %v129 = vmul.f32 %v115, 0.5
  %v130 = vmul.f32 %v118, 0.5
  %v131 = vmul.f32 %v123, 0.5
  %v132 = vmul.f32 %v126, 0.5
  %v133 = vmul.f32 %v115, 0.70710677
  %v134 = vmul.f32 %v118, 0.70710677
  %v135 = vmul.f32 %v123, 0.70710677
  %v136 = vmul.f32 %v126, 0.70710677
  %v137 = verf.f32.pop %v133
  %v138 = verf.f32.pop %v134
  %v139 = verf.f32.pop %v135
  %v140 = verf.f32.pop %v136
  %v141 = vadd.f32 %v137, 1.0
  %v142 = vadd.f32 %v138, 1.0
  %v143 = vadd.f32 %v139, 1.0
  %v144 = vadd.f32 %v140, 1.0
  %v145 = vmul.f32 %v129, %v141
  %v146 = vmul.f32 %v130, %v142
  %v147 = vmul.f32 %v131, %v143
  %v148 = vmul.f32 %v132, %v144
  %v149 = vld [vmem:[#allocation2] sm:$0xff]
  %v150 = vld [vmem:[#allocation2 + $0x8] sm:$0xff]
  %v151 = vld [vmem:[#allocation2 + $0x10] sm:$0xff]
  %v152 = vld [vmem:[#allocation2 + $0x18] sm:$0xff]
  %v153 = vpack.c.bf16 %v146, %v145
  %v154 = vpack.c.bf16 %v148, %v147
  %v155 = vld [vmem:[%s3] sm:$0xf]
  %v156 = vld [vmem:[%s3 + $0x4] sm:$0xf]
  %v157 = vld [vmem:[%s3 + $0x8] sm:$0xf]
  %v158 = vld [vmem:[%s3 + $0xc] sm:$0xf]
  %v159 = vld [vmem:[%s3 + $0x10] sm:$0xf]
  %v160 = vld [vmem:[%s3 + $0x14] sm:$0xf]
  %v161 = vld [vmem:[%s3 + $0x18] sm:$0xf]
  %v162 = vld [vmem:[%s3 + $0x1c] sm:$0xf]
  %v171 = vunpack.c.l.b16 %v155
  %v172 = vunpack.c.l.b16 %v156
  %v173 = vunpack.c.l.b16 %v157
  %v174 = vunpack.c.l.b16 %v158
  %v175 = vunpack.c.l.b16 %v159
  %v176 = vunpack.c.l.b16 %v160
  %v177 = vunpack.c.l.b16 %v161
  %v178 = vunpack.c.l.b16 %v162
  %v179 = vpack.c.b16 %v172, %v171
  %v180 = vpack.c.b16 %v174, %v173
  %v181 = vpack.c.b16 %v176, %v175
  %v182 = vpack.c.b16 %v178, %v177
  %vm187 = vcmask 523264
  %v189 = vsel %vm187, %v153, 0
  %v192 = vsel %vm187, %v154, 0
  %194 = vmatprep.subr.bf16.mxu0 0
  %195 = vmatpush1.bf16.msra.mxu0 %v179
  %196 = vmatprep.subr.bf16.mxu0 0
  %197 = vmatpush1.bf16.msra.mxu0 %v180
  %198 = vmatprep.subr.bf16.mxu0 0
  %199 = vmatpush1.bf16.msra.mxu0 %v181
  %200 = vmatprep.subr.bf16.mxu0 0
  %201 = vmatpush1.bf16.msra.mxu0 %v182
  %202 = vmatprep.subr.bf16.mxu0 0
  %203 = vmatpush1.bf16.msra.mxu0 0
  %204 = vmatprep.subr.bf16.mxu0 0
  %205 = vmatpush1.bf16.msra.mxu0 0
  %206 = vmatprep.subr.bf16.mxu0 0
  %207 = vmatpush1.bf16.msra.mxu0 0
  %208 = vmatprep.subr.bf16.mxu0 0
  %209 = vmatpush1.bf16.msra.mxu0 0
  %210 = vmatprep.subr.bf16.mxu0 0
  %211 = vmatpush1.bf16.msra.mxu0 0
  %212 = vmatprep.subr.bf16.mxu0 0
  %213 = vmatpush1.bf16.msra.mxu0 0
  %214 = vmatprep.subr.bf16.mxu0 0
  %215 = vmatpush1.bf16.msra.mxu0 0
  %216 = vmatprep.subr.bf16.mxu0 0
  %217 = vmatpush1.bf16.msra.mxu0 0
  %218 = vmatprep.subr.bf16.mxu0 0
  %219 = vmatpush1.bf16.msra.mxu0 0
  %220 = vmatprep.subr.bf16.mxu0 0
  %221 = vmatpush1.bf16.msra.mxu0 0
  %222 = vmatprep.subr.bf16.mxu0 0
  %223 = vmatpush1.bf16.msra.mxu0 0
  %224 = vmatprep.subr.bf16.mxu0 0
  %225 = vmatpush1.bf16.msra.mxu0 0
  %226 = vmatprep.mubr.bf16.mxu0 0
  %227 = vmatmul.mubr.bf16.gmra.mrb[0].mxu0 %v189
  %v228 = vpop.f32.mrb[0].mxu0
  %v229 = vadd.f32 0.0, %v228
  %v230 = vpop.f32.mrb[0].mxu0
  %v231 = vpop.f32.mrb[0].mxu0
  %v232 = vadd.f32 0.0, %v231
  %v233 = vpop.f32.mrb[0].mxu0
  %234 = vmatprep.mubr.bf16.mxu0 0
  %235 = vmatmul.mubr.bf16.gmra.mrb[0].mxu0 %v192
  %v236 = vpop.f32.mrb[0].mxu0
  %v237 = vadd.f32 0.0, %v236
  %v238 = vpop.f32.mrb[0].mxu0
  %v239 = vpop.f32.mrb[0].mxu0
  %v240 = vadd.f32 0.0, %v239
  %v241 = vpop.f32.mrb[0].mxu0
  %242 = vdwg.mxu0
  %v243 = vadd.f32 %v149, %v229
  %v244 = vadd.f32 %v150, %v232
  %v245 = vadd.f32 %v151, %v237
  %v246 = vadd.f32 %v152, %v240
  %247 = vst.msk [vmem:[#allocation2] sm:$0xff] %vm73, %v243
  %248 = vst.msk [vmem:[#allocation2 + $0x8] sm:$0xff] %vm73, %v244
  %249 = vst.msk [vmem:[#allocation2 + $0x10] sm:$0xff] %vm73, %v245
  %250 = vst.msk [vmem:[#allocation2 + $0x18] sm:$0xff] %vm73, %v246
  // Predicated region
  $region34: #{vit_encoder_forward.13} parent=0 // pred_check
    %p251 = pneg %p27
  $region35: #{vit_encoder_forward.13} parent=0 // pred_check_branch
    %253 = sbr.rel (%p251) target = $region37
  $region36: #{vit_encoder_forward.13} parent=0 // pred_region
    %v254 = vld [vmem:[%s0] sm:$0xf]
    %v255 = vld [vmem:[%s0 + $0x4] sm:$0xf]
    %v256 = vld [vmem:[%s0 + $0x8] sm:$0xf]
    %v257 = vld [vmem:[%s0 + $0xc] sm:$0xf]
    %v258 = vunpack.c.l.bf16 %v254
    %v259 = vunpack.c.l.bf16 %v255
    %v260 = vunpack.c.l.bf16 %v256
    %v261 = vunpack.c.l.bf16 %v257
    %v262 = vld [vmem:[#allocation2] sm:$0xff]
    %v263 = vld [vmem:[#allocation2 + $0x8] sm:$0xff]
    %v264 = vld [vmem:[#allocation2 + $0x10] sm:$0xff]
    %v265 = vld [vmem:[#allocation2 + $0x18] sm:$0xff]
    %v266 = vadd.f32 %v258, %v262
    %v267 = vadd.f32 %v259, %v263
    %v268 = vadd.f32 %v260, %v264
    %v269 = vadd.f32 %v261, %v265
    %v270 = vld [vmem:[%s4] sm:$0x1]
    %v272 = vlaneseq
    %v273 = vshrl.u32 %v272, 7
    %v274 = vsub.s32 0, %v273
    %v275 = vrot.slane %v270, %v274
    %v277 = vadd.f32 %v266, %v275
    %v278 = vadd.f32 %v267, %v275
    %v279 = vadd.f32 %v268, %v275
    %v280 = vadd.f32 %v269, %v275
    %v281 = vld [vmem:[%s5] sm:$0x1]
    %v282 = vld [vmem:[%s6] sm:$0x1]
    %v283 = vsel %vm73, %v277, 0.0
    %284 = vadd.xlane.f32.xlu0 %v283
    %v285 = vpop.xlane.xlu0 %284
    %v286 = vsel %vm73, %v278, 0.0
    %287 = vadd.xlane.f32.xlu0 %v286
    %v288 = vpop.xlane.xlu0 %287
    %v289 = vsel %vm73, %v279, 0.0
    %290 = vadd.xlane.f32.xlu0 %v289
    %v291 = vpop.xlane.xlu0 %290
    %v292 = vsel %vm73, %v280, 0.0
    %293 = vadd.xlane.f32.xlu0 %v292
    %v294 = vpop.xlane.xlu0 %293
    %v295 = vrcp.pop 32.0
    %v296 = vmul.f32 %v285, %v295
    %v297 = vmul.f32 %v288, %v295
    %v298 = vmul.f32 %v291, %v295
    %v299 = vmul.f32 %v294, %v295
    %v300 = vsub.f32 %v277, %v296
    %v301 = vsub.f32 %v278, %v297
    %v302 = vsub.f32 %v279, %v298
    %v303 = vsub.f32 %v280, %v299
    %v304 = vmul.f32 %v300, %v300
    %v305 = vmul.f32 %v301, %v301
    %v306 = vmul.f32 %v302, %v302
    %v307 = vmul.f32 %v303, %v303
    %v308 = vsel %vm73, %v304, 0.0
    %309 = vadd.xlane.f32.xlu0 %v308
    %v310 = vpop.xlane.xlu0 %309
    %v311 = vsel %vm73, %v305, 0.0
    %312 = vadd.xlane.f32.xlu0 %v311
    %v313 = vpop.xlane.xlu0 %312
    %v314 = vsel %vm73, %v306, 0.0
    %315 = vadd.xlane.f32.xlu0 %v314
    %v316 = vpop.xlane.xlu0 %315
    %v317 = vsel %vm73, %v307, 0.0
    %318 = vadd.xlane.f32.xlu0 %v317
    %v319 = vpop.xlane.xlu0 %318
    %v320 = vmul.f32 %v310, %v295
    %v321 = vmul.f32 %v313, %v295
    %v322 = vmul.f32 %v316, %v295
    %v323 = vmul.f32 %v319, %v295
    %v324 = vadd.f32 %v320, 1e-05
    %v325 = vadd.f32 %v321, 1e-05
    %v326 = vadd.f32 %v322, 1e-05
    %v327 = vadd.f32 %v323, 1e-05
    %v328 = vrsqrt.pop %v324
    %v329 = vrsqrt.pop %v325
    %v330 = vrsqrt.pop %v326
    %v331 = vrsqrt.pop %v327
    %v332 = vmul.f32 %v300, %v328
    %v333 = vmul.f32 %v301, %v329
    %v334 = vmul.f32 %v302, %v330
    %v335 = vmul.f32 %v303, %v331
    %v337 = vlaneseq
    %v338 = vshrl.u32 %v337, 7
    %v339 = vsub.s32 0, %v338
    %v340 = vrot.slane %v281, %v339
    %v342 = vmul.f32 %v332, %v340
    %v343 = vmul.f32 %v333, %v340
    %v344 = vmul.f32 %v334, %v340
    %v345 = vmul.f32 %v335, %v340
    %v347 = vlaneseq
    %v348 = vshrl.u32 %v347, 7
    %v349 = vsub.s32 0, %v348
    %v350 = vrot.slane %v282, %v349
    %v352 = vadd.f32 %v342, %v350
    %v353 = vadd.f32 %v343, %v350
    %v354 = vadd.f32 %v344, %v350
    %v355 = vadd.f32 %v345, %v350
    %v356 = vpack.c.bf16 %v353, %v352
    %v357 = vpack.c.bf16 %v355, %v354
    %v360 = vunpack.c.l.b16 %v356
    %v361 = vunpack.c.h.b16 %v356
    %v362 = vunpack.c.l.b16 %v357
    %v363 = vunpack.c.h.b16 %v357
    %v364 = vpack.c.b16 %v360, %v360
    %v365 = vpack.c.b16 %v361, %v361
    %v366 = vpack.c.b16 %v362, %v362
    %v367 = vpack.c.b16 %v363, %v363
    %vm372 = vcmask 257024
    %373 = vst.msk [vmem:[%s7] sm:$0xf] %vm372, %v364
    %374 = vst.msk [vmem:[%s7 + $0x4] sm:$0xf] %vm372, %v365
    %375 = vst.msk [vmem:[%s7 + $0x8] sm:$0xf] %vm372, %v366
    %376 = vst.msk [vmem:[%s7 + $0xc] sm:$0xf] %vm372, %v367
  $region37: #{vit_encoder_forward.13} parent=0 // pred_fallthru
    _
  // Predicated region
  $region38: #{vit_encoder_forward.13} parent=0 // pred_check
    _
  $region39: #{vit_encoder_forward.13} parent=0 // pred_check_branch
    %378 = sbr.rel (0) target = $region41
  $region40: #{vit_encoder_forward.13} parent=0 // pred_region
    _
  $region41: #{vit_encoder_forward.13} parent=0 // pred_fallthru
    _
  // Predicated region
  $region42: #{vit_encoder_forward.13} parent=0 // pred_check
    _
  $region43: #{vit_encoder_forward.13} parent=0 // pred_check_branch
    %380 = sbr.rel (0) target = $region45
  $region44: #{vit_encoder_forward.13} parent=0 // pred_region
    _
  $region45: #{vit_encoder_forward.13} parent=0 // pred_fallthru
    _

// kernel: vit_encoder_forward.11
$region0: #{vit_encoder_forward.11}
  #allocation0 [shape = 'u32[]', space=smem, size = 0x4, offset = 0x4, fixed_abs, tag = 'smem constant byte address 0x4 - core index']
  #allocation1 [shape = 'u32[144,128]{1,0:T(1,128)}', space=vmem, size = 0x12000, scoped, tag = 'internal scratch']
  %s0 = inlined_call_operand.vmem [shape: bf16[16,2,96], index: 0, kind: input, shape index: {}]
  %s1 = inlined_call_operand.vmem [shape: bf16[16,2,32], index: 1, kind: output, shape index: {}]
  %s2 = sld [smem:[#allocation0]]
  $region37: #{vit_encoder_forward.11} parent=0
    _
  %s4 = ssub.s32 1, %s2
  %s5 = scalar_select 0, %s4, %s2
  loop: start=0, step=1, limit=4
  $region2: #{vit_encoder_forward.11} parent=0 // loop_pre_header
    _
  $region3: #{vit_encoder_forward.11} parent=0 // loop_header
    %s7 = sphi 0, %s11
    %p8 = scmp.ge.s32.totalorder %s7, 4
    %s17 = sphi 0, %s19
    %s20 = sphi 0, %s17
    %s21 = sphi 0, %s20
    %s37 = sphi 0, %s21
    %s43 = sphi 0, %s45
    %s46 = sphi 0, %s43
    %s47 = sphi 0, %s46
    %s63 = sphi 0, %s47
  $region4: #{vit_encoder_forward.11} parent=0 // loop_header_branch
    %10 = sbr.rel (%p8) target = $region8
  $region5: #{vit_encoder_forward.11} parent=0 // loop_body
    %s12 = ssub.s32 %s7, 1
    %s13 = ssub.s32 %s7, 2
    %s14 = sadd.s32 %s7, 1
    %s15 = ssub.s32 %s7, %s14
    %p16 = scmp.eq.s32.totalorder %s15, 0
    %s18 = sadd.s32 %s17, 1
    %s19 = scalar_select %p16, %s17, %s18
    %p22 = pneg %p16
    %p23 = scmp.eq.s32.totalorder %s7, 1
    %p24 = por %p22, %p23
    %p25 = scmp.ne.s32.totalorder %s17, %s20
    %p26 = scmp.eq.s32.totalorder %s7, 0
    %p27 = por %p25, %p26
    %p28 = scmp.ne.s32.totalorder %s17, %s20
    %p29 = scmp.eq.s32.totalorder %s12, 1
    %p30 = por %p28, %p29
    %p31 = scmp.ne.s32.totalorder %s20, %s21
    %p32 = scmp.eq.s32.totalorder %s12, 0
    %p33 = por %p31, %p32
    %p34 = scmp.ne.s32.totalorder %s20, %s21
    %p35 = scmp.eq.s32.totalorder %s13, 1
    %p36 = por %p34, %p35
    %p38 = scmp.ne.s32.totalorder %s21, %s37
    %p39 = scmp.eq.s32.totalorder %s13, 0
    %p40 = por %p38, %p39
    %s41 = ssub.s32 %s7, %s14
    %p42 = scmp.eq.s32.totalorder %s41, 0
    %s44 = sadd.s32 %s43, 1
    %s45 = scalar_select %p42, %s43, %s44
    %p48 = pneg %p42
    %p49 = scmp.eq.s32.totalorder %s7, 1
    %p50 = por %p48, %p49
    %p51 = scmp.ne.s32.totalorder %s43, %s46
    %p52 = scmp.eq.s32.totalorder %s7, 0
    %p53 = por %p51, %p52
    %p54 = scmp.ne.s32.totalorder %s43, %s46
    %p55 = scmp.eq.s32.totalorder %s12, 1
    %p56 = por %p54, %p55
    %p57 = scmp.ne.s32.totalorder %s46, %s47
    %p58 = scmp.eq.s32.totalorder %s12, 0
    %p59 = por %p57, %p58
    %p60 = scmp.ne.s32.totalorder %s46, %s47
    %p61 = scmp.eq.s32.totalorder %s13, 1
    %p62 = por %p60, %p61
    %p64 = scmp.ne.s32.totalorder %s47, %s63
    %p65 = scmp.eq.s32.totalorder %s13, 0
    %p66 = por %p64, %p65
    %p67 = scmp.le.s32.totalorder 1, %s7
    %p68 = scmp.lt.s32.totalorder %s7, 3
    %p69 = pnand %p67, %p68
    %p70 = pneg %p69
    // Predicated region
    $region9: #{vit_encoder_forward.11} parent=5 // pred_check
      _
    $region10: #{vit_encoder_forward.11} parent=5 // pred_check_branch
      %72 = sbr.rel (%p69) target = $region12
    $region11: #{vit_encoder_forward.11} parent=5 // pred_region
      %s73 = ssub.s32 %s7, 1
    $region12: #{vit_encoder_forward.11} parent=5 // pred_fallthru
      _
    %p74 = scmp.lt.s32.totalorder %s7, 2
    // Predicated region
    $region13: #{vit_encoder_forward.11} parent=5 // pred_check
      %p75 = pneg %p74
    $region14: #{vit_encoder_forward.11} parent=5 // pred_check_branch
      %77 = sbr.rel (%p75) target = $region16
    $region15: #{vit_encoder_forward.11} parent=5 // pred_region
      // Predicated region
      $region17: #{vit_encoder_forward.11} parent=15 // pred_check
        %p78 = pneg %p27
      $region18: #{vit_encoder_forward.11} parent=15 // pred_check_branch
        %80 = sbr.rel (%p78) target = $region20
      $region19: #{vit_encoder_forward.11} parent=15 // pred_region
        %s81 = smul.u32 8, %s7
        %p82 = scmp.lt.s32.totalorder %s81, 15
        %s83 = scalar_select %p82, %s81, 15
        %s84 = scalar_lea.vmem %s0, %s83
        %s85 = smul.u32 8, %s7
      $region20: #{vit_encoder_forward.11} parent=15 // pred_fallthru
        _
    $region16: #{vit_encoder_forward.11} parent=5 // pred_fallthru
      _
    %p86 = scmp.le.s32.totalorder 1, %s7
    %p87 = scmp.lt.s32.totalorder %s7, 3
    %p88 = pnand %p86, %p87
    %p89 = pneg %p88
    // Predicated region
    $region21: #{vit_encoder_forward.11} parent=5 // pred_check
      _
    $region22: #{vit_encoder_forward.11} parent=5 // pred_check_branch
      %91 = sbr.rel (%p88) target = $region24
    $region23: #{vit_encoder_forward.11} parent=5 // pred_region
      %s92 = ssub.s32 %s7, 1
      %s93 = smul.u32 8, %s12
      %p94 = scmp.lt.s32.totalorder %s93, 15
      %s95 = scalar_select %p94, %s93, 15
      %s96 = scalar_lea.vmem %s0, %s95
      %p97 = pneg %p33
      %p98 = pneg %p30
      %p99 = pneg %p59
      %p100 = pneg %p56
      %s101 = smul.u32 8, %s12
      %p102 = scmp.lt.s32.totalorder %s101, 15
      %s103 = scalar_select %p102, %s101, 15
      %s104 = scalar_lea.vmem %s1, %s103
      %s105 = smul.u32 8, %s12
      %p106 = scmp.lt.s32.totalorder %s105, 15
      %s107 = scalar_select %p106, %s105, 15
      %s108 = scalar_lea.vmem %s0, %s107
      %s109 = smul.u32 8, %s12
      %s110 = smul.u32 8, %s12
      %p111 = scmp.lt.s32.totalorder %s110, 15
      %s112 = scalar_select %p111, %s110, 15
      %s113 = scalar_lea.vmem %s1, %s112
      %s114 = smul.u32 8, %s12
      %v116 = vld [vmem:[%s108] sm:$0x1]
      %v117 = vld [vmem:[%s108 + $0x1] sm:$0x1]
      %v118 = vld [vmem:[%s108 + $0x2] sm:$0x1]
      %v119 = vld [vmem:[%s108 + $0x3] sm:$0x1]
      %v120 = vld [vmem:[%s108 + $0x4] sm:$0x1]
      %v121 = vld [vmem:[%s108 + $0x5] sm:$0x1]
      %v122 = vld [vmem:[%s108 + $0x6] sm:$0x1]
      %v123 = vld [vmem:[%s108 + $0x7] sm:$0x1]
      %v126 = vunpack.c.l.s4 1966171168
      %v127 = vunpack.c.0.s8 %v126
      %v128 = vlaneseq
      %v129 = vshrl.u32 %v128, 7
      %v130 = vsub.s32 %v127, %v129
      %v131 = vrot.slane %v116, %v130
      %v133 = vunpack.c.l.s4 1966171168
      %v134 = vunpack.c.0.s8 %v133
      %v135 = vlaneseq
      %v136 = vshrl.u32 %v135, 7
      %v137 = vsub.s32 %v134, %v136
      %v138 = vrot.slane %v131, %v137
      %139 = vrot.lane.b32.xlu0 %v138, 96
      %v140 = vpop.permute.xlu0 %139
      %vm141 = vcmask 64512
      %v143 = vsel %vm141, %v116, 0
      %v146 = vsel %vm141, %v140, 0
      %148 = vmatprep.subr.bf16.mxu0 0
      %149 = vmatpush1.bf16.xpose.msra.mxu0 %v146
      %150 = vmatprep.subr.bf16.mxu0 0
      %151 = vmatpush1.bf16.xpose.msra.mxu0 0
      %152 = vmatprep.subr.bf16.mxu0 0
      %153 = vmatpush1.bf16.xpose.msra.mxu0 0
      %154 = vmatprep.subr.bf16.mxu0 0
      %155 = vmatpush1.bf16.xpose.msra.mxu0 0
      %156 = vmatprep.subr.bf16.mxu0 0
      %157 = vmatpush1.bf16.xpose.msra.mxu0 0
      %158 = vmatprep.subr.bf16.mxu0 0
      %159 = vmatpush1.bf16.xpose.msra.mxu0 0
      %160 = vmatprep.subr.bf16.mxu0 0
      %161 = vmatpush1.bf16.xpose.msra.mxu0 0
      %162 = vmatprep.subr.bf16.mxu0 0
      %163 = vmatpush1.bf16.xpose.msra.mxu0 0
      %164 = vmatprep.subr.bf16.mxu0 0
      %165 = vmatpush1.bf16.xpose.msra.mxu0 0
      %166 = vmatprep.subr.bf16.mxu0 0
      %167 = vmatpush1.bf16.xpose.msra.mxu0 0
      %168 = vmatprep.subr.bf16.mxu0 0
      %169 = vmatpush1.bf16.xpose.msra.mxu0 0
      %170 = vmatprep.subr.bf16.mxu0 0
      %171 = vmatpush1.bf16.xpose.msra.mxu0 0
      %172 = vmatprep.subr.bf16.mxu0 0
      %173 = vmatpush1.bf16.xpose.msra.mxu0 0
      %174 = vmatprep.subr.bf16.mxu0 0
      %175 = vmatpush1.bf16.xpose.msra.mxu0 0
      %176 = vmatprep.subr.bf16.mxu0 0
      %177 = vmatpush1.bf16.xpose.msra.mxu0 0
      %178 = vmatprep.subr.bf16.mxu0 0
      %179 = vmatpush1.bf16.xpose.msra.mxu0 0
      %180 = vmatprep.mubr.bf16.mxu0 0
      %181 = vmatmul.mubr.bf16.gmra.mrb[0].mxu0 %v143
      %v182 = vpop.f32.mrb[0].mxu0
      %v183 = vadd.f32 0.0, %v182
      %v184 = vpop.f32.mrb[0].mxu0
      %v185 = vpop.f32.mrb[0].mxu0
      %v186 = vpop.f32.mrb[0].mxu0
      %187 = vdwg.mxu0
      %v190 = vunpack.c.l.s4 1966171168
      %v191 = vunpack.c.0.s8 %v190
      %v192 = vlaneseq
      %v193 = vshrl.u32 %v192, 7
      %v194 = vsub.s32 %v191, %v193
      %v195 = vrot.slane %v117, %v194
      %v197 = vunpack.c.l.s4 1966171168
      %v198 = vunpack.c.0.s8 %v197
      %v199 = vlaneseq
      %v200 = vshrl.u32 %v199, 7
      %v201 = vsub.s32 %v198, %v200
      %v202 = vrot.slane %v195, %v201
      %203 = vrot.lane.b32.xlu0 %v202, 96
      %v204 = vpop.permute.xlu0 %203
      %v206 = vsel %vm141, %v117, 0
      %v209 = vsel %vm141, %v204, 0
      %211 = vmatprep.subr.bf16.mxu0 0
      %212 = vmatpush1.bf16.xpose.msra.mxu0 %v209
      %213 = vmatprep.subr.bf16.mxu0 0
      %214 = vmatpush1.bf16.xpose.msra.mxu0 0
      %215 = vmatprep.subr.bf16.mxu0 0
      %216 = vmatpush1.bf16.xpose.msra.mxu0 0
      %217 = vmatprep.subr.bf16.mxu0 0
      %218 = vmatpush1.bf16.xpose.msra.mxu0 0
      %219 = vmatprep.subr.bf16.mxu0 0
      %220 = vmatpush1.bf16.xpose.msra.mxu0 0
      %221 = vmatprep.subr.bf16.mxu0 0
      %222 = vmatpush1.bf16.xpose.msra.mxu0 0
      %223 = vmatprep.subr.bf16.mxu0 0
      %224 = vmatpush1.bf16.xpose.msra.mxu0 0
      %225 = vmatprep.subr.bf16.mxu0 0
      %226 = vmatpush1.bf16.xpose.msra.mxu0 0
      %227 = vmatprep.subr.bf16.mxu0 0
      %228 = vmatpush1.bf16.xpose.msra.mxu0 0
      %229 = vmatprep.subr.bf16.mxu0 0
      %230 = vmatpush1.bf16.xpose.msra.mxu0 0
      %231 = vmatprep.subr.bf16.mxu0 0
      %232 = vmatpush1.bf16.xpose.msra.mxu0 0
      %233 = vmatprep.subr.bf16.mxu0 0
      %234 = vmatpush1.bf16.xpose.msra.mxu0 0
      %235 = vmatprep.subr.bf16.mxu0 0
      %236 = vmatpush1.bf16.xpose.msra.mxu0 0
      %237 = vmatprep.subr.bf16.mxu0 0
      %238 = vmatpush1.bf16.xpose.msra.mxu0 0
      %239 = vmatprep.subr.bf16.mxu0 0
      %240 = vmatpush1.bf16.xpose.msra.mxu0 0
      %241 = vmatprep.subr.bf16.mxu0 0
      %242 = vmatpush1.bf16.xpose.msra.mxu0 0
      %243 = vmatprep.mubr.bf16.mxu0 0
      %244 = vmatmul.mubr.bf16.gmra.mrb[0].mxu0 %v206
      %v245 = vpop.f32.mrb[0].mxu0
      %v246 = vadd.f32 0.0, %v245
      %v247 = vpop.f32.mrb[0].mxu0
      %v248 = vpop.f32.mrb[0].mxu0
      %v249 = vpop.f32.mrb[0].mxu0
      %250 = vdwg.mxu0
      %v253 = vunpack.c.l.s4 1966171168
      %v254 = vunpack.c.0.s8 %v253
      %v255 = vlaneseq
      %v256 = vshrl.u32 %v255, 7
      %v257 = vsub.s32 %v254, %v256
      %v258 = vrot.slane %v118, %v257
      %v260 = vunpack.c.l.s4 1966171168
      %v261 = vunpack.c.0.s8 %v260
      %v262 = vlaneseq
      %v263 = vshrl.u32 %v262, 7
      %v264 = vsub.s32 %v261, %v263
      %v265 = vrot.slane %v258, %v264
      %266 = vrot.lane.b32.xlu0 %v265, 96
      %v267 = vpop.permute.xlu0 %266
      %v269 = vsel %vm141, %v118, 0
      %v272 = vsel %vm141, %v267, 0
      %274 = vmatprep.subr.bf16.mxu0 0
      %275 = vmatpush1.bf16.xpose.msra.mxu0 %v272
      %276 = vmatprep.subr.bf16.mxu0 0
      %277 = vmatpush1.bf16.xpose.msra.mxu0 0
      %278 = vmatprep.subr.bf16.mxu0 0
      %279 = vmatpush1.bf16.xpose.msra.mxu0 0
      %280 = vmatprep.subr.bf16.mxu0 0
      %281 = vmatpush1.bf16.xpose.msra.mxu0 0
      %282 = vmatprep.subr.bf16.mxu0 0
      %283 = vmatpush1.bf16.xpose.msra.mxu0 0
      %284 = vmatprep.subr.bf16.mxu0 0
      %285 = vmatpush1.bf16.xpose.msra.mxu0 0
      %286 = vmatprep.subr.bf16.mxu0 0
      %287 = vmatpush1.bf16.xpose.msra.mxu0 0
      %288 = vmatprep.subr.bf16.mxu0 0
      %289 = vmatpush1.bf16.xpose.msra.mxu0 0
      %290 = vmatprep.subr.bf16.mxu0 0
      %291 = vmatpush1.bf16.xpose.msra.mxu0 0
      %292 = vmatprep.subr.bf16.mxu0 0
      %293 = vmatpush1.bf16.xpose.msra.mxu0 0
      %294 = vmatprep.subr.bf16.mxu0 0
      %295 = vmatpush1.bf16.xpose.msra.mxu0 0
      %296 = vmatprep.subr.bf16.mxu0 0
      %297 = vmatpush1.bf16.xpose.msra.mxu0 0
      %298 = vmatprep.subr.bf16.mxu0 0
      %299 = vmatpush1.bf16.xpose.msra.mxu0 0
      %300 = vmatprep.subr.bf16.mxu0 0
      %301 = vmatpush1.bf16.xpose.msra.mxu0 0
      %302 = vmatprep.subr.bf16.mxu0 0
      %303 = vmatpush1.bf16.xpose.msra.mxu0 0
      %304 = vmatprep.subr.bf16.mxu0 0
      %305 = vmatpush1.bf16.xpose.msra.mxu0 0
      %306 = vmatprep.mubr.bf16.mxu0 0
      %307 = vmatmul.mubr.bf16.gmra.mrb[0].mxu0 %v269
      %v308 = vpop.f32.mrb[0].mxu0
      %v309 = vadd.f32 0.0, %v308
      %v310 = vpop.f32.mrb[0].mxu0
      %v311 = vpop.f32.mrb[0].mxu0
      %v312 = vpop.f32.mrb[0].mxu0
      %313 = vdwg.mxu0
      %v316 = vunpack.c.l.s4 1966171168
      %v317 = vunpack.c.0.s8 %v316
      %v318 = vlaneseq
      %v319 = vshrl.u32 %v318, 7
      %v320 = vsub.s32 %v317, %v319
      %v321 = vrot.slane %v119, %v320
      %v323 = vunpack.c.l.s4 1966171168
      %v324 = vunpack.c.0.s8 %v323
      %v325 = vlaneseq
      %v326 = vshrl.u32 %v325, 7
      %v327 = vsub.s32 %v324, %v326
      %v328 = vrot.slane %v321, %v327
      %329 = vrot.lane.b32.xlu0 %v328, 96
      %v330 = vpop.permute.xlu0 %329
      %v332 = vsel %vm141, %v119, 0
      %v335 = vsel %vm141, %v330, 0
      %337 = vmatprep.subr.bf16.mxu0 0
      %338 = vmatpush1.bf16.xpose.msra.mxu0 %v335
      %339 = vmatprep.subr.bf16.mxu0 0
      %340 = vmatpush1.bf16.xpose.msra.mxu0 0
      %341 = vmatprep.subr.bf16.mxu0 0
      %342 = vmatpush1.bf16.xpose.msra.mxu0 0
      %343 = vmatprep.subr.bf16.mxu0 0
      %344 = vmatpush1.bf16.xpose.msra.mxu0 0
      %345 = vmatprep.subr.bf16.mxu0 0
      %346 = vmatpush1.bf16.xpose.msra.mxu0 0
      %347 = vmatprep.subr.bf16.mxu0 0
      %348 = vmatpush1.bf16.xpose.msra.mxu0 0
      %349 = vmatprep.subr.bf16.mxu0 0
      %350 = vmatpush1.bf16.xpose.msra.mxu0 0
      %351 = vmatprep.subr.bf16.mxu0 0
      %352 = vmatpush1.bf16.xpose.msra.mxu0 0
      %353 = vmatprep.subr.bf16.mxu0 0
      %354 = vmatpush1.bf16.xpose.msra.mxu0 0
      %355 = vmatprep.subr.bf16.mxu0 0
      %356 = vmatpush1.bf16.xpose.msra.mxu0 0
      %357 = vmatprep.subr.bf16.mxu0 0
      %358 = vmatpush1.bf16.xpose.msra.mxu0 0
      %359 = vmatprep.subr.bf16.mxu0 0
      %360 = vmatpush1.bf16.xpose.msra.mxu0 0
      %361 = vmatprep.subr.bf16.mxu0 0
      %362 = vmatpush1.bf16.xpose.msra.mxu0 0
      %363 = vmatprep.subr.bf16.mxu0 0
      %364 = vmatpush1.bf16.xpose.msra.mxu0 0
      %365 = vmatprep.subr.bf16.mxu0 0
      %366 = vmatpush1.bf16.xpose.msra.mxu0 0
      %367 = vmatprep.subr.bf16.mxu0 0
      %368 = vmatpush1.bf16.xpose.msra.mxu0 0
      %369 = vmatprep.mubr.bf16.mxu0 0
      %370 = vmatmul.mubr.bf16.gmra.mrb[0].mxu0 %v332
      %v371 = vpop.f32.mrb[0].mxu0
      %v372 = vadd.f32 0.0, %v371
      %v373 = vpop.f32.mrb[0].mxu0
      %v374 = vpop.f32.mrb[0].mxu0
      %v375 = vpop.f32.mrb[0].mxu0
      %376 = vdwg.mxu0
      %v379 = vunpack.c.l.s4 1966171168
      %v380 = vunpack.c.0.s8 %v379
      %v381 = vlaneseq
      %v382 = vshrl.u32 %v381, 7
      %v383 = vsub.s32 %v380, %v382
      %v384 = vrot.slane %v120, %v383
      %v386 = vunpack.c.l.s4 1966171168
      %v387 = vunpack.c.0.s8 %v386
      %v388 = vlaneseq
      %v389 = vshrl.u32 %v388, 7
      %v390 = vsub.s32 %v387, %v389
      %v391 = vrot.slane %v384, %v390
      %392 = vrot.lane.b32.xlu0 %v391, 96
      %v393 = vpop.permute.xlu0 %392
      %v395 = vsel %vm141, %v120, 0
      %v398 = vsel %vm141, %v393, 0
      %400 = vmatprep.subr.bf16.mxu0 0
      %401 = vmatpush1.bf16.xpose.msra.mxu0 %v398
      %402 = vmatprep.subr.bf16.mxu0 0
      %403 = vmatpush1.bf16.xpose.msra.mxu0 0
      %404 = vmatprep.subr.bf16.mxu0 0
      %405 = vmatpush1.bf16.xpose.msra.mxu0 0
      %406 = vmatprep.subr.bf16.mxu0 0
      %407 = vmatpush1.bf16.xpose.msra.mxu0 0
      %408 = vmatprep.subr.bf16.mxu0 0
      %409 = vmatpush1.bf16.xpose.msra.mxu0 0
      %410 = vmatprep.subr.bf16.mxu0 0
      %411 = vmatpush1.bf16.xpose.msra.mxu0 0
      %412 = vmatprep.subr.bf16.mxu0 0
      %413 = vmatpush1.bf16.xpose.msra.mxu0 0
      %414 = vmatprep.subr.bf16.mxu0 0
      %415 = vmatpush1.bf16.xpose.msra.mxu0 0
      %416 = vmatprep.subr.bf16.mxu0 0
      %417 = vmatpush1.bf16.xpose.msra.mxu0 0
      %418 = vmatprep.subr.bf16.mxu0 0
      %419 = vmatpush1.bf16.xpose.msra.mxu0 0
      %420 = vmatprep.subr.bf16.mxu0 0
      %421 = vmatpush1.bf16.xpose.msra.mxu0 0
      %422 = vmatprep.subr.bf16.mxu0 0
      %423 = vmatpush1.bf16.xpose.msra.mxu0 0
      %424 = vmatprep.subr.bf16.mxu0 0
      %425 = vmatpush1.bf16.xpose.msra.mxu0 0
      %426 = vmatprep.subr.bf16.mxu0 0
      %427 = vmatpush1.bf16.xpose.msra.mxu0 0
      %428 = vmatprep.subr.bf16.mxu0 0
      %429 = vmatpush1.bf16.xpose.msra.mxu0 0
      %430 = vmatprep.subr.bf16.mxu0 0
      %431 = vmatpush1.bf16.xpose.msra.mxu0 0
      %432 = vmatprep.mubr.bf16.mxu0 0
      %433 = vmatmul.mubr.bf16.gmra.mrb[0].mxu0 %v395
      %v434 = vpop.f32.mrb[0].mxu0
      %v435 = vadd.f32 0.0, %v434
      %v436 = vpop.f32.mrb[0].mxu0
      %v437 = vpop.f32.mrb[0].mxu0
      %v438 = vpop.f32.mrb[0].mxu0
      %439 = vdwg.mxu0
      %v442 = vunpack.c.l.s4 1966171168
      %v443 = vunpack.c.0.s8 %v442
      %v444 = vlaneseq
      %v445 = vshrl.u32 %v444, 7
      %v446 = vsub.s32 %v443, %v445
      %v447 = vrot.slane %v121, %v446
      %v449 = vunpack.c.l.s4 1966171168
      %v450 = vunpack.c.0.s8 %v449
      %v451 = vlaneseq
      %v452 = vshrl.u32 %v451, 7
      %v453 = vsub.s32 %v450, %v452
      %v454 = vrot.slane %v447, %v453
      %455 = vrot.lane.b32.xlu0 %v454, 96
      %v456 = vpop.permute.xlu0 %455
      %v458 = vsel %vm141, %v121, 0
      %v461 = vsel %vm141, %v456, 0
      %463 = vmatprep.subr.bf16.mxu0 0
      %464 = vmatpush1.bf16.xpose.msra.mxu0 %v461
      %465 = vmatprep.subr.bf16.mxu0 0
      %466 = vmatpush1.bf16.xpose.msra.mxu0 0
      %467 = vmatprep.subr.bf16.mxu0 0
      %468 = vmatpush1.bf16.xpose.msra.mxu0 0
      %469 = vmatprep.subr.bf16.mxu0 0
      %470 = vmatpush1.bf16.xpose.msra.mxu0 0
      %471 = vmatprep.subr.bf16.mxu0 0
      %472 = vmatpush1.bf16.xpose.msra.mxu0 0
      %473 = vmatprep.subr.bf16.mxu0 0
      %474 = vmatpush1.bf16.xpose.msra.mxu0 0
      %475 = vmatprep.subr.bf16.mxu0 0
      %476 = vmatpush1.bf16.xpose.msra.mxu0 0
      %477 = vmatprep.subr.bf16.mxu0 0
      %478 = vmatpush1.bf16.xpose.msra.mxu0 0
      %479 = vmatprep.subr.bf16.mxu0 0
      %480 = vmatpush1.bf16.xpose.msra.mxu0 0
      %481 = vmatprep.subr.bf16.mxu0 0
      %482 = vmatpush1.bf16.xpose.msra.mxu0 0
      %483 = vmatprep.subr.bf16.mxu0 0
      %484 = vmatpush1.bf16.xpose.msra.mxu0 0
      %485 = vmatprep.subr.bf16.mxu0 0
      %486 = vmatpush1.bf16.xpose.msra.mxu0 0
      %487 = vmatprep.subr.bf16.mxu0 0
      %488 = vmatpush1.bf16.xpose.msra.mxu0 0
      %489 = vmatprep.subr.bf16.mxu0 0
      %490 = vmatpush1.bf16.xpose.msra.mxu0 0
      %491 = vmatprep.subr.bf16.mxu0 0
      %492 = vmatpush1.bf16.xpose.msra.mxu0 0
      %493 = vmatprep.subr.bf16.mxu0 0
      %494 = vmatpush1.bf16.xpose.msra.mxu0 0
      %495 = vmatprep.mubr.bf16.mxu0 0
      %496 = vmatmul.mubr.bf16.gmra.mrb[0].mxu0 %v458
      %v497 = vpop.f32.mrb[0].mxu0
      %v498 = vadd.f32 0.0, %v497
      %v499 = vpop.f32.mrb[0].mxu0
      %v500 = vpop.f32.mrb[0].mxu0
      %v501 = vpop.f32.mrb[0].mxu0
      %502 = vdwg.mxu0
      %v505 = vunpack.c.l.s4 1966171168
      %v506 = vunpack.c.0.s8 %v505
      %v507 = vlaneseq
      %v508 = vshrl.u32 %v507, 7
      %v509 = vsub.s32 %v506, %v508
      %v510 = vrot.slane %v122, %v509
      %v512 = vunpack.c.l.s4 1966171168
      %v513 = vunpack.c.0.s8 %v512
      %v514 = vlaneseq
      %v515 = vshrl.u32 %v514, 7
      %v516 = vsub.s32 %v513, %v515
      %v517 = vrot.slane %v510, %v516
      %518 = vrot.lane.b32.xlu0 %v517, 96
      %v519 = vpop.permute.xlu0 %518
      %v521 = vsel %vm141, %v122, 0
      %v524 = vsel %vm141, %v519, 0
      %526 = vmatprep.subr.bf16.mxu0 0
      %527 = vmatpush1.bf16.xpose.msra.mxu0 %v524
      %528 = vmatprep.subr.bf16.mxu0 0
      %529 = vmatpush1.bf16.xpose.msra.mxu0 0
      %530 = vmatprep.subr.bf16.mxu0 0
      %531 = vmatpush1.bf16.xpose.msra.mxu0 0
      %532 = vmatprep.subr.bf16.mxu0 0
      %533 = vmatpush1.bf16.xpose.msra.mxu0 0
      %534 = vmatprep.subr.bf16.mxu0 0
      %535 = vmatpush1.bf16.xpose.msra.mxu0 0
      %536 = vmatprep.subr.bf16.mxu0 0
      %537 = vmatpush1.bf16.xpose.msra.mxu0 0
      %538 = vmatprep.subr.bf16.mxu0 0
      %539 = vmatpush1.bf16.xpose.msra.mxu0 0
      %540 = vmatprep.subr.bf16.mxu0 0
      %541 = vmatpush1.bf16.xpose.msra.mxu0 0
      %542 = vmatprep.subr.bf16.mxu0 0
      %543 = vmatpush1.bf16.xpose.msra.mxu0 0
      %544 = vmatprep.subr.bf16.mxu0 0
      %545 = vmatpush1.bf16.xpose.msra.mxu0 0
      %546 = vmatprep.subr.bf16.mxu0 0
      %547 = vmatpush1.bf16.xpose.msra.mxu0 0
      %548 = vmatprep.subr.bf16.mxu0 0
      %549 = vmatpush1.bf16.xpose.msra.mxu0 0
      %550 = vmatprep.subr.bf16.mxu0 0
      %551 = vmatpush1.bf16.xpose.msra.mxu0 0
      %552 = vmatprep.subr.bf16.mxu0 0
      %553 = vmatpush1.bf16.xpose.msra.mxu0 0
      %554 = vmatprep.subr.bf16.mxu0 0
      %555 = vmatpush1.bf16.xpose.msra.mxu0 0
      %556 = vmatprep.subr.bf16.mxu0 0
      %557 = vmatpush1.bf16.xpose.msra.mxu0 0
      %558 = vmatprep.mubr.bf16.mxu0 0
      %559 = vmatmul.mubr.bf16.gmra.mrb[0].mxu0 %v521
      %v560 = vpop.f32.mrb[0].mxu0
      %v561 = vadd.f32 0.0, %v560
      %v562 = vpop.f32.mrb[0].mxu0
      %v563 = vpop.f32.mrb[0].mxu0
      %v564 = vpop.f32.mrb[0].mxu0
      %565 = vdwg.mxu0
      %v568 = vunpack.c.l.s4 1966171168
      %v569 = vunpack.c.0.s8 %v568
      %v570 = vlaneseq
      %v571 = vshrl.u32 %v570, 7
      %v572 = vsub.s32 %v569, %v571
      %v573 = vrot.slane %v123, %v572
      %v575 = vunpack.c.l.s4 1966171168
      %v576 = vunpack.c.0.s8 %v575
      %v577 = vlaneseq
      %v578 = vshrl.u32 %v577, 7
      %v579 = vsub.s32 %v576, %v578
      %v580 = vrot.slane %v573, %v579
      %581 = vrot.lane.b32.xlu0 %v580, 96
      %v582 = vpop.permute.xlu0 %581
      %v584 = vsel %vm141, %v123, 0
      %v587 = vsel %vm141, %v582, 0
      %589 = vmatprep.subr.bf16.mxu0 0
      %590 = vmatpush1.bf16.xpose.msra.mxu0 %v587
      %591 = vmatprep.subr.bf16.mxu0 0
      %592 = vmatpush1.bf16.xpose.msra.mxu0 0
      %593 = vmatprep.subr.bf16.mxu0 0
      %594 = vmatpush1.bf16.xpose.msra.mxu0 0
      %595 = vmatprep.subr.bf16.mxu0 0
      %596 = vmatpush1.bf16.xpose.msra.mxu0 0
      %597 = vmatprep.subr.bf16.mxu0 0
      %598 = vmatpush1.bf16.xpose.msra.mxu0 0
      %599 = vmatprep.subr.bf16.mxu0 0
      %600 = vmatpush1.bf16.xpose.msra.mxu0 0
      %601 = vmatprep.subr.bf16.mxu0 0
      %602 = vmatpush1.bf16.xpose.msra.mxu0 0
      %603 = vmatprep.subr.bf16.mxu0 0
      %604 = vmatpush1.bf16.xpose.msra.mxu0 0
      %605 = vmatprep.subr.bf16.mxu0 0
      %606 = vmatpush1.bf16.xpose.msra.mxu0 0
      %607 = vmatprep.subr.bf16.mxu0 0
      %608 = vmatpush1.bf16.xpose.msra.mxu0 0
      %609 = vmatprep.subr.bf16.mxu0 0
      %610 = vmatpush1.bf16.xpose.msra.mxu0 0
      %611 = vmatprep.subr.bf16.mxu0 0
      %612 = vmatpush1.bf16.xpose.msra.mxu0 0
      %613 = vmatprep.subr.bf16.mxu0 0
      %614 = vmatpush1.bf16.xpose.msra.mxu0 0
      %615 = vmatprep.subr.bf16.mxu0 0
      %616 = vmatpush1.bf16.xpose.msra.mxu0 0
      %617 = vmatprep.subr.bf16.mxu0 0
      %618 = vmatpush1.bf16.xpose.msra.mxu0 0
      %619 = vmatprep.subr.bf16.mxu0 0
      %620 = vmatpush1.bf16.xpose.msra.mxu0 0
      %621 = vmatprep.mubr.bf16.mxu0 0
      %622 = vmatmul.mubr.bf16.gmra.mrb[0].mxu0 %v584
      %v623 = vpop.f32.mrb[0].mxu0
      %v624 = vadd.f32 0.0, %v623
      %v625 = vpop.f32.mrb[0].mxu0
      %v626 = vpop.f32.mrb[0].mxu0
      %v627 = vpop.f32.mrb[0].mxu0
      %628 = vdwg.mxu0
      %vm629 = vcmask 9216
      %v630 = vsel %vm629, %v183, -inf
      %631 = vmax.xlane.f32.xlu0 %v630
      %v632 = vpop.xlane.xlu0 %631
      %v633 = vsel %vm629, %v246, -inf
      %634 = vmax.xlane.f32.xlu0 %v633
      %v635 = vpop.xlane.xlu0 %634
      %v636 = vsel %vm629, %v309, -inf
      %637 = vmax.xlane.f32.xlu0 %v636
      %v638 = vpop.xlane.xlu0 %637
      %v639 = vsel %vm629, %v372, -inf
      %640 = vmax.xlane.f32.xlu0 %v639
      %v641 = vpop.xlane.xlu0 %640
      %v642 = vsel %vm629, %v435, -inf
      %643 = vmax.xlane.f32.xlu0 %v642
      %v644 = vpop.xlane.xlu0 %643
      %v645 = vsel %vm629, %v498, -inf
      %646 = vmax.xlane.f32.xlu0 %v645
      %v647 = vpop.xlane.xlu0 %646
      %v648 = vsel %vm629, %v561, -inf
      %649 = vmax.xlane.f32.xlu0 %v648
      %v650 = vpop.xlane.xlu0 %649
      %v651 = vsel %vm629, %v624, -inf
      %652 = vmax.xlane.f32.xlu0 %v651
      %v653 = vpop.xlane.xlu0 %652
      %v654 = vsub.f32 %v183, %v632
      %v655 = vsub.f32 %v246, %v635
      %v656 = vsub.f32 %v309, %v638
      %v657 = vsub.f32 %v372, %v641
      %v658 = vsub.f32 %v435, %v644
      %v659 = vsub.f32 %v498, %v647
      %v660 = vsub.f32 %v561, %v650
      %v661 = vsub.f32 %v624, %v653
      %v662 = vmul.f32 %v654, 1.442695
      %v663 = vpow.pop %v662
      %v664 = vmul.f32 %v655, 1.442695
      %v665 = vpow.pop %v664
      %v666 = vmul.f32 %v656, 1.442695
      %v667 = vpow.pop %v666
      %v668 = vmul.f32 %v657, 1.442695
      %v669 = vpow.pop %v668
      %v670 = vmul.f32 %v658, 1.442695
      %v671 = vpow.pop %v670
      %v672 = vmul.f32 %v659, 1.442695
      %v673 = vpow.pop %v672
      %v674 = vmul.f32 %v660, 1.442695
      %v675 = vpow.pop %v674
      %v676 = vmul.f32 %v661, 1.442695
      %v677 = vpow.pop %v676
      %v678 = vsel %vm629, %v663, 0.0
      %679 = vadd.xlane.f32.xlu0 %v678
      %v680 = vpop.xlane.xlu0 %679
      %v681 = vsel %vm629, %v665, 0.0
      %682 = vadd.xlane.f32.xlu0 %v681
      %v683 = vpop.xlane.xlu0 %682
      %v684 = vsel %vm629, %v667, 0.0
      %685 = vadd.xlane.f32.xlu0 %v684
      %v686 = vpop.xlane.xlu0 %685
      %v687 = vsel %vm629, %v669, 0.0
      %688 = vadd.xlane.f32.xlu0 %v687
      %v689 = vpop.xlane.xlu0 %688
      %v690 = vsel %vm629, %v671, 0.0
      %691 = vadd.xlane.f32.xlu0 %v690
      %v692 = vpop.xlane.xlu0 %691
      %v693 = vsel %vm629, %v673, 0.0
      %694 = vadd.xlane.f32.xlu0 %v693
      %v695 = vpop.xlane.xlu0 %694
      %v696 = vsel %vm629, %v675, 0.0
      %697 = vadd.xlane.f32.xlu0 %v696
      %v698 = vpop.xlane.xlu0 %697
      %v699 = vsel %vm629, %v677, 0.0
      %700 = vadd.xlane.f32.xlu0 %v699
      %v701 = vpop.xlane.xlu0 %700
      %v702 = vrcp.pop %v680
      %v703 = vmul.f32 %v663, %v702
      %v704 = vrcp.pop %v683
      %v705 = vmul.f32 %v665, %v704
      %v706 = vrcp.pop %v686
      %v707 = vmul.f32 %v667, %v706
      %v708 = vrcp.pop %v689
      %v709 = vmul.f32 %v669, %v708
      %v710 = vrcp.pop %v692
      %v711 = vmul.f32 %v671, %v710
      %v712 = vrcp.pop %v695
      %v713 = vmul.f32 %v673, %v712
      %v714 = vrcp.pop %v698
      %v715 = vmul.f32 %v675, %v714
      %v716 = vrcp.pop %v701
      %v717 = vmul.f32 %v677, %v716
      %v718 = vpack.c.bf16 %v703, %v703
      %v719 = vpack.c.bf16 %v705, %v705
      %v720 = vpack.c.bf16 %v707, %v707
      %v721 = vpack.c.bf16 %v709, %v709
      %v722 = vpack.c.bf16 %v711, %v711
      %v723 = vpack.c.bf16 %v713, %v713
      %v724 = vpack.c.bf16 %v715, %v715
      %v725 = vpack.c.bf16 %v717, %v717
      %726 = vrot.lane.b32.xlu0 %v138, 64
      %v727 = vpop.permute.xlu0 %726
      %vm728 = vcmask 15360
      %v730 = vsel %vm728, %v718, 0
      %vm732 = vcmask 1040384
      %v734 = vsel %vm732, %v727, 0
      %736 = vmatprep.subr.bf16.mxu0 0
      %737 = vmatpush1.bf16.msra.mxu0 %v734
      %738 = vmatprep.subr.bf16.mxu0 0
      %739 = vmatpush1.bf16.msra.mxu0 0
      %740 = vmatprep.subr.bf16.mxu0 0
      %741 = vmatpush1.bf16.msra.mxu0 0
      %742 = vmatprep.subr.bf16.mxu0 0
      %743 = vmatpush1.bf16.msra.mxu0 0
      %744 = vmatprep.subr.bf16.mxu0 0
      %745 = vmatpush1.bf16.msra.mxu0 0
      %746 = vmatprep.subr.bf16.mxu0 0
      %747 = vmatpush1.bf16.msra.mxu0 0
      %748 = vmatprep.subr.bf16.mxu0 0
      %749 = vmatpush1.bf16.msra.mxu0 0
      %750 = vmatprep.subr.bf16.mxu0 0
      %751 = vmatpush1.bf16.msra.mxu0 0
      %752 = vmatprep.subr.bf16.mxu0 0
      %753 = vmatpush1.bf16.msra.mxu0 0
      %754 = vmatprep.subr.bf16.mxu0 0
      %755 = vmatpush1.bf16.msra.mxu0 0
      %756 = vmatprep.subr.bf16.mxu0 0
      %757 = vmatpush1.bf16.msra.mxu0 0
      %758 = vmatprep.subr.bf16.mxu0 0
      %759 = vmatpush1.bf16.msra.mxu0 0
      %760 = vmatprep.subr.bf16.mxu0 0
      %761 = vmatpush1.bf16.msra.mxu0 0
      %762 = vmatprep.subr.bf16.mxu0 0
      %763 = vmatpush1.bf16.msra.mxu0 0
      %764 = vmatprep.subr.bf16.mxu0 0
      %765 = vmatpush1.bf16.msra.mxu0 0
      %766 = vmatprep.subr.bf16.mxu0 0
      %767 = vmatpush1.bf16.msra.mxu0 0
      %768 = vmatprep.mubr.bf16.mxu0 0
      %769 = vmatmul.mubr.bf16.gmra.mrb[0].mxu0 %v730
      %v770 = vpop.f32.mrb[0].mxu0
      %v771 = vadd.f32 0.0, %v770
      %v772 = vpop.f32.mrb[0].mxu0
      %v773 = vpop.f32.mrb[0].mxu0
      %v774 = vpop.f32.mrb[0].mxu0
      %775 = vdwg.mxu0
      %776 = vrot.lane.b32.xlu0 %v202, 64
      %v777 = vpop.permute.xlu0 %776
      %v779 = vsel %vm728, %v719, 0
      %v782 = vsel %vm732, %v777, 0
      %784 = vmatprep.subr.bf16.mxu0 0
      %785 = vmatpush1.bf16.msra.mxu0 %v782
      %786 = vmatprep.subr.bf16.mxu0 0
      %787 = vmatpush1.bf16.msra.mxu0 0
      %788 = vmatprep.subr.bf16.mxu0 0
      %789 = vmatpush1.bf16.msra.mxu0 0
      %790 = vmatprep.subr.bf16.mxu0 0
      %791 = vmatpush1.bf16.msra.mxu0 0
      %792 = vmatprep.subr.bf16.mxu0 0
      %793 = vmatpush1.bf16.msra.mxu0 0
      %794 = vmatprep.subr.bf16.mxu0 0
      %795 = vmatpush1.bf16.msra.mxu0 0
      %796 = vmatprep.subr.bf16.mxu0 0
      %797 = vmatpush1.bf16.msra.mxu0 0
      %798 = vmatprep.subr.bf16.mxu0 0
      %799 = vmatpush1.bf16.msra.mxu0 0
      %800 = vmatprep.subr.bf16.mxu0 0
      %801 = vmatpush1.bf16.msra.mxu0 0
      %802 = vmatprep.subr.bf16.mxu0 0
      %803 = vmatpush1.bf16.msra.mxu0 0
      %804 = vmatprep.subr.bf16.mxu0 0
      %805 = vmatpush1.bf16.msra.mxu0 0
      %806 = vmatprep.subr.bf16.mxu0 0
      %807 = vmatpush1.bf16.msra.mxu0 0
      %808 = vmatprep.subr.bf16.mxu0 0
      %809 = vmatpush1.bf16.msra.mxu0 0
      %810 = vmatprep.subr.bf16.mxu0 0
      %811 = vmatpush1.bf16.msra.mxu0 0
      %812 = vmatprep.subr.bf16.mxu0 0
      %813 = vmatpush1.bf16.msra.mxu0 0
      %814 = vmatprep.subr.bf16.mxu0 0
      %815 = vmatpush1.bf16.msra.mxu0 0
      %816 = vmatprep.mubr.bf16.mxu0 0
      %817 = vmatmul.mubr.bf16.gmra.mrb[0].mxu0 %v779
      %v818 = vpop.f32.mrb[0].mxu0
      %v819 = vadd.f32 0.0, %v818
      %v820 = vpop.f32.mrb[0].mxu0
      %v821 = vpop.f32.mrb[0].mxu0
      %v822 = vpop.f32.mrb[0].mxu0
      %823 = vdwg.mxu0
      %824 = vrot.lane.b32.xlu0 %v265, 64
      %v825 = vpop.permute.xlu0 %824
      %v827 = vsel %vm728, %v720, 0
      %v830 = vsel %vm732, %v825, 0
      %832 = vmatprep.subr.bf16.mxu0 0
      %833 = vmatpush1.bf16.msra.mxu0 %v830
      %834 = vmatprep.subr.bf16.mxu0 0
      %835 = vmatpush1.bf16.msra.mxu0 0
      %836 = vmatprep.subr.bf16.mxu0 0
      %837 = vmatpush1.bf16.msra.mxu0 0
      %838 = vmatprep.subr.bf16.mxu0 0
      %839 = vmatpush1.bf16.msra.mxu0 0
      %840 = vmatprep.subr.bf16.mxu0 0
      %841 = vmatpush1.bf16.msra.mxu0 0
      %842 = vmatprep.subr.bf16.mxu0 0
      %843 = vmatpush1.bf16.msra.mxu0 0
      %844 = vmatprep.subr.bf16.mxu0 0
      %845 = vmatpush1.bf16.msra.mxu0 0
      %846 = vmatprep.subr.bf16.mxu0 0
      %847 = vmatpush1.bf16.msra.mxu0 0
      %848 = vmatprep.subr.bf16.mxu0 0
      %849 = vmatpush1.bf16.msra.mxu0 0
      %850 = vmatprep.subr.bf16.mxu0 0
      %851 = vmatpush1.bf16.msra.mxu0 0
      %852 = vmatprep.subr.bf16.mxu0 0
      %853 = vmatpush1.bf16.msra.mxu0 0
      %854 = vmatprep.subr.bf16.mxu0 0
      %855 = vmatpush1.bf16.msra.mxu0 0
      %856 = vmatprep.subr.bf16.mxu0 0
      %857 = vmatpush1.bf16.msra.mxu0 0
      %858 = vmatprep.subr.bf16.mxu0 0
      %859 = vmatpush1.bf16.msra.mxu0 0
      %860 = vmatprep.subr.bf16.mxu0 0
      %861 = vmatpush1.bf16.msra.mxu0 0
      %862 = vmatprep.subr.bf16.mxu0 0
      %863 = vmatpush1.bf16.msra.mxu0 0
      %864 = vmatprep.mubr.bf16.mxu0 0
      %865 = vmatmul.mubr.bf16.gmra.mrb[0].mxu0 %v827
      %v866 = vpop.f32.mrb[0].mxu0
      %v867 = vadd.f32 0.0, %v866
      %v868 = vpop.f32.mrb[0].mxu0
      %v869 = vpop.f32.mrb[0].mxu0
      %v870 = vpop.f32.mrb[0].mxu0
      %871 = vdwg.mxu0
      %872 = vrot.lane.b32.xlu0 %v328, 64
      %v873 = vpop.permute.xlu0 %872
      %v875 = vsel %vm728, %v721, 0
      %v878 = vsel %vm732, %v873, 0
      %880 = vmatprep.subr.bf16.mxu0 0
      %881 = vmatpush1.bf16.msra.mxu0 %v878
      %882 = vmatprep.subr.bf16.mxu0 0
      %883 = vmatpush1.bf16.msra.mxu0 0
      %884 = vmatprep.subr.bf16.mxu0 0
      %885 = vmatpush1.bf16.msra.mxu0 0
      %886 = vmatprep.subr.bf16.mxu0 0
      %887 = vmatpush1.bf16.msra.mxu0 0
      %888 = vmatprep.subr.bf16.mxu0 0
      %889 = vmatpush1.bf16.msra.mxu0 0
      %890 = vmatprep.subr.bf16.mxu0 0
      %891 = vmatpush1.bf16.msra.mxu0 0
      %892 = vmatprep.subr.bf16.mxu0 0
      %893 = vmatpush1.bf16.msra.mxu0 0
      %894 = vmatprep.subr.bf16.mxu0 0
      %895 = vmatpush1.bf16.msra.mxu0 0
      %896 = vmatprep.subr.bf16.mxu0 0
      %897 = vmatpush1.bf16.msra.mxu0 0
      %898 = vmatprep.subr.bf16.mxu0 0
      %899 = vmatpush1.bf16.msra.mxu0 0
      %900 = vmatprep.subr.bf16.mxu0 0
      %901 = vmatpush1.bf16.msra.mxu0 0
      %902 = vmatprep.subr.bf16.mxu0 0
      %903 = vmatpush1.bf16.msra.mxu0 0
      %904 = vmatprep.subr.bf16.mxu0 0
      %905 = vmatpush1.bf16.msra.mxu0 0
      %906 = vmatprep.subr.bf16.mxu0 0
      %907 = vmatpush1.bf16.msra.mxu0 0
      %908 = vmatprep.subr.bf16.mxu0 0
      %909 = vmatpush1.bf16.msra.mxu0 0
      %910 = vmatprep.subr.bf16.mxu0 0
      %911 = vmatpush1.bf16.msra.mxu0 0
      %912 = vmatprep.mubr.bf16.mxu0 0
      %913 = vmatmul.mubr.bf16.gmra.mrb[0].mxu0 %v875
      %v914 = vpop.f32.mrb[0].mxu0
      %v915 = vadd.f32 0.0, %v914
      %v916 = vpop.f32.mrb[0].mxu0
      %v917 = vpop.f32.mrb[0].mxu0
      %v918 = vpop.f32.mrb[0].mxu0
      %919 = vdwg.mxu0
      %920 = vrot.lane.b32.xlu0 %v391, 64
      %v921 = vpop.permute.xlu0 %920
      %v923 = vsel %vm728, %v722, 0
      %v926 = vsel %vm732, %v921, 0
      %928 = vmatprep.subr.bf16.mxu0 0
      %929 = vmatpush1.bf16.msra.mxu0 %v926
      %930 = vmatprep.subr.bf16.mxu0 0
      %931 = vmatpush1.bf16.msra.mxu0 0
      %932 = vmatprep.subr.bf16.mxu0 0
      %933 = vmatpush1.bf16.msra.mxu0 0
      %934 = vmatprep.subr.bf16.mxu0 0
      %935 = vmatpush1.bf16.msra.mxu0 0
      %936 = vmatprep.subr.bf16.mxu0 0
      %937 = vmatpush1.bf16.msra.mxu0 0
      %938 = vmatprep.subr.bf16.mxu0 0
      %939 = vmatpush1.bf16.msra.mxu0 0
      %940 = vmatprep.subr.bf16.mxu0 0
      %941 = vmatpush1.bf16.msra.mxu0 0
      %942 = vmatprep.subr.bf16.mxu0 0
      %943 = vmatpush1.bf16.msra.mxu0 0
      %944 = vmatprep.subr.bf16.mxu0 0
      %945 = vmatpush1.bf16.msra.mxu0 0
      %946 = vmatprep.subr.bf16.mxu0 0
      %947 = vmatpush1.bf16.msra.mxu0 0
      %948 = vmatprep.subr.bf16.mxu0 0
      %949 = vmatpush1.bf16.msra.mxu0 0
      %950 = vmatprep.subr.bf16.mxu0 0
      %951 = vmatpush1.bf16.msra.mxu0 0
      %952 = vmatprep.subr.bf16.mxu0 0
      %953 = vmatpush1.bf16.msra.mxu0 0
      %954 = vmatprep.subr.bf16.mxu0 0
      %955 = vmatpush1.bf16.msra.mxu0 0
      %956 = vmatprep.subr.bf16.mxu0 0
      %957 = vmatpush1.bf16.msra.mxu0 0
      %958 = vmatprep.subr.bf16.mxu0 0
      %959 = vmatpush1.bf16.msra.mxu0 0
      %960 = vmatprep.mubr.bf16.mxu0 0
      %961 = vmatmul.mubr.bf16.gmra.mrb[0].mxu0 %v923
      %v962 = vpop.f32.mrb[0].mxu0
      %v963 = vadd.f32 0.0, %v962
      %v964 = vpop.f32.mrb[0].mxu0
      %v965 = vpop.f32.mrb[0].mxu0
      %v966 = vpop.f32.mrb[0].mxu0
      %967 = vdwg.mxu0
      %968 = vrot.lane.b32.xlu0 %v454, 64
      %v969 = vpop.permute.xlu0 %968
      %v971 = vsel %vm728, %v723, 0
      %v974 = vsel %vm732, %v969, 0
      %976 = vmatprep.subr.bf16.mxu0 0
      %977 = vmatpush1.bf16.msra.mxu0 %v974
      %978 = vmatprep.subr.bf16.mxu0 0
      %979 = vmatpush1.bf16.msra.mxu0 0
      %980 = vmatprep.subr.bf16.mxu0 0
      %981 = vmatpush1.bf16.msra.mxu0 0
      %982 = vmatprep.subr.bf16.mxu0 0
      %983 = vmatpush1.bf16.msra.mxu0 0
      %984 = vmatprep.subr.bf16.mxu0 0
      %985 = vmatpush1.bf16.msra.mxu0 0
      %986 = vmatprep.subr.bf16.mxu0 0
      %987 = vmatpush1.bf16.msra.mxu0 0
      %988 = vmatprep.subr.bf16.mxu0 0
      %989 = vmatpush1.bf16.msra.mxu0 0
      %990 = vmatprep.subr.bf16.mxu0 0
      %991 = vmatpush1.bf16.msra.mxu0 0
      %992 = vmatprep.subr.bf16.mxu0 0
      %993 = vmatpush1.bf16.msra.mxu0 0
      %994 = vmatprep.subr.bf16.mxu0 0
      %995 = vmatpush1.bf16.msra.mxu0 0
      %996 = vmatprep.subr.bf16.mxu0 0
      %997 = vmatpush1.bf16.msra.mxu0 0
      %998 = vmatprep.subr.bf16.mxu0 0
      %999 = vmatpush1.bf16.msra.mxu0 0
      %1000 = vmatprep.subr.bf16.mxu0 0
      %1001 = vmatpush1.bf16.msra.mxu0 0
      %1002 = vmatprep.subr.bf16.mxu0 0
      %1003 = vmatpush1.bf16.msra.mxu0 0
      %1004 = vmatprep.subr.bf16.mxu0 0
      %1005 = vmatpush1.bf16.msra.mxu0 0
      %1006 = vmatprep.subr.bf16.mxu0 0
      %1007 = vmatpush1.bf16.msra.mxu0 0
      %1008 = vmatprep.mubr.bf16.mxu0 0
      %1009 = vmatmul.mubr.bf16.gmra.mrb[0].mxu0 %v971
      %v1010 = vpop.f32.mrb[0].mxu0
      %v1011 = vadd.f32 0.0, %v1010
      %v1012 = vpop.f32.mrb[0].mxu0
      %v1013 = vpop.f32.mrb[0].mxu0
      %v1014 = vpop.f32.mrb[0].mxu0
      %1015 = vdwg.mxu0
      %1016 = vrot.lane.b32.xlu0 %v517, 64
      %v1017 = vpop.permute.xlu0 %1016
      %v1019 = vsel %vm728, %v724, 0
      %v1022 = vsel %vm732, %v1017, 0
      %1024 = vmatprep.subr.bf16.mxu0 0
      %1025 = vmatpush1.bf16.msra.mxu0 %v1022
      %1026 = vmatprep.subr.bf16.mxu0 0
      %1027 = vmatpush1.bf16.msra.mxu0 0
      %1028 = vmatprep.subr.bf16.mxu0 0
      %1029 = vmatpush1.bf16.msra.mxu0 0
      %1030 = vmatprep.subr.bf16.mxu0 0
      %1031 = vmatpush1.bf16.msra.mxu0 0
      %1032 = vmatprep.subr.bf16.mxu0 0
      %1033 = vmatpush1.bf16.msra.mxu0 0
      %1034 = vmatprep.subr.bf16.mxu0 0
      %1035 = vmatpush1.bf16.msra.mxu0 0
      %1036 = vmatprep.subr.bf16.mxu0 0
      %1037 = vmatpush1.bf16.msra.mxu0 0
      %1038 = vmatprep.subr.bf16.mxu0 0
      %1039 = vmatpush1.bf16.msra.mxu0 0
      %1040 = vmatprep.subr.bf16.mxu0 0
      %1041 = vmatpush1.bf16.msra.mxu0 0
      %1042 = vmatprep.subr.bf16.mxu0 0
      %1043 = vmatpush1.bf16.msra.mxu0 0
      %1044 = vmatprep.subr.bf16.mxu0 0
      %1045 = vmatpush1.bf16.msra.mxu0 0
      %1046 = vmatprep.subr.bf16.mxu0 0
      %1047 = vmatpush1.bf16.msra.mxu0 0
      %1048 = vmatprep.subr.bf16.mxu0 0
      %1049 = vmatpush1.bf16.msra.mxu0 0
      %1050 = vmatprep.subr.bf16.mxu0 0
      %1051 = vmatpush1.bf16.msra.mxu0 0
      %1052 = vmatprep.subr.bf16.mxu0 0
      %1053 = vmatpush1.bf16.msra.mxu0 0
      %1054 = vmatprep.subr.bf16.mxu0 0
      %1055 = vmatpush1.bf16.msra.mxu0 0
      %1056 = vmatprep.mubr.bf16.mxu0 0
      %1057 = vmatmul.mubr.bf16.gmra.mrb[0].mxu0 %v1019
      %v1058 = vpop.f32.mrb[0].mxu0
      %v1059 = vadd.f32 0.0, %v1058
      %v1060 = vpop.f32.mrb[0].mxu0
      %v1061 = vpop.f32.mrb[0].mxu0
      %v1062 = vpop.f32.mrb[0].mxu0
      %1063 = vdwg.mxu0
      %1064 = vrot.lane.b32.xlu0 %v580, 64
      %v1065 = vpop.permute.xlu0 %1064
      %v1067 = vsel %vm728, %v725, 0
      %v1070 = vsel %vm732, %v1065, 0
      %1072 = vmatprep.subr.bf16.mxu0 0
      %1073 = vmatpush1.bf16.msra.mxu0 %v1070
      %1074 = vmatprep.subr.bf16.mxu0 0
      %1075 = vmatpush1.bf16.msra.mxu0 0
      %1076 = vmatprep.subr.bf16.mxu0 0
      %1077 = vmatpush1.bf16.msra.mxu0 0
      %1078 = vmatprep.subr.bf16.mxu0 0
      %1079 = vmatpush1.bf16.msra.mxu0 0
      %1080 = vmatprep.subr.bf16.mxu0 0
      %1081 = vmatpush1.bf16.msra.mxu0 0
      %1082 = vmatprep.subr.bf16.mxu0 0
      %1083 = vmatpush1.bf16.msra.mxu0 0
      %1084 = vmatprep.subr.bf16.mxu0 0
      %1085 = vmatpush1.bf16.msra.mxu0 0
      %1086 = vmatprep.subr.bf16.mxu0 0
      %1087 = vmatpush1.bf16.msra.mxu0 0
      %1088 = vmatprep.subr.bf16.mxu0 0
      %1089 = vmatpush1.bf16.msra.mxu0 0
      %1090 = vmatprep.subr.bf16.mxu0 0
      %1091 = vmatpush1.bf16.msra.mxu0 0
      %1092 = vmatprep.subr.bf16.mxu0 0
      %1093 = vmatpush1.bf16.msra.mxu0 0
      %1094 = vmatprep.subr.bf16.mxu0 0
      %1095 = vmatpush1.bf16.msra.mxu0 0
      %1096 = vmatprep.subr.bf16.mxu0 0
      %1097 = vmatpush1.bf16.msra.mxu0 0
      %1098 = vmatprep.subr.bf16.mxu0 0
      %1099 = vmatpush1.bf16.msra.mxu0 0
      %1100 = vmatprep.subr.bf16.mxu0 0
      %1101 = vmatpush1.bf16.msra.mxu0 0
      %1102 = vmatprep.subr.bf16.mxu0 0
      %1103 = vmatpush1.bf16.msra.mxu0 0
      %1104 = vmatprep.mubr.bf16.mxu0 0
      %1105 = vmatmul.mubr.bf16.gmra.mrb[0].mxu0 %v1067
      %v1106 = vpop.f32.mrb[0].mxu0
      %v1107 = vadd.f32 0.0, %v1106
      %v1108 = vpop.f32.mrb[0].mxu0
      %v1109 = vpop.f32.mrb[0].mxu0
      %v1110 = vpop.f32.mrb[0].mxu0
      %1111 = vdwg.mxu0
      %v1112 = vld [vmem:[%s108] sm:$0x1]
      %v1113 = vld [vmem:[%s108 + $0x1] sm:$0x1]
      %v1114 = vld [vmem:[%s108 + $0x2] sm:$0x1]
      %v1115 = vld [vmem:[%s108 + $0x3] sm:$0x1]
      %v1116 = vld [vmem:[%s108 + $0x4] sm:$0x1]
      %v1117 = vld [vmem:[%s108 + $0x5] sm:$0x1]
      %v1118 = vld [vmem:[%s108 + $0x6] sm:$0x1]
      %v1119 = vld [vmem:[%s108 + $0x7] sm:$0x1]
      %v1122 = vunpack.c.l.s4 1966171168
      %v1123 = vunpack.c.0.s8 %v1122
      %v1124 = vlaneseq
      %v1125 = vshrl.u32 %v1124, 7
      %v1126 = vsub.s32 %v1123, %v1125
      %v1127 = vrot.slane %v1112, %v1126
      %v1129 = vunpack.c.l.s4 1966171168
      %v1130 = vunpack.c.0.s8 %v1129
      %v1131 = vlaneseq
      %v1132 = vshrl.u32 %v1131, 7
      %v1133 = vsub.s32 %v1130, %v1132
      %v1134 = vrot.slane %v1127, %v1133
      %1135 = vrot.lane.b32.xlu0 %v1134, 120
      %v1136 = vpop.permute.xlu0 %1135
      %1137 = vrot.lane.b32.xlu0 %v1134, 88
      %v1138 = vpop.permute.xlu0 %1137
      %v1140 = vsel %vm141, %v1136, 0
      %v1143 = vsel %vm141, %v1138, 0
      %1145 = vmatprep.subr.bf16.mxu0 0
      %1146 = vmatpush1.bf16.xpose.msra.mxu0 %v1143
      %1147 = vmatprep.subr.bf16.mxu0 0
      %1148 = vmatpush1.bf16.xpose.msra.mxu0 0
      %1149 = vmatprep.subr.bf16.mxu0 0
      %1150 = vmatpush1.bf16.xpose.msra.mxu0 0
      %1151 = vmatprep.subr.bf16.mxu0 0
      %1152 = vmatpush1.bf16.xpose.msra.mxu0 0
      %1153 = vmatprep.subr.bf16.mxu0 0
      %1154 = vmatpush1.bf16.xpose.msra.mxu0 0
      %1155 = vmatprep.subr.bf16.mxu0 0
      %1156 = vmatpush1.bf16.xpose.msra.mxu0 0
      %1157 = vmatprep.subr.bf16.mxu0 0
      %1158 = vmatpush1.bf16.xpose.msra.mxu0 0
      %1159 = vmatprep.subr.bf16.mxu0 0
      %1160 = vmatpush1.bf16.xpose.msra.mxu0 0
      %1161 = vmatprep.subr.bf16.mxu0 0
      %1162 = vmatpush1.bf16.xpose.msra.mxu0 0
      %1163 = vmatprep.subr.bf16.mxu0 0
      %1164 = vmatpush1.bf16.xpose.msra.mxu0 0
      %1165 = vmatprep.subr.bf16.mxu0 0
      %1166 = vmatpush1.bf16.xpose.msra.mxu0 0
      %1167 = vmatprep.subr.bf16.mxu0 0
      %1168 = vmatpush1.bf16.xpose.msra.mxu0 0
      %1169 = vmatprep.subr.bf16.mxu0 0
      %1170 = vmatpush1.bf16.xpose.msra.mxu0 0
      %1171 = vmatprep.subr.bf16.mxu0 0
      %1172 = vmatpush1.bf16.xpose.msra.mxu0 0
      %1173 = vmatprep.subr.bf16.mxu0 0
      %1174 = vmatpush1.bf16.xpose.msra.mxu0 0
      %1175 = vmatprep.subr.bf16.mxu0 0
      %1176 = vmatpush1.bf16.xpose.msra.mxu0 0
      %1177 = vmatprep.mubr.bf16.mxu0 0
      %1178 = vmatmul.mubr.bf16.gmra.mrb[0].mxu0 %v1140
      %v1179 = vpop.f32.mrb[0].mxu0
      %v1180 = vadd.f32 0.0, %v1179
      %v1181 = vpop.f32.mrb[0].mxu0
      %v1182 = vpop.f32.mrb[0].mxu0
      %v1183 = vpop.f32.mrb[0].mxu0
      %1184 = vdwg.mxu0
      %v1187 = vunpack.c.l.s4 1966171168
      %v1188 = vunpack.c.0.s8 %v1187
      %v1189 = vlaneseq
      %v1190 = vshrl.u32 %v1189, 7
      %v1191 = vsub.s32 %v1188, %v1190
      %v1192 = vrot.slane %v1113, %v1191
      %v1194 = vunpack.c.l.s4 1966171168
      %v1195 = vunpack.c.0.s8 %v1194
      %v1196 = vlaneseq
      %v1197 = vshrl.u32 %v1196, 7
      %v1198 = vsub.s32 %v1195, %v1197
      %v1199 = vrot.slane %v1192, %v1198
      %1200 = vrot.lane.b32.xlu0 %v1199, 120
      %v1201 = vpop.permute.xlu0 %1200
      %1202 = vrot.lane.b32.xlu0 %v1199, 88
      %v1203 = vpop.permute.xlu0 %1202
      %v1205 = vsel %vm141, %v1201, 0
      %v1208 = vsel %vm141, %v1203, 0
      %1210 = vmatprep.subr.bf16.mxu0 0
      %1211 = vmatpush1.bf16.xpose.msra.mxu0 %v1208
      %1212 = vmatprep.subr.bf16.mxu0 0
      %1213 = vmatpush1.bf16.xpose.msra.mxu0 0
      %1214 = vmatprep.subr.bf16.mxu0 0
      %1215 = vmatpush1.bf16.xpose.msra.mxu0 0
      %1216 = vmatprep.subr.bf16.mxu0 0
      %1217 = vmatpush1.bf16.xpose.msra.mxu0 0
      %1218 = vmatprep.subr.bf16.mxu0 0
      %1219 = vmatpush1.bf16.xpose.msra.mxu0 0
      %1220 = vmatprep.subr.bf16.mxu0 0
      %1221 = vmatpush1.bf16.xpose.msra.mxu0 0
      %1222 = vmatprep.subr.bf16.mxu0 0
      %1223 = vmatpush1.bf16.xpose.msra.mxu0 0
      %1224 = vmatprep.subr.bf16.mxu0 0
      %1225 = vmatpush1.bf16.xpose.msra.mxu0 0
      %1226 = vmatprep.subr.bf16.mxu0 0
      %1227 = vmatpush1.bf16.xpose.msra.mxu0 0
      %1228 = vmatprep.subr.bf16.mxu0 0
      %1229 = vmatpush1.bf16.xpose.msra.mxu0 0
      %1230 = vmatprep.subr.bf16.mxu0 0
      %1231 = vmatpush1.bf16.xpose.msra.mxu0 0
      %1232 = vmatprep.subr.bf16.mxu0 0
      %1233 = vmatpush1.bf16.xpose.msra.mxu0 0
      %1234 = vmatprep.subr.bf16.mxu0 0
      %1235 = vmatpush1.bf16.xpose.msra.mxu0 0
      %1236 = vmatprep.subr.bf16.mxu0 0
      %1237 = vmatpush1.bf16.xpose.msra.mxu0 0
      %1238 = vmatprep.subr.bf16.mxu0 0
      %1239 = vmatpush1.bf16.xpose.msra.mxu0 0
      %1240 = vmatprep.subr.bf16.mxu0 0
      %1241 = vmatpush1.bf16.xpose.msra.mxu0 0
      %1242 = vmatprep.mubr.bf16.mxu0 0
      %1243 = vmatmul.mubr.bf16.gmra.mrb[0].mxu0 %v1205
      %v1244 = vpop.f32.mrb[0].mxu0
      %v1245 = vadd.f32 0.0, %v1244
      %v1246 = vpop.f32.mrb[0].mxu0
      %v1247 = vpop.f32.mrb[0].mxu0
      %v1248 = vpop.f32.mrb[0].mxu0
      %1249 = vdwg.mxu0
      %v1252 = vunpack.c.l.s4 1966171168
      %v1253 = vunpack.c.0.s8 %v1252
      %v1254 = vlaneseq
      %v1255 = vshrl.u32 %v1254, 7
      %v1256 = vsub.s32 %v1253, %v1255
      %v1257 = vrot.slane %v1114, %v1256
      %v1259 = vunpack.c.l.s4 1966171168
      %v1260 = vunpack.c.0.s8 %v1259
      %v1261 = vlaneseq
      %v1262 = vshrl.u32 %v1261, 7
      %v1263 = vsub.s32 %v1260, %v1262
      %v1264 = vrot.slane %v1257, %v1263
      %1265 = vrot.lane.b32.xlu0 %v1264, 120
      %v1266 = vpop.permute.xlu0 %1265
      %1267 = vrot.lane.b32.xlu0 %v1264, 88
      %v1268 = vpop.permute.xlu0 %1267
      %v1270 = vsel %vm141, %v1266, 0
      %v1273 = vsel %vm141, %v1268, 0
      %1275 = vmatprep.subr.bf16.mxu0 0
      %1276 = vmatpush1.bf16.xpose.msra.mxu0 %v1273
      %1277 = vmatprep.subr.bf16.mxu0 0
      %1278 = vmatpush1.bf16.xpose.msra.mxu0 0
      %1279 = vmatprep.subr.bf16.mxu0 0
      %1280 = vmatpush1.bf16.xpose.msra.mxu0 0
      %1281 = vmatprep.subr.bf16.mxu0 0
      %1282 = vmatpush1.bf16.xpose.msra.mxu0 0
      %1283 = vmatprep.subr.bf16.mxu0 0
      %1284 = vmatpush1.bf16.xpose.msra.mxu0 0
      %1285 = vmatprep.subr.bf16.mxu0 0
      %1286 = vmatpush1.bf16.xpose.msra.mxu0 0
      %1287 = vmatprep.subr.bf16.mxu0 0
      %1288 = vmatpush1.bf16.xpose.msra.mxu0 0
      %1289 = vmatprep.subr.bf16.mxu0 0
      %1290 = vmatpush1.bf16.xpose.msra.mxu0 0
      %1291 = vmatprep.subr.bf16.mxu0 0
      %1292 = vmatpush1.bf16.xpose.msra.mxu0 0
      %1293 = vmatprep.subr.bf16.mxu0 0
      %1294 = vmatpush1.bf16.xpose.msra.mxu0 0
      %1295 = vmatprep.subr.bf16.mxu0 0
      %1296 = vmatpush1.bf16.xpose.msra.mxu0 0
      %1297 = vmatprep.subr.bf16.mxu0 0
      %1298 = vmatpush1.bf16.xpose.msra.mxu0 0
      %1299 = vmatprep.subr.bf16.mxu0 0
      %1300 = vmatpush1.bf16.xpose.msra.mxu0 0
      %1301 = vmatprep.subr.bf16.mxu0 0
      %1302 = vmatpush1.bf16.xpose.msra.mxu0 0
      %1303 = vmatprep.subr.bf16.mxu0 0
      %1304 = vmatpush1.bf16.xpose.msra.mxu0 0
      %1305 = vmatprep.subr.bf16.mxu0 0
      %1306 = vmatpush1.bf16.xpose.msra.mxu0 0
      %1307 = vmatprep.mubr.bf16.mxu0 0
      %1308 = vmatmul.mubr.bf16.gmra.mrb[0].mxu0 %v1270
      %v1309 = vpop.f32.mrb[0].mxu0
      %v1310 = vadd.f32 0.0, %v1309
      %v1311 = vpop.f32.mrb[0].mxu0
      %v1312 = vpop.f32.mrb[0].mxu0
      %v1313 = vpop.f32.mrb[0].mxu0
      %1314 = vdwg.mxu0
      %v1317 = vunpack.c.l.s4 1966171168
      %v1318 = vunpack.c.0.s8 %v1317
      %v1319 = vlaneseq
      %v1320 = vshrl.u32 %v1319, 7
      %v1321 = vsub.s32 %v1318, %v1320
      %v1322 = vrot.slane %v1115, %v1321
      %v1324 = vunpack.c.l.s4 1966171168
      %v1325 = vunpack.c.0.s8 %v1324
      %v1326 = vlaneseq
      %v1327 = vshrl.u32 %v1326, 7
      %v1328 = vsub.s32 %v1325, %v1327
      %v1329 = vrot.slane %v1322, %v1328
      %1330 = vrot.lane.b32.xlu0 %v1329, 120
      %v1331 = vpop.permute.xlu0 %1330
      %1332 = vrot.lane.b32.xlu0 %v1329, 88
      %v1333 = vpop.permute.xlu0 %1332
      %v1335 = vsel %vm141, %v1331, 0
      %v1338 = vsel %vm141, %v1333, 0
      %1340 = vmatprep.subr.bf16.mxu0 0
      %1341 = vmatpush1.bf16.xpose.msra.mxu0 %v1338
      %1342 = vmatprep.subr.bf16.mxu0 0
      %1343 = vmatpush1.bf16.xpose.msra.mxu0 0
      %1344 = vmatprep.subr.bf16.mxu0 0
      %1345 = vmatpush1.bf16.xpose.msra.mxu0 0
      %1346 = vmatprep.subr.bf16.mxu0 0
      %1347 = vmatpush1.bf16.xpose.msra.mxu0 0
      %1348 = vmatprep.subr.bf16.mxu0 0
      %1349 = vmatpush1.bf16.xpose.msra.mxu0 0
      %1350 = vmatprep.subr.bf16.mxu0 0
      %1351 = vmatpush1.bf16.xpose.msra.mxu0 0
      %1352 = vmatprep.subr.bf16.mxu0 0
      %1353 = vmatpush1.bf16.xpose.msra.mxu0 0
      %1354 = vmatprep.subr.bf16.mxu0 0
      %1355 = vmatpush1.bf16.xpose.msra.mxu0 0
      %1356 = vmatprep.subr.bf16.mxu0 0
      %1357 = vmatpush1.bf16.xpose.msra.mxu0 0
      %1358 = vmatprep.subr.bf16.mxu0 0
      %1359 = vmatpush1.bf16.xpose.msra.mxu0 0
      %1360 = vmatprep.subr.bf16.mxu0 0
      %1361 = vmatpush1.bf16.xpose.msra.mxu0 0
      %1362 = vmatprep.subr.bf16.mxu0 0
      %1363 = vmatpush1.bf16.xpose.msra.mxu0 0
      %1364 = vmatprep.subr.bf16.mxu0 0
      %1365 = vmatpush1.bf16.xpose.msra.mxu0 0
      %1366 = vmatprep.subr.bf16.mxu0 0
      %1367 = vmatpush1.bf16.xpose.msra.mxu0 0
      %1368 = vmatprep.subr.bf16.mxu0 0
      %1369 = vmatpush1.bf16.xpose.msra.mxu0 0
      %1370 = vmatprep.subr.bf16.mxu0 0
      %1371 = vmatpush1.bf16.xpose.msra.mxu0 0
      %1372 = vmatprep.mubr.bf16.mxu0 0
      %1373 = vmatmul.mubr.bf16.gmra.mrb[0].mxu0 %v1335
      %v1374 = vpop.f32.mrb[0].mxu0
      %v1375 = vadd.f32 0.0, %v1374
      %v1376 = vpop.f32.mrb[0].mxu0
      %v1377 = vpop.f32.mrb[0].mxu0
      %v1378 = vpop.f32.mrb[0].mxu0
      %1379 = vdwg.mxu0
      %v1382 = vunpack.c.l.s4 1966171168
      %v1383 = vunpack.c.0.s8 %v1382
      %v1384 = vlaneseq
      %v1385 = vshrl.u32 %v1384, 7
      %v1386 = vsub.s32 %v1383, %v1385
      %v1387 = vrot.slane %v1116, %v1386
      %v1389 = vunpack.c.l.s4 1966171168
      %v1390 = vunpack.c.0.s8 %v1389
      %v1391 = vlaneseq
      %v1392 = vshrl.u32 %v1391, 7
      %v1393 = vsub.s32 %v1390, %v1392
      %v1394 = vrot.slane %v1387, %v1393
      %1395 = vrot.lane.b32.xlu0 %v1394, 120
      %v1396 = vpop.permute.xlu0 %1395
      %1397 = vrot.lane.b32.xlu0 %v1394, 88
      %v1398 = vpop.permute.xlu0 %1397
      %v1400 = vsel %vm141, %v1396, 0
      %v1403 = vsel %vm141, %v1398, 0
      %1405 = vmatprep.subr.bf16.mxu0 0
      %1406 = vmatpush1.bf16.xpose.msra.mxu0 %v1403
      %1407 = vmatprep.subr.bf16.mxu0 0
      %1408 = vmatpush1.bf16.xpose.msra.mxu0 0
      %1409 = vmatprep.subr.bf16.mxu0 0
      %1410 = vmatpush1.bf16.xpose.msra.mxu0 0
      %1411 = vmatprep.subr.bf16.mxu0 0
      %1412 = vmatpush1.bf16.xpose.msra.mxu0 0
      %1413 = vmatprep.subr.bf16.mxu0 0
      %1414 = vmatpush1.bf16.xpose.msra.mxu0 0
      %1415 = vmatprep.subr.bf16.mxu0 0
      %1416 = vmatpush1.bf16.xpose.msra.mxu0 0
      %1417 = vmatprep.subr.bf16.mxu0 0
      %1418 = vmatpush1.bf16.xpose.msra.mxu0 0
      %1419 = vmatprep.subr.bf16.mxu0 0
      %1420 = vmatpush1.bf16.xpose.msra.mxu0 0
      %1421 = vmatprep.subr.bf16.mxu0 0
      %1422 = vmatpush1.bf16.xpose.msra.mxu0 0
      %1423 = vmatprep.subr.bf16.mxu0 0
      %1424 = vmatpush1.bf16.xpose.msra.mxu0 0
      %1425 = vmatprep.subr.bf16.mxu0 0
      %1426 = vmatpush1.bf16.xpose.msra.mxu0 0
      %1427 = vmatprep.subr.bf16.mxu0 0
      %1428 = vmatpush1.bf16.xpose.msra.mxu0 0
      %1429 = vmatprep.subr.bf16.mxu0 0
      %1430 = vmatpush1.bf16.xpose.msra.mxu0 0
      %1431 = vmatprep.subr.bf16.mxu0 0
      %1432 = vmatpush1.bf16.xpose.msra.mxu0 0
      %1433 = vmatprep.subr.bf16.mxu0 0
      %1434 = vmatpush1.bf16.xpose.msra.mxu0 0
      %1435 = vmatprep.subr.bf16.mxu0 0
      %1436 = vmatpush1.bf16.xpose.msra.mxu0 0
      %1437 = vmatprep.mubr.bf16.mxu0 0
      %1438 = vmatmul.mubr.bf16.gmra.mrb[0].mxu0 %v1400
      %v1439 = vpop.f32.mrb[0].mxu0
      %v1440 = vadd.f32 0.0, %v1439
      %v1441 = vpop.f32.mrb[0].mxu0
      %v1442 = vpop.f32.mrb[0].mxu0
      %v1443 = vpop.f32.mrb[0].mxu0
      %1444 = vdwg.mxu0
      %v1447 = vunpack.c.l.s4 1966171168
      %v1448 = vunpack.c.0.s8 %v1447
      %v1449 = vlaneseq
      %v1450 = vshrl.u32 %v1449, 7
      %v1451 = vsub.s32 %v1448, %v1450
      %v1452 = vrot.slane %v1117, %v1451
      %v1454 = vunpack.c.l.s4 1966171168
      %v1455 = vunpack.c.0.s8 %v1454
      %v1456 = vlaneseq
      %v1457 = vshrl.u32 %v1456, 7
      %v1458 = vsub.s32 %v1455, %v1457
      %v1459 = vrot.slane %v1452, %v1458
      %1460 = vrot.lane.b32.xlu0 %v1459, 120
      %v1461 = vpop.permute.xlu0 %1460
      %1462 = vrot.lane.b32.xlu0 %v1459, 88
      %v1463 = vpop.permute.xlu0 %1462
      %v1465 = vsel %vm141, %v1461, 0
      %v1468 = vsel %vm141, %v1463, 0
      %1470 = vmatprep.subr.bf16.mxu0 0
      %1471 = vmatpush1.bf16.xpose.msra.mxu0 %v1468
      %1472 = vmatprep.subr.bf16.mxu0 0
      %1473 = vmatpush1.bf16.xpose.msra.mxu0 0
      %1474 = vmatprep.subr.bf16.mxu0 0
      %1475 = vmatpush1.bf16.xpose.msra.mxu0 0
      %1476 = vmatprep.subr.bf16.mxu0 0
      %1477 = vmatpush1.bf16.xpose.msra.mxu0 0
      %1478 = vmatprep.subr.bf16.mxu0 0
      %1479 = vmatpush1.bf16.xpose.msra.mxu0 0
      %1480 = vmatprep.subr.bf16.mxu0 0
      %1481 = vmatpush1.bf16.xpose.msra.mxu0 0
      %1482 = vmatprep.subr.bf16.mxu0 0
      %1483 = vmatpush1.bf16.xpose.msra.mxu0 0
      %1484 = vmatprep.subr.bf16.mxu0 0
      %1485 = vmatpush1.bf16.xpose.msra.mxu0 0
      %1486 = vmatprep.subr.bf16.mxu0 0
      %1487 = vmatpush1.bf16.xpose.msra.mxu0 0
      %1488 = vmatprep.subr.bf16.mxu0 0
      %1489 = vmatpush1.bf16.xpose.msra.mxu0 0
      %1490 = vmatprep.subr.bf16.mxu0 0
      %1491 = vmatpush1.bf16.xpose.msra.mxu0 0
      %1492 = vmatprep.subr.bf16.mxu0 0
      %1493 = vmatpush1.bf16.xpose.msra.mxu0 0
      %1494 = vmatprep.subr.bf16.mxu0 0
      %1495 = vmatpush1.bf16.xpose.msra.mxu0 0
      %1496 = vmatprep.subr.bf16.mxu0 0
      %1497 = vmatpush1.bf16.xpose.msra.mxu0 0
      %1498 = vmatprep.subr.bf16.mxu0 0
      %1499 = vmatpush1.bf16.xpose.msra.mxu0 0
      %1500 = vmatprep.subr.bf16.mxu0 0
      %1501 = vmatpush1.bf16.xpose.msra.mxu0 0
      %1502 = vmatprep.mubr.bf16.mxu0 0
      %1503 = vmatmul.mubr.bf16.gmra.mrb[0].mxu0 %v1465
      %v1504 = vpop.f32.mrb[0].mxu0
      %v1505 = vadd.f32 0.0, %v1504
      %v1506 = vpop.f32.mrb[0].mxu0
      %v1507 = vpop.f32.mrb[0].mxu0
      %v1508 = vpop.f32.mrb[0].mxu0
      %1509 = vdwg.mxu0
      %v1512 = vunpack.c.l.s4 1966171168
      %v1513 = vunpack.c.0.s8 %v1512
      %v1514 = vlaneseq
      %v1515 = vshrl.u32 %v1514, 7
      %v1516 = vsub.s32 %v1513, %v1515
      %v1517 = vrot.slane %v1118, %v1516
      %v1519 = vunpack.c.l.s4 1966171168
      %v1520 = vunpack.c.0.s8 %v1519
      %v1521 = vlaneseq
      %v1522 = vshrl.u32 %v1521, 7
      %v1523 = vsub.s32 %v1520, %v1522
      %v1524 = vrot.slane %v1517, %v1523
      %1525 = vrot.lane.b32.xlu0 %v1524, 120
      %v1526 = vpop.permute.xlu0 %1525
      %1527 = vrot.lane.b32.xlu0 %v1524, 88
      %v1528 = vpop.permute.xlu0 %1527
      %v1530 = vsel %vm141, %v1526, 0
      %v1533 = vsel %vm141, %v1528, 0
      %1535 = vmatprep.subr.bf16.mxu0 0
      %1536 = vmatpush1.bf16.xpose.msra.mxu0 %v1533
      %1537 = vmatprep.subr.bf16.mxu0 0
      %1538 = vmatpush1.bf16.xpose.msra.mxu0 0
      %1539 = vmatprep.subr.bf16.mxu0 0
      %1540 = vmatpush1.bf16.xpose.msra.mxu0 0
      %1541 = vmatprep.subr.bf16.mxu0 0
      %1542 = vmatpush1.bf16.xpose.msra.mxu0 0
      %1543 = vmatprep.subr.bf16.mxu0 0
      %1544 = vmatpush1.bf16.xpose.msra.mxu0 0
      %1545 = vmatprep.subr.bf16.mxu0 0
      %1546 = vmatpush1.bf16.xpose.msra.mxu0 0
      %1547 = vmatprep.subr.bf16.mxu0 0
      %1548 = vmatpush1.bf16.xpose.msra.mxu0 0
      %1549 = vmatprep.subr.bf16.mxu0 0
      %1550 = vmatpush1.bf16.xpose.msra.mxu0 0
      %1551 = vmatprep.subr.bf16.mxu0 0
      %1552 = vmatpush1.bf16.xpose.msra.mxu0 0
      %1553 = vmatprep.subr.bf16.mxu0 0
      %1554 = vmatpush1.bf16.xpose.msra.mxu0 0
      %1555 = vmatprep.subr.bf16.mxu0 0
      %1556 = vmatpush1.bf16.xpose.msra.mxu0 0
      %1557 = vmatprep.subr.bf16.mxu0 0
      %1558 = vmatpush1.bf16.xpose.msra.mxu0 0
      %1559 = vmatprep.subr.bf16.mxu0 0
      %1560 = vmatpush1.bf16.xpose.msra.mxu0 0
      %1561 = vmatprep.subr.bf16.mxu0 0
      %1562 = vmatpush1.bf16.xpose.msra.mxu0 0
      %1563 = vmatprep.subr.bf16.mxu0 0
      %1564 = vmatpush1.bf16.xpose.msra.mxu0 0
      %1565 = vmatprep.subr.bf16.mxu0 0
      %1566 = vmatpush1.bf16.xpose.msra.mxu0 0
      %1567 = vmatprep.mubr.bf16.mxu0 0
      %1568 = vmatmul.mubr.bf16.gmra.mrb[0].mxu0 %v1530
      %v1569 = vpop.f32.mrb[0].mxu0
      %v1570 = vadd.f32 0.0, %v1569
      %v1571 = vpop.f32.mrb[0].mxu0
      %v1572 = vpop.f32.mrb[0].mxu0
      %v1573 = vpop.f32.mrb[0].mxu0
      %1574 = vdwg.mxu0
      %v1577 = vunpack.c.l.s4 1966171168
      %v1578 = vunpack.c.0.s8 %v1577
      %v1579 = vlaneseq
      %v1580 = vshrl.u32 %v1579, 7
      %v1581 = vsub.s32 %v1578, %v1580
      %v1582 = vrot.slane %v1119, %v1581
      %v1584 = vunpack.c.l.s4 1966171168
      %v1585 = vunpack.c.0.s8 %v1584
      %v1586 = vlaneseq
      %v1587 = vshrl.u32 %v1586, 7
      %v1588 = vsub.s32 %v1585, %v1587
      %v1589 = vrot.slane %v1582, %v1588
      %1590 = vrot.lane.b32.xlu0 %v1589, 120
      %v1591 = vpop.permute.xlu0 %1590
      %1592 = vrot.lane.b32.xlu0 %v1589, 88
      %v1593 = vpop.permute.xlu0 %1592
      %v1595 = vsel %vm141, %v1591, 0
      %v1598 = vsel %vm141, %v1593, 0
      %1600 = vmatprep.subr.bf16.mxu0 0
      %1601 = vmatpush1.bf16.xpose.msra.mxu0 %v1598
      %1602 = vmatprep.subr.bf16.mxu0 0
      %1603 = vmatpush1.bf16.xpose.msra.mxu0 0
      %1604 = vmatprep.subr.bf16.mxu0 0
      %1605 = vmatpush1.bf16.xpose.msra.mxu0 0
      %1606 = vmatprep.subr.bf16.mxu0 0
      %1607 = vmatpush1.bf16.xpose.msra.mxu0 0
      %1608 = vmatprep.subr.bf16.mxu0 0
      %1609 = vmatpush1.bf16.xpose.msra.mxu0 0
      %1610 = vmatprep.subr.bf16.mxu0 0
      %1611 = vmatpush1.bf16.xpose.msra.mxu0 0
      %1612 = vmatprep.subr.bf16.mxu0 0
      %1613 = vmatpush1.bf16.xpose.msra.mxu0 0
      %1614 = vmatprep.subr.bf16.mxu0 0
      %1615 = vmatpush1.bf16.xpose.msra.mxu0 0
      %1616 = vmatprep.subr.bf16.mxu0 0
      %1617 = vmatpush1.bf16.xpose.msra.mxu0 0
      %1618 = vmatprep.subr.bf16.mxu0 0
      %1619 = vmatpush1.bf16.xpose.msra.mxu0 0
      %1620 = vmatprep.subr.bf16.mxu0 0
      %1621 = vmatpush1.bf16.xpose.msra.mxu0 0
      %1622 = vmatprep.subr.bf16.mxu0 0
      %1623 = vmatpush1.bf16.xpose.msra.mxu0 0
      %1624 = vmatprep.subr.bf16.mxu0 0
      %1625 = vmatpush1.bf16.xpose.msra.mxu0 0
      %1626 = vmatprep.subr.bf16.mxu0 0
      %1627 = vmatpush1.bf16.xpose.msra.mxu0 0
      %1628 = vmatprep.subr.bf16.mxu0 0
      %1629 = vmatpush1.bf16.xpose.msra.mxu0 0
      %1630 = vmatprep.subr.bf16.mxu0 0
      %1631 = vmatpush1.bf16.xpose.msra.mxu0 0
      %1632 = vmatprep.mubr.bf16.mxu0 0
      %1633 = vmatmul.mubr.bf16.gmra.mrb[0].mxu0 %v1595
      %v1634 = vpop.f32.mrb[0].mxu0
      %v1635 = vadd.f32 0.0, %v1634
      %v1636 = vpop.f32.mrb[0].mxu0
      %v1637 = vpop.f32.mrb[0].mxu0
      %v1638 = vpop.f32.mrb[0].mxu0
      %1639 = vdwg.mxu0
      %v1640 = vsel %vm629, %v1180, -inf
      %1641 = vmax.xlane.f32.xlu0 %v1640
      %v1642 = vpop.xlane.xlu0 %1641
      %v1643 = vsel %vm629, %v1245, -inf
      %1644 = vmax.xlane.f32.xlu0 %v1643
      %v1645 = vpop.xlane.xlu0 %1644
      %v1646 = vsel %vm629, %v1310, -inf
      %1647 = vmax.xlane.f32.xlu0 %v1646
      %v1648 = vpop.xlane.xlu0 %1647
      %v1649 = vsel %vm629, %v1375, -inf
      %1650 = vmax.xlane.f32.xlu0 %v1649
      %v1651 = vpop.xlane.xlu0 %1650
      %v1652 = vsel %vm629, %v1440, -inf
      %1653 = vmax.xlane.f32.xlu0 %v1652
      %v1654 = vpop.xlane.xlu0 %1653
      %v1655 = vsel %vm629, %v1505, -inf
      %1656 = vmax.xlane.f32.xlu0 %v1655
      %v1657 = vpop.xlane.xlu0 %1656
      %v1658 = vsel %vm629, %v1570, -inf
      %1659 = vmax.xlane.f32.xlu0 %v1658
      %v1660 = vpop.xlane.xlu0 %1659
      %v1661 = vsel %vm629, %v1635, -inf
      %1662 = vmax.xlane.f32.xlu0 %v1661
      %v1663 = vpop.xlane.xlu0 %1662
      %v1664 = vsub.f32 %v1180, %v1642
      %v1665 = vsub.f32 %v1245, %v1645
      %v1666 = vsub.f32 %v1310, %v1648
      %v1667 = vsub.f32 %v1375, %v1651
      %v1668 = vsub.f32 %v1440, %v1654
      %v1669 = vsub.f32 %v1505, %v1657
      %v1670 = vsub.f32 %v1570, %v1660
      %v1671 = vsub.f32 %v1635, %v1663
      %v1672 = vmul.f32 %v1664, 1.442695
      %v1673 = vpow.pop %v1672
      %v1674 = vmul.f32 %v1665, 1.442695
      %v1675 = vpow.pop %v1674
      %v1676 = vmul.f32 %v1666, 1.442695
      %v1677 = vpow.pop %v1676
      %v1678 = vmul.f32 %v1667, 1.442695
      %v1679 = vpow.pop %v1678
      %v1680 = vmul.f32 %v1668, 1.442695
      %v1681 = vpow.pop %v1680
      %v1682 = vmul.f32 %v1669, 1.442695
      %v1683 = vpow.pop %v1682
      %v1684 = vmul.f32 %v1670, 1.442695
      %v1685 = vpow.pop %v1684
      %v1686 = vmul.f32 %v1671, 1.442695
      %v1687 = vpow.pop %v1686
      %v1688 = vsel %vm629, %v1673, 0.0
      %1689 = vadd.xlane.f32.xlu0 %v1688
      %v1690 = vpop.xlane.xlu0 %1689
      %v1691 = vsel %vm629, %v1675, 0.0
      %1692 = vadd.xlane.f32.xlu0 %v1691
      %v1693 = vpop.xlane.xlu0 %1692
      %v1694 = vsel %vm629, %v1677, 0.0
      %1695 = vadd.xlane.f32.xlu0 %v1694
      %v1696 = vpop.xlane.xlu0 %1695
      %v1697 = vsel %vm629, %v1679, 0.0
      %1698 = vadd.xlane.f32.xlu0 %v1697
      %v1699 = vpop.xlane.xlu0 %1698
      %v1700 = vsel %vm629, %v1681, 0.0
      %1701 = vadd.xlane.f32.xlu0 %v1700
      %v1702 = vpop.xlane.xlu0 %1701
      %v1703 = vsel %vm629, %v1683, 0.0
      %1704 = vadd.xlane.f32.xlu0 %v1703
      %v1705 = vpop.xlane.xlu0 %1704
      %v1706 = vsel %vm629, %v1685, 0.0
      %1707 = vadd.xlane.f32.xlu0 %v1706
      %v1708 = vpop.xlane.xlu0 %1707
      %v1709 = vsel %vm629, %v1687, 0.0
      %1710 = vadd.xlane.f32.xlu0 %v1709
      %v1711 = vpop.xlane.xlu0 %1710
      %v1712 = vrcp.pop %v1690
      %v1713 = vmul.f32 %v1673, %v1712
      %v1714 = vrcp.pop %v1693
      %v1715 = vmul.f32 %v1675, %v1714
      %v1716 = vrcp.pop %v1696
      %v1717 = vmul.f32 %v1677, %v1716
      %v1718 = vrcp.pop %v1699
      %v1719 = vmul.f32 %v1679, %v1718
      %v1720 = vrcp.pop %v1702
      %v1721 = vmul.f32 %v1681, %v1720
      %v1722 = vrcp.pop %v1705
      %v1723 = vmul.f32 %v1683, %v1722
      %v1724 = vrcp.pop %v1708
      %v1725 = vmul.f32 %v1685, %v1724
      %v1726 = vrcp.pop %v1711
      %v1727 = vmul.f32 %v1687, %v1726
      %v1728 = vpack.c.bf16 %v1713, %v1713
      %v1729 = vpack.c.bf16 %v1715, %v1715
      %v1730 = vpack.c.bf16 %v1717, %v1717
      %v1731 = vpack.c.bf16 %v1719, %v1719
      %v1732 = vpack.c.bf16 %v1721, %v1721
      %v1733 = vpack.c.bf16 %v1723, %v1723
      %v1734 = vpack.c.bf16 %v1725, %v1725
      %v1735 = vpack.c.bf16 %v1727, %v1727
      %1736 = vrot.lane.b32.xlu0 %v1134, 56
      %v1737 = vpop.permute.xlu0 %1736
      %v1739 = vsel %vm728, %v1728, 0
      %v1742 = vsel %vm732, %v1737, 0
      %1744 = vmatprep.subr.bf16.mxu0 0
      %1745 = vmatpush1.bf16.msra.mxu0 %v1742
      %1746 = vmatprep.subr.bf16.mxu0 0
      %1747 = vmatpush1.bf16.msra.mxu0 0
      %1748 = vmatprep.subr.bf16.mxu0 0
      %1749 = vmatpush1.bf16.msra.mxu0 0
      %1750 = vmatprep.subr.bf16.mxu0 0
      %1751 = vmatpush1.bf16.msra.mxu0 0
      %1752 = vmatprep.subr.bf16.mxu0 0
      %1753 = vmatpush1.bf16.msra.mxu0 0
      %1754 = vmatprep.subr.bf16.mxu0 0
      %1755 = vmatpush1.bf16.msra.mxu0 0
      %1756 = vmatprep.subr.bf16.mxu0 0
      %1757 = vmatpush1.bf16.msra.mxu0 0
      %1758 = vmatprep.subr.bf16.mxu0 0
      %1759 = vmatpush1.bf16.msra.mxu0 0
      %1760 = vmatprep.subr.bf16.mxu0 0
      %1761 = vmatpush1.bf16.msra.mxu0 0
      %1762 = vmatprep.subr.bf16.mxu0 0
      %1763 = vmatpush1.bf16.msra.mxu0 0
      %1764 = vmatprep.subr.bf16.mxu0 0
      %1765 = vmatpush1.bf16.msra.mxu0 0
      %1766 = vmatprep.subr.bf16.mxu0 0
      %1767 = vmatpush1.bf16.msra.mxu0 0
      %1768 = vmatprep.subr.bf16.mxu0 0
      %1769 = vmatpush1.bf16.msra.mxu0 0
      %1770 = vmatprep.subr.bf16.mxu0 0
      %1771 = vmatpush1.bf16.msra.mxu0 0
      %1772 = vmatprep.subr.bf16.mxu0 0
      %1773 = vmatpush1.bf16.msra.mxu0 0
      %1774 = vmatprep.subr.bf16.mxu0 0
      %1775 = vmatpush1.bf16.msra.mxu0 0
      %1776 = vmatprep.mubr.bf16.mxu0 0
      %1777 = vmatmul.mubr.bf16.gmra.mrb[0].mxu0 %v1739
      %v1778 = vpop.f32.mrb[0].mxu0
      %v1779 = vadd.f32 0.0, %v1778
      %v1780 = vpop.f32.mrb[0].mxu0
      %v1781 = vpop.f32.mrb[0].mxu0
      %v1782 = vpop.f32.mrb[0].mxu0
      %1783 = vdwg.mxu0
      %1784 = vrot.lane.b32.xlu0 %v1199, 56
      %v1785 = vpop.permute.xlu0 %1784
      %v1787 = vsel %vm728, %v1729, 0
      %v1790 = vsel %vm732, %v1785, 0
      %1792 = vmatprep.subr.bf16.mxu0 0
      %1793 = vmatpush1.bf16.msra.mxu0 %v1790
      %1794 = vmatprep.subr.bf16.mxu0 0
      %1795 = vmatpush1.bf16.msra.mxu0 0
      %1796 = vmatprep.subr.bf16.mxu0 0
      %1797 = vmatpush1.bf16.msra.mxu0 0
      %1798 = vmatprep.subr.bf16.mxu0 0
      %1799 = vmatpush1.bf16.msra.mxu0 0
      %1800 = vmatprep.subr.bf16.mxu0 0
      %1801 = vmatpush1.bf16.msra.mxu0 0
      %1802 = vmatprep.subr.bf16.mxu0 0
      %1803 = vmatpush1.bf16.msra.mxu0 0
      %1804 = vmatprep.subr.bf16.mxu0 0
      %1805 = vmatpush1.bf16.msra.mxu0 0
      %1806 = vmatprep.subr.bf16.mxu0 0
      %1807 = vmatpush1.bf16.msra.mxu0 0
      %1808 = vmatprep.subr.bf16.mxu0 0
      %1809 = vmatpush1.bf16.msra.mxu0 0
      %1810 = vmatprep.subr.bf16.mxu0 0
      %1811 = vmatpush1.bf16.msra.mxu0 0
      %1812 = vmatprep.subr.bf16.mxu0 0
      %1813 = vmatpush1.bf16.msra.mxu0 0
      %1814 = vmatprep.subr.bf16.mxu0 0
      %1815 = vmatpush1.bf16.msra.mxu0 0
      %1816 = vmatprep.subr.bf16.mxu0 0
      %1817 = vmatpush1.bf16.msra.mxu0 0
      %1818 = vmatprep.subr.bf16.mxu0 0
      %1819 = vmatpush1.bf16.msra.mxu0 0
      %1820 = vmatprep.subr.bf16.mxu0 0
      %1821 = vmatpush1.bf16.msra.mxu0 0
      %1822 = vmatprep.subr.bf16.mxu0 0
      %1823 = vmatpush1.bf16.msra.mxu0 0
      %1824 = vmatprep.mubr.bf16.mxu0 0
      %1825 = vmatmul.mubr.bf16.gmra.mrb[0].mxu0 %v1787
      %v1826 = vpop.f32.mrb[0].mxu0
      %v1827 = vadd.f32 0.0, %v1826
      %v1828 = vpop.f32.mrb[0].mxu0
      %v1829 = vpop.f32.mrb[0].mxu0
      %v1830 = vpop.f32.mrb[0].mxu0
      %1831 = vdwg.mxu0
      %1832 = vrot.lane.b32.xlu0 %v1264, 56
      %v1833 = vpop.permute.xlu0 %1832
      %v1835 = vsel %vm728, %v1730, 0
      %v1838 = vsel %vm732, %v1833, 0
      %1840 = vmatprep.subr.bf16.mxu0 0
      %1841 = vmatpush1.bf16.msra.mxu0 %v1838
      %1842 = vmatprep.subr.bf16.mxu0 0
      %1843 = vmatpush1.bf16.msra.mxu0 0
      %1844 = vmatprep.subr.bf16.mxu0 0
      %1845 = vmatpush1.bf16.msra.mxu0 0
      %1846 = vmatprep.subr.bf16.mxu0 0
      %1847 = vmatpush1.bf16.msra.mxu0 0
      %1848 = vmatprep.subr.bf16.mxu0 0
      %1849 = vmatpush1.bf16.msra.mxu0 0
      %1850 = vmatprep.subr.bf16.mxu0 0
      %1851 = vmatpush1.bf16.msra.mxu0 0
      %1852 = vmatprep.subr.bf16.mxu0 0
      %1853 = vmatpush1.bf16.msra.mxu0 0
      %1854 = vmatprep.subr.bf16.mxu0 0
      %1855 = vmatpush1.bf16.msra.mxu0 0
      %1856 = vmatprep.subr.bf16.mxu0 0
      %1857 = vmatpush1.bf16.msra.mxu0 0
      %1858 = vmatprep.subr.bf16.mxu0 0
      %1859 = vmatpush1.bf16.msra.mxu0 0
      %1860 = vmatprep.subr.bf16.mxu0 0
      %1861 = vmatpush1.bf16.msra.mxu0 0
      %1862 = vmatprep.subr.bf16.mxu0 0
      %1863 = vmatpush1.bf16.msra.mxu0 0
      %1864 = vmatprep.subr.bf16.mxu0 0
      %1865 = vmatpush1.bf16.msra.mxu0 0
      %1866 = vmatprep.subr.bf16.mxu0 0
      %1867 = vmatpush1.bf16.msra.mxu0 0
      %1868 = vmatprep.subr.bf16.mxu0 0
      %1869 = vmatpush1.bf16.msra.mxu0 0
      %1870 = vmatprep.subr.bf16.mxu0 0
      %1871 = vmatpush1.bf16.msra.mxu0 0
      %1872 = vmatprep.mubr.bf16.mxu0 0
      %1873 = vmatmul.mubr.bf16.gmra.mrb[0].mxu0 %v1835
      %v1874 = vpop.f32.mrb[0].mxu0
      %v1875 = vadd.f32 0.0, %v1874
      %v1876 = vpop.f32.mrb[0].mxu0
      %v1877 = vpop.f32.mrb[0].mxu0
      %v1878 = vpop.f32.mrb[0].mxu0
      %1879 = vdwg.mxu0
      %1880 = vrot.lane.b32.xlu0 %v1329, 56
      %v1881 = vpop.permute.xlu0 %1880
      %v1883 = vsel %vm728, %v1731, 0
      %v1886 = vsel %vm732, %v1881, 0
      %1888 = vmatprep.subr.bf16.mxu0 0
      %1889 = vmatpush1.bf16.msra.mxu0 %v1886
      %1890 = vmatprep.subr.bf16.mxu0 0
      %1891 = vmatpush1.bf16.msra.mxu0 0
      %1892 = vmatprep.subr.bf16.mxu0 0
      %1893 = vmatpush1.bf16.msra.mxu0 0
      %1894 = vmatprep.subr.bf16.mxu0 0
      %1895 = vmatpush1.bf16.msra.mxu0 0
      %1896 = vmatprep.subr.bf16.mxu0 0
      %1897 = vmatpush1.bf16.msra.mxu0 0
      %1898 = vmatprep.subr.bf16.mxu0 0
      %1899 = vmatpush1.bf16.msra.mxu0 0
      %1900 = vmatprep.subr.bf16.mxu0 0
      %1901 = vmatpush1.bf16.msra.mxu0 0
      %1902 = vmatprep.subr.bf16.mxu0 0
      %1903 = vmatpush1.bf16.msra.mxu0 0
      %1904 = vmatprep.subr.bf16.mxu0 0
      %1905 = vmatpush1.bf16.msra.mxu0 0
      %1906 = vmatprep.subr.bf16.mxu0 0
      %1907 = vmatpush1.bf16.msra.mxu0 0
      %1908 = vmatprep.subr.bf16.mxu0 0
      %1909 = vmatpush1.bf16.msra.mxu0 0
      %1910 = vmatprep.subr.bf16.mxu0 0
      %1911 = vmatpush1.bf16.msra.mxu0 0
      %1912 = vmatprep.subr.bf16.mxu0 0
      %1913 = vmatpush1.bf16.msra.mxu0 0
      %1914 = vmatprep.subr.bf16.mxu0 0
      %1915 = vmatpush1.bf16.msra.mxu0 0
      %1916 = vmatprep.subr.bf16.mxu0 0
      %1917 = vmatpush1.bf16.msra.mxu0 0
      %1918 = vmatprep.subr.bf16.mxu0 0
      %1919 = vmatpush1.bf16.msra.mxu0 0
      %1920 = vmatprep.mubr.bf16.mxu0 0
      %1921 = vmatmul.mubr.bf16.gmra.mrb[0].mxu0 %v1883
      %v1922 = vpop.f32.mrb[0].mxu0
      %v1923 = vadd.f32 0.0, %v1922
      %v1924 = vpop.f32.mrb[0].mxu0
      %v1925 = vpop.f32.mrb[0].mxu0
      %v1926 = vpop.f32.mrb[0].mxu0
      %1927 = vdwg.mxu0
      %1928 = vrot.lane.b32.xlu0 %v1394, 56
      %v1929 = vpop.permute.xlu0 %1928
      %v1931 = vsel %vm728, %v1732, 0
      %v1934 = vsel %vm732, %v1929, 0
      %1936 = vmatprep.subr.bf16.mxu0 0
      %1937 = vmatpush1.bf16.msra.mxu0 %v1934
      %1938 = vmatprep.subr.bf16.mxu0 0
      %1939 = vmatpush1.bf16.msra.mxu0 0
      %1940 = vmatprep.subr.bf16.mxu0 0
      %1941 = vmatpush1.bf16.msra.mxu0 0
      %1942 = vmatprep.subr.bf16.mxu0 0
      %1943 = vmatpush1.bf16.msra.mxu0 0
      %1944 = vmatprep.subr.bf16.mxu0 0
      %1945 = vmatpush1.bf16.msra.mxu0 0
      %1946 = vmatprep.subr.bf16.mxu0 0
      %1947 = vmatpush1.bf16.msra.mxu0 0
      %1948 = vmatprep.subr.bf16.mxu0 0
      %1949 = vmatpush1.bf16.msra.mxu0 0
      %1950 = vmatprep.subr.bf16.mxu0 0
      %1951 = vmatpush1.bf16.msra.mxu0 0
      %1952 = vmatprep.subr.bf16.mxu0 0
      %1953 = vmatpush1.bf16.msra.mxu0 0
      %1954 = vmatprep.subr.bf16.mxu0 0
      %1955 = vmatpush1.bf16.msra.mxu0 0
      %1956 = vmatprep.subr.bf16.mxu0 0
      %1957 = vmatpush1.bf16.msra.mxu0 0
      %1958 = vmatprep.subr.bf16.mxu0 0
      %1959 = vmatpush1.bf16.msra.mxu0 0
      %1960 = vmatprep.subr.bf16.mxu0 0
      %1961 = vmatpush1.bf16.msra.mxu0 0
      %1962 = vmatprep.subr.bf16.mxu0 0
      %1963 = vmatpush1.bf16.msra.mxu0 0
      %1964 = vmatprep.subr.bf16.mxu0 0
      %1965 = vmatpush1.bf16.msra.mxu0 0
      %1966 = vmatprep.subr.bf16.mxu0 0
      %1967 = vmatpush1.bf16.msra.mxu0 0
      %1968 = vmatprep.mubr.bf16.mxu0 0
      %1969 = vmatmul.mubr.bf16.gmra.mrb[0].mxu0 %v1931
      %v1970 = vpop.f32.mrb[0].mxu0
      %v1971 = vadd.f32 0.0, %v1970
      %v1972 = vpop.f32.mrb[0].mxu0
      %v1973 = vpop.f32.mrb[0].mxu0
      %v1974 = vpop.f32.mrb[0].mxu0
      %1975 = vdwg.mxu0
      %1976 = vrot.lane.b32.xlu0 %v1459, 56
      %v1977 = vpop.permute.xlu0 %1976
      %v1979 = vsel %vm728, %v1733, 0
      %v1982 = vsel %vm732, %v1977, 0
      %1984 = vmatprep.subr.bf16.mxu0 0
      %1985 = vmatpush1.bf16.msra.mxu0 %v1982
      %1986 = vmatprep.subr.bf16.mxu0 0
      %1987 = vmatpush1.bf16.msra.mxu0 0
      %1988 = vmatprep.subr.bf16.mxu0 0
      %1989 = vmatpush1.bf16.msra.mxu0 0
      %1990 = vmatprep.subr.bf16.mxu0 0
      %1991 = vmatpush1.bf16.msra.mxu0 0
      %1992 = vmatprep.subr.bf16.mxu0 0
      %1993 = vmatpush1.bf16.msra.mxu0 0
      %1994 = vmatprep.subr.bf16.mxu0 0
      %1995 = vmatpush1.bf16.msra.mxu0 0
      %1996 = vmatprep.subr.bf16.mxu0 0
      %1997 = vmatpush1.bf16.msra.mxu0 0
      %1998 = vmatprep.subr.bf16.mxu0 0
      %1999 = vmatpush1.bf16.msra.mxu0 0
      %2000 = vmatprep.subr.bf16.mxu0 0
      %2001 = vmatpush1.bf16.msra.mxu0 0
      %2002 = vmatprep.subr.bf16.mxu0 0
      %2003 = vmatpush1.bf16.msra.mxu0 0
      %2004 = vmatprep.subr.bf16.mxu0 0
      %2005 = vmatpush1.bf16.msra.mxu0 0
      %2006 = vmatprep.subr.bf16.mxu0 0
      %2007 = vmatpush1.bf16.msra.mxu0 0
      %2008 = vmatprep.subr.bf16.mxu0 0
      %2009 = vmatpush1.bf16.msra.mxu0 0
      %2010 = vmatprep.subr.bf16.mxu0 0
      %2011 = vmatpush1.bf16.msra.mxu0 0
      %2012 = vmatprep.subr.bf16.mxu0 0
      %2013 = vmatpush1.bf16.msra.mxu0 0
      %2014 = vmatprep.subr.bf16.mxu0 0
      %2015 = vmatpush1.bf16.msra.mxu0 0
      %2016 = vmatprep.mubr.bf16.mxu0 0
      %2017 = vmatmul.mubr.bf16.gmra.mrb[0].mxu0 %v1979
      %v2018 = vpop.f32.mrb[0].mxu0
      %v2019 = vadd.f32 0.0, %v2018
      %v2020 = vpop.f32.mrb[0].mxu0
      %v2021 = vpop.f32.mrb[0].mxu0
      %v2022 = vpop.f32.mrb[0].mxu0
      %2023 = vdwg.mxu0
      %2024 = vrot.lane.b32.xlu0 %v1524, 56
      %v2025 = vpop.permute.xlu0 %2024
      %v2027 = vsel %vm728, %v1734, 0
      %v2030 = vsel %vm732, %v2025, 0
      %2032 = vmatprep.subr.bf16.mxu0 0
      %2033 = vmatpush1.bf16.msra.mxu0 %v2030
      %2034 = vmatprep.subr.bf16.mxu0 0
      %2035 = vmatpush1.bf16.msra.mxu0 0
      %2036 = vmatprep.subr.bf16.mxu0 0
      %2037 = vmatpush1.bf16.msra.mxu0 0
      %2038 = vmatprep.subr.bf16.mxu0 0
      %2039 = vmatpush1.bf16.msra.mxu0 0
      %2040 = vmatprep.subr.bf16.mxu0 0
      %2041 = vmatpush1.bf16.msra.mxu0 0
      %2042 = vmatprep.subr.bf16.mxu0 0
      %2043 = vmatpush1.bf16.msra.mxu0 0
      %2044 = vmatprep.subr.bf16.mxu0 0
      %2045 = vmatpush1.bf16.msra.mxu0 0
      %2046 = vmatprep.subr.bf16.mxu0 0
      %2047 = vmatpush1.bf16.msra.mxu0 0
      %2048 = vmatprep.subr.bf16.mxu0 0
      %2049 = vmatpush1.bf16.msra.mxu0 0
      %2050 = vmatprep.subr.bf16.mxu0 0
      %2051 = vmatpush1.bf16.msra.mxu0 0
      %2052 = vmatprep.subr.bf16.mxu0 0
      %2053 = vmatpush1.bf16.msra.mxu0 0
      %2054 = vmatprep.subr.bf16.mxu0 0
      %2055 = vmatpush1.bf16.msra.mxu0 0
      %2056 = vmatprep.subr.bf16.mxu0 0
      %2057 = vmatpush1.bf16.msra.mxu0 0
      %2058 = vmatprep.subr.bf16.mxu0 0
      %2059 = vmatpush1.bf16.msra.mxu0 0
      %2060 = vmatprep.subr.bf16.mxu0 0
      %2061 = vmatpush1.bf16.msra.mxu0 0
      %2062 = vmatprep.subr.bf16.mxu0 0
      %2063 = vmatpush1.bf16.msra.mxu0 0
      %2064 = vmatprep.mubr.bf16.mxu0 0
      %2065 = vmatmul.mubr.bf16.gmra.mrb[0].mxu0 %v2027
      %v2066 = vpop.f32.mrb[0].mxu0
      %v2067 = vadd.f32 0.0, %v2066
      %v2068 = vpop.f32.mrb[0].mxu0
      %v2069 = vpop.f32.mrb[0].mxu0
      %v2070 = vpop.f32.mrb[0].mxu0
      %2071 = vdwg.mxu0
      %2072 = vrot.lane.b32.xlu0 %v1589, 56
      %v2073 = vpop.permute.xlu0 %2072
      %v2075 = vsel %vm728, %v1735, 0
      %v2078 = vsel %vm732, %v2073, 0
      %2080 = vmatprep.subr.bf16.mxu0 0
      %2081 = vmatpush1.bf16.msra.mxu0 %v2078
      %2082 = vmatprep.subr.bf16.mxu0 0
      %2083 = vmatpush1.bf16.msra.mxu0 0
      %2084 = vmatprep.subr.bf16.mxu0 0
      %2085 = vmatpush1.bf16.msra.mxu0 0
      %2086 = vmatprep.subr.bf16.mxu0 0
      %2087 = vmatpush1.bf16.msra.mxu0 0
      %2088 = vmatprep.subr.bf16.mxu0 0
      %2089 = vmatpush1.bf16.msra.mxu0 0
      %2090 = vmatprep.subr.bf16.mxu0 0
      %2091 = vmatpush1.bf16.msra.mxu0 0
      %2092 = vmatprep.subr.bf16.mxu0 0
      %2093 = vmatpush1.bf16.msra.mxu0 0
      %2094 = vmatprep.subr.bf16.mxu0 0
      %2095 = vmatpush1.bf16.msra.mxu0 0
      %2096 = vmatprep.subr.bf16.mxu0 0
      %2097 = vmatpush1.bf16.msra.mxu0 0
      %2098 = vmatprep.subr.bf16.mxu0 0
      %2099 = vmatpush1.bf16.msra.mxu0 0
      %2100 = vmatprep.subr.bf16.mxu0 0
      %2101 = vmatpush1.bf16.msra.mxu0 0
      %2102 = vmatprep.subr.bf16.mxu0 0
      %2103 = vmatpush1.bf16.msra.mxu0 0
      %2104 = vmatprep.subr.bf16.mxu0 0
      %2105 = vmatpush1.bf16.msra.mxu0 0
      %2106 = vmatprep.subr.bf16.mxu0 0
      %2107 = vmatpush1.bf16.msra.mxu0 0
      %2108 = vmatprep.subr.bf16.mxu0 0
      %2109 = vmatpush1.bf16.msra.mxu0 0
      %2110 = vmatprep.subr.bf16.mxu0 0
      %2111 = vmatpush1.bf16.msra.mxu0 0
      %2112 = vmatprep.mubr.bf16.mxu0 0
      %2113 = vmatmul.mubr.bf16.gmra.mrb[0].mxu0 %v2075
      %v2114 = vpop.f32.mrb[0].mxu0
      %v2115 = vadd.f32 0.0, %v2114
      %v2116 = vpop.f32.mrb[0].mxu0
      %v2117 = vpop.f32.mrb[0].mxu0
      %v2118 = vpop.f32.mrb[0].mxu0
      %2119 = vdwg.mxu0
      %v2120 = vld [vmem:[%s108] sm:$0x1]
      %v2121 = vld [vmem:[%s108 + $0x1] sm:$0x1]
      %v2122 = vld [vmem:[%s108 + $0x2] sm:$0x1]
      %v2123 = vld [vmem:[%s108 + $0x3] sm:$0x1]
      %v2124 = vld [vmem:[%s108 + $0x4] sm:$0x1]
      %v2125 = vld [vmem:[%s108 + $0x5] sm:$0x1]
      %v2126 = vld [vmem:[%s108 + $0x6] sm:$0x1]
      %v2127 = vld [vmem:[%s108 + $0x7] sm:$0x1]
      %v2130 = vunpack.c.l.s4 1966171168
      %v2131 = vunpack.c.0.s8 %v2130
      %v2132 = vlaneseq
      %v2133 = vshrl.u32 %v2132, 7
      %v2134 = vsub.s32 %v2131, %v2133
      %v2135 = vrot.slane %v2120, %v2134
      %v2137 = vunpack.c.l.s4 1966171168
      %v2138 = vunpack.c.0.s8 %v2137
      %v2139 = vlaneseq
      %v2140 = vshrl.u32 %v2139, 7
      %v2141 = vsub.s32 %v2138, %v2140
      %v2142 = vrot.slane %v2135, %v2141
      %2143 = vrot.lane.b32.xlu0 %v2142, 112
      %v2144 = vpop.permute.xlu0 %2143
      %2145 = vrot.lane.b32.xlu0 %v2142, 80
      %v2146 = vpop.permute.xlu0 %2145
      %v2148 = vsel %vm141, %v2144, 0
      %v2151 = vsel %vm141, %v2146, 0
      %2153 = vmatprep.subr.bf16.mxu0 0
      %2154 = vmatpush1.bf16.xpose.msra.mxu0 %v2151
      %2155 = vmatprep.subr.bf16.mxu0 0
      %2156 = vmatpush1.bf16.xpose.msra.mxu0 0
      %2157 = vmatprep.subr.bf16.mxu0 0
      %2158 = vmatpush1.bf16.xpose.msra.mxu0 0
      %2159 = vmatprep.subr.bf16.mxu0 0
      %2160 = vmatpush1.bf16.xpose.msra.mxu0 0
      %2161 = vmatprep.subr.bf16.mxu0 0
      %2162 = vmatpush1.bf16.xpose.msra.mxu0 0
      %2163 = vmatprep.subr.bf16.mxu0 0
      %2164 = vmatpush1.bf16.xpose.msra.mxu0 0
      %2165 = vmatprep.subr.bf16.mxu0 0
      %2166 = vmatpush1.bf16.xpose.msra.mxu0 0
      %2167 = vmatprep.subr.bf16.mxu0 0
      %2168 = vmatpush1.bf16.xpose.msra.mxu0 0
      %2169 = vmatprep.subr.bf16.mxu0 0
      %2170 = vmatpush1.bf16.xpose.msra.mxu0 0
      %2171 = vmatprep.subr.bf16.mxu0 0
      %2172 = vmatpush1.bf16.xpose.msra.mxu0 0
      %2173 = vmatprep.subr.bf16.mxu0 0
      %2174 = vmatpush1.bf16.xpose.msra.mxu0 0
      %2175 = vmatprep.subr.bf16.mxu0 0
      %2176 = vmatpush1.bf16.xpose.msra.mxu0 0
      %2177 = vmatprep.subr.bf16.mxu0 0
      %2178 = vmatpush1.bf16.xpose.msra.mxu0 0
      %2179 = vmatprep.subr.bf16.mxu0 0
      %2180 = vmatpush1.bf16.xpose.msra.mxu0 0
      %2181 = vmatprep.subr.bf16.mxu0 0
      %2182 = vmatpush1.bf16.xpose.msra.mxu0 0
      %2183 = vmatprep.subr.bf16.mxu0 0
      %2184 = vmatpush1.bf16.xpose.msra.mxu0 0
      %2185 = vmatprep.mubr.bf16.mxu0 0
      %2186 = vmatmul.mubr.bf16.gmra.mrb[0].mxu0 %v2148
      %v2187 = vpop.f32.mrb[0].mxu0
      %v2188 = vadd.f32 0.0, %v2187
      %v2189 = vpop.f32.mrb[0].mxu0
      %v2190 = vpop.f32.mrb[0].mxu0
      %v2191 = vpop.f32.mrb[0].mxu0
      %2192 = vdwg.mxu0
      %v2195 = vunpack.c.l.s4 1966171168
      %v2196 = vunpack.c.0.s8 %v2195
      %v2197 = vlaneseq
      %v2198 = vshrl.u32 %v2197, 7
      %v2199 = vsub.s32 %v2196, %v2198
      %v2200 = vrot.slane %v2121, %v2199
      %v2202 = vunpack.c.l.s4 1966171168
      %v2203 = vunpack.c.0.s8 %v2202
      %v2204 = vlaneseq
      %v2205 = vshrl.u32 %v2204, 7
      %v2206 = vsub.s32 %v2203, %v2205
      %v2207 = vrot.slane %v2200, %v2206
      %2208 = vrot.lane.b32.xlu0 %v2207, 112
      %v2209 = vpop.permute.xlu0 %2208
      %2210 = vrot.lane.b32.xlu0 %v2207, 80
      %v2211 = vpop.permute.xlu0 %2210
      %v2213 = vsel %vm141, %v2209, 0
      %v2216 = vsel %vm141, %v2211, 0
      %2218 = vmatprep.subr.bf16.mxu0 0
      %2219 = vmatpush1.bf16.xpose.msra.mxu0 %v2216
      %2220 = vmatprep.subr.bf16.mxu0 0
      %2221 = vmatpush1.bf16.xpose.msra.mxu0 0
      %2222 = vmatprep.subr.bf16.mxu0 0
      %2223 = vmatpush1.bf16.xpose.msra.mxu0 0
      %2224 = vmatprep.subr.bf16.mxu0 0
      %2225 = vmatpush1.bf16.xpose.msra.mxu0 0
      %2226 = vmatprep.subr.bf16.mxu0 0
      %2227 = vmatpush1.bf16.xpose.msra.mxu0 0
      %2228 = vmatprep.subr.bf16.mxu0 0
      %2229 = vmatpush1.bf16.xpose.msra.mxu0 0
      %2230 = vmatprep.subr.bf16.mxu0 0
      %2231 = vmatpush1.bf16.xpose.msra.mxu0 0
      %2232 = vmatprep.subr.bf16.mxu0 0
      %2233 = vmatpush1.bf16.xpose.msra.mxu0 0
      %2234 = vmatprep.subr.bf16.mxu0 0
      %2235 = vmatpush1.bf16.xpose.msra.mxu0 0
      %2236 = vmatprep.subr.bf16.mxu0 0
      %2237 = vmatpush1.bf16.xpose.msra.mxu0 0
      %2238 = vmatprep.subr.bf16.mxu0 0
      %2239 = vmatpush1.bf16.xpose.msra.mxu0 0
      %2240 = vmatprep.subr.bf16.mxu0 0
      %2241 = vmatpush1.bf16.xpose.msra.mxu0 0
      %2242 = vmatprep.subr.bf16.mxu0 0
      %2243 = vmatpush1.bf16.xpose.msra.mxu0 0
      %2244 = vmatprep.subr.bf16.mxu0 0
      %2245 = vmatpush1.bf16.xpose.msra.mxu0 0
      %2246 = vmatprep.subr.bf16.mxu0 0
      %2247 = vmatpush1.bf16.xpose.msra.mxu0 0
      %2248 = vmatprep.subr.bf16.mxu0 0
      %2249 = vmatpush1.bf16.xpose.msra.mxu0 0
      %2250 = vmatprep.mubr.bf16.mxu0 0
      %2251 = vmatmul.mubr.bf16.gmra.mrb[0].mxu0 %v2213
      %v2252 = vpop.f32.mrb[0].mxu0
      %v2253 = vadd.f32 0.0, %v2252
      %v2254 = vpop.f32.mrb[0].mxu0
      %v2255 = vpop.f32.mrb[0].mxu0
      %v2256 = vpop.f32.mrb[0].mxu0
      %2257 = vdwg.mxu0
      %v2260 = vunpack.c.l.s4 1966171168
      %v2261 = vunpack.c.0.s8 %v2260
      %v2262 = vlaneseq
      %v2263 = vshrl.u32 %v2262, 7
      %v2264 = vsub.s32 %v2261, %v2263
      %v2265 = vrot.slane %v2122, %v2264
      %v2267 = vunpack.c.l.s4 1966171168
      %v2268 = vunpack.c.0.s8 %v2267
      %v2269 = vlaneseq
      %v2270 = vshrl.u32 %v2269, 7
      %v2271 = vsub.s32 %v2268, %v2270
      %v2272 = vrot.slane %v2265, %v2271
      %2273 = vrot.lane.b32.xlu0 %v2272, 112
      %v2274 = vpop.permute.xlu0 %2273
      %2275 = vrot.lane.b32.xlu0 %v2272, 80
      %v2276 = vpop.permute.xlu0 %2275
      %v2278 = vsel %vm141, %v2274, 0
      %v2281 = vsel %vm141, %v2276, 0
      %2283 = vmatprep.subr.bf16.mxu0 0
      %2284 = vmatpush1.bf16.xpose.msra.mxu0 %v2281
      %2285 = vmatprep.subr.bf16.mxu0 0
      %2286 = vmatpush1.bf16.xpose.msra.mxu0 0
      %2287 = vmatprep.subr.bf16.mxu0 0
      %2288 = vmatpush1.bf16.xpose.msra.mxu0 0
      %2289 = vmatprep.subr.bf16.mxu0 0
      %2290 = vmatpush1.bf16.xpose.msra.mxu0 0
      %2291 = vmatprep.subr.bf16.mxu0 0
      %2292 = vmatpush1.bf16.xpose.msra.mxu0 0
      %2293 = vmatprep.subr.bf16.mxu0 0
      %2294 = vmatpush1.bf16.xpose.msra.mxu0 0
      %2295 = vmatprep.subr.bf16.mxu0 0
      %2296 = vmatpush1.bf16.xpose.msra.mxu0 0
      %2297 = vmatprep.subr.bf16.mxu0 0
      %2298 = vmatpush1.bf16.xpose.msra.mxu0 0
      %2299 = vmatprep.subr.bf16.mxu0 0
      %2300 = vmatpush1.bf16.xpose.msra.mxu0 0
      %2301 = vmatprep.subr.bf16.mxu0 0
      %2302 = vmatpush1.bf16.xpose.msra.mxu0 0
      %2303 = vmatprep.subr.bf16.mxu0 0
      %2304 = vmatpush1.bf16.xpose.msra.mxu0 0
      %2305 = vmatprep.subr.bf16.mxu0 0
      %2306 = vmatpush1.bf16.xpose.msra.mxu0 0
      %2307 = vmatprep.subr.bf16.mxu0 0
      %2308 = vmatpush1.bf16.xpose.msra.mxu0 0
      %2309 = vmatprep.subr.bf16.mxu0 0
      %2310 = vmatpush1.bf16.xpose.msra.mxu0 0
      %2311 = vmatprep.subr.bf16.mxu0 0
      %2312 = vmatpush1.bf16.xpose.msra.mxu0 0
      %2313 = vmatprep.subr.bf16.mxu0 0
      %2314 = vmatpush1.bf16.xpose.msra.mxu0 0
      %2315 = vmatprep.mubr.bf16.mxu0 0
      %2316 = vmatmul.mubr.bf16.gmra.mrb[0].mxu0 %v2278
      %v2317 = vpop.f32.mrb[0].mxu0
      %v2318 = vadd.f32 0.0, %v2317
      %v2319 = vpop.f32.mrb[0].mxu0
      %v2320 = vpop.f32.mrb[0].mxu0
      %v2321 = vpop.f32.mrb[0].mxu0
      %2322 = vdwg.mxu0
      %v2325 = vunpack.c.l.s4 1966171168
      %v2326 = vunpack.c.0.s8 %v2325
      %v2327 = vlaneseq
      %v2328 = vshrl.u32 %v2327, 7
      %v2329 = vsub.s32 %v2326, %v2328
      %v2330 = vrot.slane %v2123, %v2329
      %v2332 = vunpack.c.l.s4 1966171168
      %v2333 = vunpack.c.0.s8 %v2332
      %v2334 = vlaneseq
      %v2335 = vshrl.u32 %v2334, 7
      %v2336 = vsub.s32 %v2333, %v2335
      %v2337 = vrot.slane %v2330, %v2336
      %2338 = vrot.lane.b32.xlu0 %v2337, 112
      %v2339 = vpop.permute.xlu0 %2338
      %2340 = vrot.lane.b32.xlu0 %v2337, 80
      %v2341 = vpop.permute.xlu0 %2340
      %v2343 = vsel %vm141, %v2339, 0
      %v2346 = vsel %vm141, %v2341, 0
      %2348 = vmatprep.subr.bf16.mxu0 0
      %2349 = vmatpush1.bf16.xpose.msra.mxu0 %v2346
      %2350 = vmatprep.subr.bf16.mxu0 0
      %2351 = vmatpush1.bf16.xpose.msra.mxu0 0
      %2352 = vmatprep.subr.bf16.mxu0 0
      %2353 = vmatpush1.bf16.xpose.msra.mxu0 0
      %2354 = vmatprep.subr.bf16.mxu0 0
      %2355 = vmatpush1.bf16.xpose.msra.mxu0 0
      %2356 = vmatprep.subr.bf16.mxu0 0
      %2357 = vmatpush1.bf16.xpose.msra.mxu0 0
      %2358 = vmatprep.subr.bf16.mxu0 0
      %2359 = vmatpush1.bf16.xpose.msra.mxu0 0
      %2360 = vmatprep.subr.bf16.mxu0 0
      %2361 = vmatpush1.bf16.xpose.msra.mxu0 0
      %2362 = vmatprep.subr.bf16.mxu0 0
      %2363 = vmatpush1.bf16.xpose.msra.mxu0 0
      %2364 = vmatprep.subr.bf16.mxu0 0
      %2365 = vmatpush1.bf16.xpose.msra.mxu0 0
      %2366 = vmatprep.subr.bf16.mxu0 0
      %2367 = vmatpush1.bf16.xpose.msra.mxu0 0
      %2368 = vmatprep.subr.bf16.mxu0 0
      %2369 = vmatpush1.bf16.xpose.msra.mxu0 0
      %2370 = vmatprep.subr.bf16.mxu0 0
      %2371 = vmatpush1.bf16.xpose.msra.mxu0 0
      %2372 = vmatprep.subr.bf16.mxu0 0
      %2373 = vmatpush1.bf16.xpose.msra.mxu0 0
      %2374 = vmatprep.subr.bf16.mxu0 0
      %2375 = vmatpush1.bf16.xpose.msra.mxu0 0
      %2376 = vmatprep.subr.bf16.mxu0 0
      %2377 = vmatpush1.bf16.xpose.msra.mxu0 0
      %2378 = vmatprep.subr.bf16.mxu0 0
      %2379 = vmatpush1.bf16.xpose.msra.mxu0 0
      %2380 = vmatprep.mubr.bf16.mxu0 0
      %2381 = vmatmul.mubr.bf16.gmra.mrb[0].mxu0 %v2343
      %v2382 = vpop.f32.mrb[0].mxu0
      %v2383 = vadd.f32 0.0, %v2382
      %v2384 = vpop.f32.mrb[0].mxu0
      %v2385 = vpop.f32.mrb[0].mxu0
      %v2386 = vpop.f32.mrb[0].mxu0
      %2387 = vdwg.mxu0
      %v2390 = vunpack.c.l.s4 1966171168
      %v2391 = vunpack.c.0.s8 %v2390
      %v2392 = vlaneseq
      %v2393 = vshrl.u32 %v2392, 7
      %v2394 = vsub.s32 %v2391, %v2393
      %v2395 = vrot.slane %v2124, %v2394
      %v2397 = vunpack.c.l.s4 1966171168
      %v2398 = vunpack.c.0.s8 %v2397
      %v2399 = vlaneseq
      %v2400 = vshrl.u32 %v2399, 7
      %v2401 = vsub.s32 %v2398, %v2400
      %v2402 = vrot.slane %v2395, %v2401
      %2403 = vrot.lane.b32.xlu0 %v2402, 112
      %v2404 = vpop.permute.xlu0 %2403
      %2405 = vrot.lane.b32.xlu0 %v2402, 80
      %v2406 = vpop.permute.xlu0 %2405
      %v2408 = vsel %vm141, %v2404, 0
      %v2411 = vsel %vm141, %v2406, 0
      %2413 = vmatprep.subr.bf16.mxu0 0
      %2414 = vmatpush1.bf16.xpose.msra.mxu0 %v2411
      %2415 = vmatprep.subr.bf16.mxu0 0
      %2416 = vmatpush1.bf16.xpose.msra.mxu0 0
      %2417 = vmatprep.subr.bf16.mxu0 0
      %2418 = vmatpush1.bf16.xpose.msra.mxu0 0
      %2419 = vmatprep.subr.bf16.mxu0 0
      %2420 = vmatpush1.bf16.xpose.msra.mxu0 0
      %2421 = vmatprep.subr.bf16.mxu0 0
      %2422 = vmatpush1.bf16.xpose.msra.mxu0 0
      %2423 = vmatprep.subr.bf16.mxu0 0
      %2424 = vmatpush1.bf16.xpose.msra.mxu0 0
      %2425 = vmatprep.subr.bf16.mxu0 0
      %2426 = vmatpush1.bf16.xpose.msra.mxu0 0
      %2427 = vmatprep.subr.bf16.mxu0 0
      %2428 = vmatpush1.bf16.xpose.msra.mxu0 0
      %2429 = vmatprep.subr.bf16.mxu0 0
      %2430 = vmatpush1.bf16.xpose.msra.mxu0 0
      %2431 = vmatprep.subr.bf16.mxu0 0
      %2432 = vmatpush1.bf16.xpose.msra.mxu0 0
      %2433 = vmatprep.subr.bf16.mxu0 0
      %2434 = vmatpush1.bf16.xpose.msra.mxu0 0
      %2435 = vmatprep.subr.bf16.mxu0 0
      %2436 = vmatpush1.bf16.xpose.msra.mxu0 0
      %2437 = vmatprep.subr.bf16.mxu0 0
      %2438 = vmatpush1.bf16.xpose.msra.mxu0 0
      %2439 = vmatprep.subr.bf16.mxu0 0
      %2440 = vmatpush1.bf16.xpose.msra.mxu0 0
      %2441 = vmatprep.subr.bf16.mxu0 0
      %2442 = vmatpush1.bf16.xpose.msra.mxu0 0
      %2443 = vmatprep.subr.bf16.mxu0 0
      %2444 = vmatpush1.bf16.xpose.msra.mxu0 0
      %2445 = vmatprep.mubr.bf16.mxu0 0
      %2446 = vmatmul.mubr.bf16.gmra.mrb[0].mxu0 %v2408
      %v2447 = vpop.f32.mrb[0].mxu0
      %v2448 = vadd.f32 0.0, %v2447
      %v2449 = vpop.f32.mrb[0].mxu0
      %v2450 = vpop.f32.mrb[0].mxu0
      %v2451 = vpop.f32.mrb[0].mxu0
      %2452 = vdwg.mxu0
      %v2455 = vunpack.c.l.s4 1966171168
      %v2456 = vunpack.c.0.s8 %v2455
      %v2457 = vlaneseq
      %v2458 = vshrl.u32 %v2457, 7
      %v2459 = vsub.s32 %v2456, %v2458
      %v2460 = vrot.slane %v2125, %v2459
      %v2462 = vunpack.c.l.s4 1966171168
      %v2463 = vunpack.c.0.s8 %v2462
      %v2464 = vlaneseq
      %v2465 = vshrl.u32 %v2464, 7
      %v2466 = vsub.s32 %v2463, %v2465
      %v2467 = vrot.slane %v2460, %v2466
      %2468 = vrot.lane.b32.xlu0 %v2467, 112
      %v2469 = vpop.permute.xlu0 %2468
      %2470 = vrot.lane.b32.xlu0 %v2467, 80
      %v2471 = vpop.permute.xlu0 %2470
      %v2473 = vsel %vm141, %v2469, 0
      %v2476 = vsel %vm141, %v2471, 0
      %2478 = vmatprep.subr.bf16.mxu0 0
      %2479 = vmatpush1.bf16.xpose.msra.mxu0 %v2476
      %2480 = vmatprep.subr.bf16.mxu0 0
      %2481 = vmatpush1.bf16.xpose.msra.mxu0 0
      %2482 = vmatprep.subr.bf16.mxu0 0
      %2483 = vmatpush1.bf16.xpose.msra.mxu0 0
      %2484 = vmatprep.subr.bf16.mxu0 0
      %2485 = vmatpush1.bf16.xpose.msra.mxu0 0
      %2486 = vmatprep.subr.bf16.mxu0 0
      %2487 = vmatpush1.bf16.xpose.msra.mxu0 0
      %2488 = vmatprep.subr.bf16.mxu0 0
      %2489 = vmatpush1.bf16.xpose.msra.mxu0 0
      %2490 = vmatprep.subr.bf16.mxu0 0
      %2491 = vmatpush1.bf16.xpose.msra.mxu0 0
      %2492 = vmatprep.subr.bf16.mxu0 0
      %2493 = vmatpush1.bf16.xpose.msra.mxu0 0
      %2494 = vmatprep.subr.bf16.mxu0 0
      %2495 = vmatpush1.bf16.xpose.msra.mxu0 0
      %2496 = vmatprep.subr.bf16.mxu0 0
      %2497 = vmatpush1.bf16.xpose.msra.mxu0 0
      %2498 = vmatprep.subr.bf16.mxu0 0
      %2499 = vmatpush1.bf16.xpose.msra.mxu0 0
      %2500 = vmatprep.subr.bf16.mxu0 0
      %2501 = vmatpush1.bf16.xpose.msra.mxu0 0
      %2502 = vmatprep.subr.bf16.mxu0 0
      %2503 = vmatpush1.bf16.xpose.msra.mxu0 0
      %2504 = vmatprep.subr.bf16.mxu0 0
      %2505 = vmatpush1.bf16.xpose.msra.mxu0 0
      %2506 = vmatprep.subr.bf16.mxu0 0
      %2507 = vmatpush1.bf16.xpose.msra.mxu0 0
      %2508 = vmatprep.subr.bf16.mxu0 0
      %2509 = vmatpush1.bf16.xpose.msra.mxu0 0
      %2510 = vmatprep.mubr.bf16.mxu0 0
      %2511 = vmatmul.mubr.bf16.gmra.mrb[0].mxu0 %v2473
      %v2512 = vpop.f32.mrb[0].mxu0
      %v2513 = vadd.f32 0.0, %v2512
      %v2514 = vpop.f32.mrb[0].mxu0
      %v2515 = vpop.f32.mrb[0].mxu0
      %v2516 = vpop.f32.mrb[0].mxu0
      %2517 = vdwg.mxu0
      %v2520 = vunpack.c.l.s4 1966171168
      %v2521 = vunpack.c.0.s8 %v2520
      %v2522 = vlaneseq
      %v2523 = vshrl.u32 %v2522, 7
      %v2524 = vsub.s32 %v2521, %v2523
      %v2525 = vrot.slane %v2126, %v2524
      %v2527 = vunpack.c.l.s4 1966171168
      %v2528 = vunpack.c.0.s8 %v2527
      %v2529 = vlaneseq
      %v2530 = vshrl.u32 %v2529, 7
      %v2531 = vsub.s32 %v2528, %v2530
      %v2532 = vrot.slane %v2525, %v2531
      %2533 = vrot.lane.b32.xlu0 %v2532, 112
      %v2534 = vpop.permute.xlu0 %2533
      %2535 = vrot.lane.b32.xlu0 %v2532, 80
      %v2536 = vpop.permute.xlu0 %2535
      %v2538 = vsel %vm141, %v2534, 0
      %v2541 = vsel %vm141, %v2536, 0
      %2543 = vmatprep.subr.bf16.mxu0 0
      %2544 = vmatpush1.bf16.xpose.msra.mxu0 %v2541
      %2545 = vmatprep.subr.bf16.mxu0 0
      %2546 = vmatpush1.bf16.xpose.msra.mxu0 0
      %2547 = vmatprep.subr.bf16.mxu0 0
      %2548 = vmatpush1.bf16.xpose.msra.mxu0 0
      %2549 = vmatprep.subr.bf16.mxu0 0
      %2550 = vmatpush1.bf16.xpose.msra.mxu0 0
      %2551 = vmatprep.subr.bf16.mxu0 0
      %2552 = vmatpush1.bf16.xpose.msra.mxu0 0
      %2553 = vmatprep.subr.bf16.mxu0 0
      %2554 = vmatpush1.bf16.xpose.msra.mxu0 0
      %2555 = vmatprep.subr.bf16.mxu0 0
      %2556 = vmatpush1.bf16.xpose.msra.mxu0 0
      %2557 = vmatprep.subr.bf16.mxu0 0
      %2558 = vmatpush1.bf16.xpose.msra.mxu0 0
      %2559 = vmatprep.subr.bf16.mxu0 0
      %2560 = vmatpush1.bf16.xpose.msra.mxu0 0
      %2561 = vmatprep.subr.bf16.mxu0 0
      %2562 = vmatpush1.bf16.xpose.msra.mxu0 0
      %2563 = vmatprep.subr.bf16.mxu0 0
      %2564 = vmatpush1.bf16.xpose.msra.mxu0 0
      %2565 = vmatprep.subr.bf16.mxu0 0
      %2566 = vmatpush1.bf16.xpose.msra.mxu0 0
      %2567 = vmatprep.subr.bf16.mxu0 0
      %2568 = vmatpush1.bf16.xpose.msra.mxu0 0
      %2569 = vmatprep.subr.bf16.mxu0 0
      %2570 = vmatpush1.bf16.xpose.msra.mxu0 0
      %2571 = vmatprep.subr.bf16.mxu0 0
      %2572 = vmatpush1.bf16.xpose.msra.mxu0 0
      %2573 = vmatprep.subr.bf16.mxu0 0
      %2574 = vmatpush1.bf16.xpose.msra.mxu0 0
      %2575 = vmatprep.mubr.bf16.mxu0 0
      %2576 = vmatmul.mubr.bf16.gmra.mrb[0].mxu0 %v2538
      %v2577 = vpop.f32.mrb[0].mxu0
      %v2578 = vadd.f32 0.0, %v2577
      %v2579 = vpop.f32.mrb[0].mxu0
      %v2580 = vpop.f32.mrb[0].mxu0
      %v2581 = vpop.f32.mrb[0].mxu0
      %2582 = vdwg.mxu0
      %v2585 = vunpack.c.l.s4 1966171168
      %v2586 = vunpack.c.0.s8 %v2585
      %v2587 = vlaneseq
      %v2588 = vshrl.u32 %v2587, 7
      %v2589 = vsub.s32 %v2586, %v2588
      %v2590 = vrot.slane %v2127, %v2589
      %v2592 = vunpack.c.l.s4 1966171168
      %v2593 = vunpack.c.0.s8 %v2592
      %v2594 = vlaneseq
      %v2595 = vshrl.u32 %v2594, 7
      %v2596 = vsub.s32 %v2593, %v2595
      %v2597 = vrot.slane %v2590, %v2596
      %2598 = vrot.lane.b32.xlu0 %v2597, 112
      %v2599 = vpop.permute.xlu0 %2598
      %2600 = vrot.lane.b32.xlu0 %v2597, 80
      %v2601 = vpop.permute.xlu0 %2600
      %v2603 = vsel %vm141, %v2599, 0
      %v2606 = vsel %vm141, %v2601, 0
      %2608 = vmatprep.subr.bf16.mxu0 0
      %2609 = vmatpush1.bf16.xpose.msra.mxu0 %v2606
      %2610 = vmatprep.subr.bf16.mxu0 0
      %2611 = vmatpush1.bf16.xpose.msra.mxu0 0
      %2612 = vmatprep.subr.bf16.mxu0 0
      %2613 = vmatpush1.bf16.xpose.msra.mxu0 0
      %2614 = vmatprep.subr.bf16.mxu0 0
      %2615 = vmatpush1.bf16.xpose.msra.mxu0 0
      %2616 = vmatprep.subr.bf16.mxu0 0
      %2617 = vmatpush1.bf16.xpose.msra.mxu0 0
      %2618 = vmatprep.subr.bf16.mxu0 0
      %2619 = vmatpush1.bf16.xpose.msra.mxu0 0
      %2620 = vmatprep.subr.bf16.mxu0 0
      %2621 = vmatpush1.bf16.xpose.msra.mxu0 0
      %2622 = vmatprep.subr.bf16.mxu0 0
      %2623 = vmatpush1.bf16.xpose.msra.mxu0 0
      %2624 = vmatprep.subr.bf16.mxu0 0
      %2625 = vmatpush1.bf16.xpose.msra.mxu0 0
      %2626 = vmatprep.subr.bf16.mxu0 0
      %2627 = vmatpush1.bf16.xpose.msra.mxu0 0
      %2628 = vmatprep.subr.bf16.mxu0 0
      %2629 = vmatpush1.bf16.xpose.msra.mxu0 0
      %2630 = vmatprep.subr.bf16.mxu0 0
      %2631 = vmatpush1.bf16.xpose.msra.mxu0 0
      %2632 = vmatprep.subr.bf16.mxu0 0
      %2633 = vmatpush1.bf16.xpose.msra.mxu0 0
      %2634 = vmatprep.subr.bf16.mxu0 0
      %2635 = vmatpush1.bf16.xpose.msra.mxu0 0
      %2636 = vmatprep.subr.bf16.mxu0 0
      %2637 = vmatpush1.bf16.xpose.msra.mxu0 0
      %2638 = vmatprep.subr.bf16.mxu0 0
      %2639 = vmatpush1.bf16.xpose.msra.mxu0 0
      %2640 = vmatprep.mubr.bf16.mxu0 0
      %2641 = vmatmul.mubr.bf16.gmra.mrb[0].mxu0 %v2603
      %v2642 = vpop.f32.mrb[0].mxu0
      %v2643 = vadd.f32 0.0, %v2642
      %v2644 = vpop.f32.mrb[0].mxu0
      %v2645 = vpop.f32.mrb[0].mxu0
      %v2646 = vpop.f32.mrb[0].mxu0
      %2647 = vdwg.mxu0
      %v2648 = vsel %vm629, %v2188, -inf
      %2649 = vmax.xlane.f32.xlu0 %v2648
      %v2650 = vpop.xlane.xlu0 %2649
      %v2651 = vsel %vm629, %v2253, -inf
      %2652 = vmax.xlane.f32.xlu0 %v2651
      %v2653 = vpop.xlane.xlu0 %2652
      %v2654 = vsel %vm629, %v2318, -inf
      %2655 = vmax.xlane.f32.xlu0 %v2654
      %v2656 = vpop.xlane.xlu0 %2655
      %v2657 = vsel %vm629, %v2383, -inf
      %2658 = vmax.xlane.f32.xlu0 %v2657
      %v2659 = vpop.xlane.xlu0 %2658
      %v2660 = vsel %vm629, %v2448, -inf
      %2661 = vmax.xlane.f32.xlu0 %v2660
      %v2662 = vpop.xlane.xlu0 %2661
      %v2663 = vsel %vm629, %v2513, -inf
      %2664 = vmax.xlane.f32.xlu0 %v2663
      %v2665 = vpop.xlane.xlu0 %2664
      %v2666 = vsel %vm629, %v2578, -inf
      %2667 = vmax.xlane.f32.xlu0 %v2666
      %v2668 = vpop.xlane.xlu0 %2667
      %v2669 = vsel %vm629, %v2643, -inf
      %2670 = vmax.xlane.f32.xlu0 %v2669
      %v2671 = vpop.xlane.xlu0 %2670
      %v2672 = vsub.f32 %v2188, %v2650
      %v2673 = vsub.f32 %v2253, %v2653
      %v2674 = vsub.f32 %v2318, %v2656
      %v2675 = vsub.f32 %v2383, %v2659
      %v2676 = vsub.f32 %v2448, %v2662
      %v2677 = vsub.f32 %v2513, %v2665
      %v2678 = vsub.f32 %v2578, %v2668
      %v2679 = vsub.f32 %v2643, %v2671
      %v2680 = vmul.f32 %v2672, 1.442695
      %v2681 = vpow.pop %v2680
      %v2682 = vmul.f32 %v2673, 1.442695
      %v2683 = vpow.pop %v2682
      %v2684 = vmul.f32 %v2674, 1.442695
      %v2685 = vpow.pop %v2684
      %v2686 = vmul.f32 %v2675, 1.442695
      %v2687 = vpow.pop %v2686
      %v2688 = vmul.f32 %v2676, 1.442695
      %v2689 = vpow.pop %v2688
      %v2690 = vmul.f32 %v2677, 1.442695
      %v2691 = vpow.pop %v2690
      %v2692 = vmul.f32 %v2678, 1.442695
      %v2693 = vpow.pop %v2692
      %v2694 = vmul.f32 %v2679, 1.442695
      %v2695 = vpow.pop %v2694
      %v2696 = vsel %vm629, %v2681, 0.0
      %2697 = vadd.xlane.f32.xlu0 %v2696
      %v2698 = vpop.xlane.xlu0 %2697
      %v2699 = vsel %vm629, %v2683, 0.0
      %2700 = vadd.xlane.f32.xlu0 %v2699
      %v2701 = vpop.xlane.xlu0 %2700
      %v2702 = vsel %vm629, %v2685, 0.0
      %2703 = vadd.xlane.f32.xlu0 %v2702
      %v2704 = vpop.xlane.xlu0 %2703
      %v2705 = vsel %vm629, %v2687, 0.0
      %2706 = vadd.xlane.f32.xlu0 %v2705
      %v2707 = vpop.xlane.xlu0 %2706
      %v2708 = vsel %vm629, %v2689, 0.0
      %2709 = vadd.xlane.f32.xlu0 %v2708
      %v2710 = vpop.xlane.xlu0 %2709
      %v2711 = vsel %vm629, %v2691, 0.0
      %2712 = vadd.xlane.f32.xlu0 %v2711
      %v2713 = vpop.xlane.xlu0 %2712
      %v2714 = vsel %vm629, %v2693, 0.0
      %2715 = vadd.xlane.f32.xlu0 %v2714
      %v2716 = vpop.xlane.xlu0 %2715
      %v2717 = vsel %vm629, %v2695, 0.0
      %2718 = vadd.xlane.f32.xlu0 %v2717
      %v2719 = vpop.xlane.xlu0 %2718
      %v2720 = vrcp.pop %v2698
      %v2721 = vmul.f32 %v2681, %v2720
      %v2722 = vrcp.pop %v2701
      %v2723 = vmul.f32 %v2683, %v2722
      %v2724 = vrcp.pop %v2704
      %v2725 = vmul.f32 %v2685, %v2724
      %v2726 = vrcp.pop %v2707
      %v2727 = vmul.f32 %v2687, %v2726
      %v2728 = vrcp.pop %v2710
      %v2729 = vmul.f32 %v2689, %v2728
      %v2730 = vrcp.pop %v2713
      %v2731 = vmul.f32 %v2691, %v2730
      %v2732 = vrcp.pop %v2716
      %v2733 = vmul.f32 %v2693, %v2732
      %v2734 = vrcp.pop %v2719
      %v2735 = vmul.f32 %v2695, %v2734
      %v2736 = vpack.c.bf16 %v2721, %v2721
      %v2737 = vpack.c.bf16 %v2723, %v2723
      %v2738 = vpack.c.bf16 %v2725, %v2725
      %v2739 = vpack.c.bf16 %v2727, %v2727
      %v2740 = vpack.c.bf16 %v2729, %v2729
      %v2741 = vpack.c.bf16 %v2731, %v2731
      %v2742 = vpack.c.bf16 %v2733, %v2733
      %v2743 = vpack.c.bf16 %v2735, %v2735
      %2744 = vrot.lane.b32.xlu0 %v2142, 48
      %v2745 = vpop.permute.xlu0 %2744
      %v2747 = vsel %vm728, %v2736, 0
      %v2750 = vsel %vm732, %v2745, 0
      %2752 = vmatprep.subr.bf16.mxu0 0
      %2753 = vmatpush1.bf16.msra.mxu0 %v2750
      %2754 = vmatprep.subr.bf16.mxu0 0
      %2755 = vmatpush1.bf16.msra.mxu0 0
      %2756 = vmatprep.subr.bf16.mxu0 0
      %2757 = vmatpush1.bf16.msra.mxu0 0
      %2758 = vmatprep.subr.bf16.mxu0 0
      %2759 = vmatpush1.bf16.msra.mxu0 0
      %2760 = vmatprep.subr.bf16.mxu0 0
      %2761 = vmatpush1.bf16.msra.mxu0 0
      %2762 = vmatprep.subr.bf16.mxu0 0
      %2763 = vmatpush1.bf16.msra.mxu0 0
      %2764 = vmatprep.subr.bf16.mxu0 0
      %2765 = vmatpush1.bf16.msra.mxu0 0
      %2766 = vmatprep.subr.bf16.mxu0 0
      %2767 = vmatpush1.bf16.msra.mxu0 0
      %2768 = vmatprep.subr.bf16.mxu0 0
      %2769 = vmatpush1.bf16.msra.mxu0 0
      %2770 = vmatprep.subr.bf16.mxu0 0
      %2771 = vmatpush1.bf16.msra.mxu0 0
      %2772 = vmatprep.subr.bf16.mxu0 0
      %2773 = vmatpush1.bf16.msra.mxu0 0
      %2774 = vmatprep.subr.bf16.mxu0 0
      %2775 = vmatpush1.bf16.msra.mxu0 0
      %2776 = vmatprep.subr.bf16.mxu0 0
      %2777 = vmatpush1.bf16.msra.mxu0 0
      %2778 = vmatprep.subr.bf16.mxu0 0
      %2779 = vmatpush1.bf16.msra.mxu0 0
      %2780 = vmatprep.subr.bf16.mxu0 0
      %2781 = vmatpush1.bf16.msra.mxu0 0
      %2782 = vmatprep.subr.bf16.mxu0 0
      %2783 = vmatpush1.bf16.msra.mxu0 0
      %2784 = vmatprep.mubr.bf16.mxu0 0
      %2785 = vmatmul.mubr.bf16.gmra.mrb[0].mxu0 %v2747
      %v2786 = vpop.f32.mrb[0].mxu0
      %v2787 = vadd.f32 0.0, %v2786
      %v2788 = vpop.f32.mrb[0].mxu0
      %v2789 = vpop.f32.mrb[0].mxu0
      %v2790 = vpop.f32.mrb[0].mxu0
      %2791 = vdwg.mxu0
      %2792 = vrot.lane.b32.xlu0 %v2207, 48
      %v2793 = vpop.permute.xlu0 %2792
      %v2795 = vsel %vm728, %v2737, 0
      %v2798 = vsel %vm732, %v2793, 0
      %2800 = vmatprep.subr.bf16.mxu0 0
      %2801 = vmatpush1.bf16.msra.mxu0 %v2798
      %2802 = vmatprep.subr.bf16.mxu0 0
      %2803 = vmatpush1.bf16.msra.mxu0 0
      %2804 = vmatprep.subr.bf16.mxu0 0
      %2805 = vmatpush1.bf16.msra.mxu0 0
      %2806 = vmatprep.subr.bf16.mxu0 0
      %2807 = vmatpush1.bf16.msra.mxu0 0
      %2808 = vmatprep.subr.bf16.mxu0 0
      %2809 = vmatpush1.bf16.msra.mxu0 0
      %2810 = vmatprep.subr.bf16.mxu0 0
      %2811 = vmatpush1.bf16.msra.mxu0 0
      %2812 = vmatprep.subr.bf16.mxu0 0
      %2813 = vmatpush1.bf16.msra.mxu0 0
      %2814 = vmatprep.subr.bf16.mxu0 0
      %2815 = vmatpush1.bf16.msra.mxu0 0
      %2816 = vmatprep.subr.bf16.mxu0 0
      %2817 = vmatpush1.bf16.msra.mxu0 0
      %2818 = vmatprep.subr.bf16.mxu0 0
      %2819 = vmatpush1.bf16.msra.mxu0 0
      %2820 = vmatprep.subr.bf16.mxu0 0
      %2821 = vmatpush1.bf16.msra.mxu0 0
      %2822 = vmatprep.subr.bf16.mxu0 0
      %2823 = vmatpush1.bf16.msra.mxu0 0
      %2824 = vmatprep.subr.bf16.mxu0 0
      %2825 = vmatpush1.bf16.msra.mxu0 0
      %2826 = vmatprep.subr.bf16.mxu0 0
      %2827 = vmatpush1.bf16.msra.mxu0 0
      %2828 = vmatprep.subr.bf16.mxu0 0
      %2829 = vmatpush1.bf16.msra.mxu0 0
      %2830 = vmatprep.subr.bf16.mxu0 0
      %2831 = vmatpush1.bf16.msra.mxu0 0
      %2832 = vmatprep.mubr.bf16.mxu0 0
      %2833 = vmatmul.mubr.bf16.gmra.mrb[0].mxu0 %v2795
      %v2834 = vpop.f32.mrb[0].mxu0
      %v2835 = vadd.f32 0.0, %v2834
      %v2836 = vpop.f32.mrb[0].mxu0
      %v2837 = vpop.f32.mrb[0].mxu0
      %v2838 = vpop.f32.mrb[0].mxu0
      %2839 = vdwg.mxu0
      %2840 = vrot.lane.b32.xlu0 %v2272, 48
      %v2841 = vpop.permute.xlu0 %2840
      %v2843 = vsel %vm728, %v2738, 0
      %v2846 = vsel %vm732, %v2841, 0
      %2848 = vmatprep.subr.bf16.mxu0 0
      %2849 = vmatpush1.bf16.msra.mxu0 %v2846
      %2850 = vmatprep.subr.bf16.mxu0 0
      %2851 = vmatpush1.bf16.msra.mxu0 0
      %2852 = vmatprep.subr.bf16.mxu0 0
      %2853 = vmatpush1.bf16.msra.mxu0 0
      %2854 = vmatprep.subr.bf16.mxu0 0
      %2855 = vmatpush1.bf16.msra.mxu0 0
      %2856 = vmatprep.subr.bf16.mxu0 0
      %2857 = vmatpush1.bf16.msra.mxu0 0
      %2858 = vmatprep.subr.bf16.mxu0 0
      %2859 = vmatpush1.bf16.msra.mxu0 0
      %2860 = vmatprep.subr.bf16.mxu0 0
      %2861 = vmatpush1.bf16.msra.mxu0 0
      %2862 = vmatprep.subr.bf16.mxu0 0
      %2863 = vmatpush1.bf16.msra.mxu0 0
      %2864 = vmatprep.subr.bf16.mxu0 0
      %2865 = vmatpush1.bf16.msra.mxu0 0
      %2866 = vmatprep.subr.bf16.mxu0 0
      %2867 = vmatpush1.bf16.msra.mxu0 0
      %2868 = vmatprep.subr.bf16.mxu0 0
      %2869 = vmatpush1.bf16.msra.mxu0 0
      %2870 = vmatprep.subr.bf16.mxu0 0
      %2871 = vmatpush1.bf16.msra.mxu0 0
      %2872 = vmatprep.subr.bf16.mxu0 0
      %2873 = vmatpush1.bf16.msra.mxu0 0
      %2874 = vmatprep.subr.bf16.mxu0 0
      %2875 = vmatpush1.bf16.msra.mxu0 0
      %2876 = vmatprep.subr.bf16.mxu0 0
      %2877 = vmatpush1.bf16.msra.mxu0 0
      %2878 = vmatprep.subr.bf16.mxu0 0
      %2879 = vmatpush1.bf16.msra.mxu0 0
      %2880 = vmatprep.mubr.bf16.mxu0 0
      %2881 = vmatmul.mubr.bf16.gmra.mrb[0].mxu0 %v2843
      %v2882 = vpop.f32.mrb[0].mxu0
      %v2883 = vadd.f32 0.0, %v2882
      %v2884 = vpop.f32.mrb[0].mxu0
      %v2885 = vpop.f32.mrb[0].mxu0
      %v2886 = vpop.f32.mrb[0].mxu0
      %2887 = vdwg.mxu0
      %2888 = vrot.lane.b32.xlu0 %v2337, 48
      %v2889 = vpop.permute.xlu0 %2888
      %v2891 = vsel %vm728, %v2739, 0
      %v2894 = vsel %vm732, %v2889, 0
      %2896 = vmatprep.subr.bf16.mxu0 0
      %2897 = vmatpush1.bf16.msra.mxu0 %v2894
      %2898 = vmatprep.subr.bf16.mxu0 0
      %2899 = vmatpush1.bf16.msra.mxu0 0
      %2900 = vmatprep.subr.bf16.mxu0 0
      %2901 = vmatpush1.bf16.msra.mxu0 0
      %2902 = vmatprep.subr.bf16.mxu0 0
      %2903 = vmatpush1.bf16.msra.mxu0 0
      %2904 = vmatprep.subr.bf16.mxu0 0
      %2905 = vmatpush1.bf16.msra.mxu0 0
      %2906 = vmatprep.subr.bf16.mxu0 0
      %2907 = vmatpush1.bf16.msra.mxu0 0
      %2908 = vmatprep.subr.bf16.mxu0 0
      %2909 = vmatpush1.bf16.msra.mxu0 0
      %2910 = vmatprep.subr.bf16.mxu0 0
      %2911 = vmatpush1.bf16.msra.mxu0 0
      %2912 = vmatprep.subr.bf16.mxu0 0
      %2913 = vmatpush1.bf16.msra.mxu0 0
      %2914 = vmatprep.subr.bf16.mxu0 0
      %2915 = vmatpush1.bf16.msra.mxu0 0
      %2916 = vmatprep.subr.bf16.mxu0 0
      %2917 = vmatpush1.bf16.msra.mxu0 0
      %2918 = vmatprep.subr.bf16.mxu0 0
      %2919 = vmatpush1.bf16.msra.mxu0 0
      %2920 = vmatprep.subr.bf16.mxu0 0
      %2921 = vmatpush1.bf16.msra.mxu0 0
      %2922 = vmatprep.subr.bf16.mxu0 0
      %2923 = vmatpush1.bf16.msra.mxu0 0
      %2924 = vmatprep.subr.bf16.mxu0 0
      %2925 = vmatpush1.bf16.msra.mxu0 0
      %2926 = vmatprep.subr.bf16.mxu0 0
      %2927 = vmatpush1.bf16.msra.mxu0 0
      %2928 = vmatprep.mubr.bf16.mxu0 0
      %2929 = vmatmul.mubr.bf16.gmra.mrb[0].mxu0 %v2891
      %v2930 = vpop.f32.mrb[0].mxu0
      %v2931 = vadd.f32 0.0, %v2930
      %v2932 = vpop.f32.mrb[0].mxu0
      %v2933 = vpop.f32.mrb[0].mxu0
      %v2934 = vpop.f32.mrb[0].mxu0
      %2935 = vdwg.mxu0
      %2936 = vrot.lane.b32.xlu0 %v2402, 48
      %v2937 = vpop.permute.xlu0 %2936
      %v2939 = vsel %vm728, %v2740, 0
      %v2942 = vsel %vm732, %v2937, 0
      %2944 = vmatprep.subr.bf16.mxu0 0
      %2945 = vmatpush1.bf16.msra.mxu0 %v2942
      %2946 = vmatprep.subr.bf16.mxu0 0
      %2947 = vmatpush1.bf16.msra.mxu0 0
      %2948 = vmatprep.subr.bf16.mxu0 0
      %2949 = vmatpush1.bf16.msra.mxu0 0
      %2950 = vmatprep.subr.bf16.mxu0 0
      %2951 = vmatpush1.bf16.msra.mxu0 0
      %2952 = vmatprep.subr.bf16.mxu0 0
      %2953 = vmatpush1.bf16.msra.mxu0 0
      %2954 = vmatprep.subr.bf16.mxu0 0
      %2955 = vmatpush1.bf16.msra.mxu0 0
      %2956 = vmatprep.subr.bf16.mxu0 0
      %2957 = vmatpush1.bf16.msra.mxu0 0
      %2958 = vmatprep.subr.bf16.mxu0 0
      %2959 = vmatpush1.bf16.msra.mxu0 0
      %2960 = vmatprep.subr.bf16.mxu0 0
      %2961 = vmatpush1.bf16.msra.mxu0 0
      %2962 = vmatprep.subr.bf16.mxu0 0
      %2963 = vmatpush1.bf16.msra.mxu0 0
      %2964 = vmatprep.subr.bf16.mxu0 0
      %2965 = vmatpush1.bf16.msra.mxu0 0
      %2966 = vmatprep.subr.bf16.mxu0 0
      %2967 = vmatpush1.bf16.msra.mxu0 0
      %2968 = vmatprep.subr.bf16.mxu0 0
      %2969 = vmatpush1.bf16.msra.mxu0 0
      %2970 = vmatprep.subr.bf16.mxu0 0
      %2971 = vmatpush1.bf16.msra.mxu0 0
      %2972 = vmatprep.subr.bf16.mxu0 0
      %2973 = vmatpush1.bf16.msra.mxu0 0
      %2974 = vmatprep.subr.bf16.mxu0 0
      %2975 = vmatpush1.bf16.msra.mxu0 0
      %2976 = vmatprep.mubr.bf16.mxu0 0
      %2977 = vmatmul.mubr.bf16.gmra.mrb[0].mxu0 %v2939
      %v2978 = vpop.f32.mrb[0].mxu0
      %v2979 = vadd.f32 0.0, %v2978
      %v2980 = vpop.f32.mrb[0].mxu0
      %v2981 = vpop.f32.mrb[0].mxu0
      %v2982 = vpop.f32.mrb[0].mxu0
      %2983 = vdwg.mxu0
      %2984 = vrot.lane.b32.xlu0 %v2467, 48
      %v2985 = vpop.permute.xlu0 %2984
      %v2987 = vsel %vm728, %v2741, 0
      %v2990 = vsel %vm732, %v2985, 0
      %2992 = vmatprep.subr.bf16.mxu0 0
      %2993 = vmatpush1.bf16.msra.mxu0 %v2990
      %2994 = vmatprep.subr.bf16.mxu0 0
      %2995 = vmatpush1.bf16.msra.mxu0 0
      %2996 = vmatprep.subr.bf16.mxu0 0
      %2997 = vmatpush1.bf16.msra.mxu0 0
      %2998 = vmatprep.subr.bf16.mxu0 0
      %2999 = vmatpush1.bf16.msra.mxu0 0
      %3000 = vmatprep.subr.bf16.mxu0 0
      %3001 = vmatpush1.bf16.msra.mxu0 0
      %3002 = vmatprep.subr.bf16.mxu0 0
      %3003 = vmatpush1.bf16.msra.mxu0 0
      %3004 = vmatprep.subr.bf16.mxu0 0
      %3005 = vmatpush1.bf16.msra.mxu0 0
      %3006 = vmatprep.subr.bf16.mxu0 0
      %3007 = vmatpush1.bf16.msra.mxu0 0
      %3008 = vmatprep.subr.bf16.mxu0 0
      %3009 = vmatpush1.bf16.msra.mxu0 0
      %3010 = vmatprep.subr.bf16.mxu0 0
      %3011 = vmatpush1.bf16.msra.mxu0 0
      %3012 = vmatprep.subr.bf16.mxu0 0
      %3013 = vmatpush1.bf16.msra.mxu0 0
      %3014 = vmatprep.subr.bf16.mxu0 0
      %3015 = vmatpush1.bf16.msra.mxu0 0
      %3016 = vmatprep.subr.bf16.mxu0 0
      %3017 = vmatpush1.bf16.msra.mxu0 0
      %3018 = vmatprep.subr.bf16.mxu0 0
      %3019 = vmatpush1.bf16.msra.mxu0 0
      %3020 = vmatprep.subr.bf16.mxu0 0
      %3021 = vmatpush1.bf16.msra.mxu0 0
      %3022 = vmatprep.subr.bf16.mxu0 0
      %3023 = vmatpush1.bf16.msra.mxu0 0
      %3024 = vmatprep.mubr.bf16.mxu0 0
      %3025 = vmatmul.mubr.bf16.gmra.mrb[0].mxu0 %v2987
      %v3026 = vpop.f32.mrb[0].mxu0
      %v3027 = vadd.f32 0.0, %v3026
      %v3028 = vpop.f32.mrb[0].mxu0
      %v3029 = vpop.f32.mrb[0].mxu0
      %v3030 = vpop.f32.mrb[0].mxu0
      %3031 = vdwg.mxu0
      %3032 = vrot.lane.b32.xlu0 %v2532, 48
      %v3033 = vpop.permute.xlu0 %3032
      %v3035 = vsel %vm728, %v2742, 0
      %v3038 = vsel %vm732, %v3033, 0
      %3040 = vmatprep.subr.bf16.mxu0 0
      %3041 = vmatpush1.bf16.msra.mxu0 %v3038
      %3042 = vmatprep.subr.bf16.mxu0 0
      %3043 = vmatpush1.bf16.msra.mxu0 0
      %3044 = vmatprep.subr.bf16.mxu0 0
      %3045 = vmatpush1.bf16.msra.mxu0 0
      %3046 = vmatprep.subr.bf16.mxu0 0
      %3047 = vmatpush1.bf16.msra.mxu0 0
      %3048 = vmatprep.subr.bf16.mxu0 0
      %3049 = vmatpush1.bf16.msra.mxu0 0
      %3050 = vmatprep.subr.bf16.mxu0 0
      %3051 = vmatpush1.bf16.msra.mxu0 0
      %3052 = vmatprep.subr.bf16.mxu0 0
      %3053 = vmatpush1.bf16.msra.mxu0 0
      %3054 = vmatprep.subr.bf16.mxu0 0
      %3055 = vmatpush1.bf16.msra.mxu0 0
      %3056 = vmatprep.subr.bf16.mxu0 0
      %3057 = vmatpush1.bf16.msra.mxu0 0
      %3058 = vmatprep.subr.bf16.mxu0 0
      %3059 = vmatpush1.bf16.msra.mxu0 0
      %3060 = vmatprep.subr.bf16.mxu0 0
      %3061 = vmatpush1.bf16.msra.mxu0 0
      %3062 = vmatprep.subr.bf16.mxu0 0
      %3063 = vmatpush1.bf16.msra.mxu0 0
      %3064 = vmatprep.subr.bf16.mxu0 0
      %3065 = vmatpush1.bf16.msra.mxu0 0
      %3066 = vmatprep.subr.bf16.mxu0 0
      %3067 = vmatpush1.bf16.msra.mxu0 0
      %3068 = vmatprep.subr.bf16.mxu0 0
      %3069 = vmatpush1.bf16.msra.mxu0 0
      %3070 = vmatprep.subr.bf16.mxu0 0
      %3071 = vmatpush1.bf16.msra.mxu0 0
      %3072 = vmatprep.mubr.bf16.mxu0 0
      %3073 = vmatmul.mubr.bf16.gmra.mrb[0].mxu0 %v3035
      %v3074 = vpop.f32.mrb[0].mxu0
      %v3075 = vadd.f32 0.0, %v3074
      %v3076 = vpop.f32.mrb[0].mxu0
      %v3077 = vpop.f32.mrb[0].mxu0
      %v3078 = vpop.f32.mrb[0].mxu0
      %3079 = vdwg.mxu0
      %3080 = vrot.lane.b32.xlu0 %v2597, 48
      %v3081 = vpop.permute.xlu0 %3080
      %v3083 = vsel %vm728, %v2743, 0
      %v3086 = vsel %vm732, %v3081, 0
      %3088 = vmatprep.subr.bf16.mxu0 0
      %3089 = vmatpush1.bf16.msra.mxu0 %v3086
      %3090 = vmatprep.subr.bf16.mxu0 0
      %3091 = vmatpush1.bf16.msra.mxu0 0
      %3092 = vmatprep.subr.bf16.mxu0 0
      %3093 = vmatpush1.bf16.msra.mxu0 0
      %3094 = vmatprep.subr.bf16.mxu0 0
      %3095 = vmatpush1.bf16.msra.mxu0 0
      %3096 = vmatprep.subr.bf16.mxu0 0
      %3097 = vmatpush1.bf16.msra.mxu0 0
      %3098 = vmatprep.subr.bf16.mxu0 0
      %3099 = vmatpush1.bf16.msra.mxu0 0
      %3100 = vmatprep.subr.bf16.mxu0 0
      %3101 = vmatpush1.bf16.msra.mxu0 0
      %3102 = vmatprep.subr.bf16.mxu0 0
      %3103 = vmatpush1.bf16.msra.mxu0 0
      %3104 = vmatprep.subr.bf16.mxu0 0
      %3105 = vmatpush1.bf16.msra.mxu0 0
      %3106 = vmatprep.subr.bf16.mxu0 0
      %3107 = vmatpush1.bf16.msra.mxu0 0
      %3108 = vmatprep.subr.bf16.mxu0 0
      %3109 = vmatpush1.bf16.msra.mxu0 0
      %3110 = vmatprep.subr.bf16.mxu0 0
      %3111 = vmatpush1.bf16.msra.mxu0 0
      %3112 = vmatprep.subr.bf16.mxu0 0
      %3113 = vmatpush1.bf16.msra.mxu0 0
      %3114 = vmatprep.subr.bf16.mxu0 0
      %3115 = vmatpush1.bf16.msra.mxu0 0
      %3116 = vmatprep.subr.bf16.mxu0 0
      %3117 = vmatpush1.bf16.msra.mxu0 0
      %3118 = vmatprep.subr.bf16.mxu0 0
      %3119 = vmatpush1.bf16.msra.mxu0 0
      %3120 = vmatprep.mubr.bf16.mxu0 0
      %3121 = vmatmul.mubr.bf16.gmra.mrb[0].mxu0 %v3083
      %v3122 = vpop.f32.mrb[0].mxu0
      %v3123 = vadd.f32 0.0, %v3122
      %v3124 = vpop.f32.mrb[0].mxu0
      %v3125 = vpop.f32.mrb[0].mxu0
      %v3126 = vpop.f32.mrb[0].mxu0
      %3127 = vdwg.mxu0
      %v3128 = vld [vmem:[%s108] sm:$0x1]
      %v3129 = vld [vmem:[%s108 + $0x1] sm:$0x1]
      %v3130 = vld [vmem:[%s108 + $0x2] sm:$0x1]
      %v3131 = vld [vmem:[%s108 + $0x3] sm:$0x1]
      %v3132 = vld [vmem:[%s108 + $0x4] sm:$0x1]
      %v3133 = vld [vmem:[%s108 + $0x5] sm:$0x1]
      %v3134 = vld [vmem:[%s108 + $0x6] sm:$0x1]
      %v3135 = vld [vmem:[%s108 + $0x7] sm:$0x1]
      %v3138 = vunpack.c.l.s4 1966171168
      %v3139 = vunpack.c.0.s8 %v3138
      %v3140 = vlaneseq
      %v3141 = vshrl.u32 %v3140, 7
      %v3142 = vsub.s32 %v3139, %v3141
      %v3143 = vrot.slane %v3128, %v3142
      %v3145 = vunpack.c.l.s4 1966171168
      %v3146 = vunpack.c.0.s8 %v3145
      %v3147 = vlaneseq
      %v3148 = vshrl.u32 %v3147, 7
      %v3149 = vsub.s32 %v3146, %v3148
      %v3150 = vrot.slane %v3143, %v3149
      %3151 = vrot.lane.b32.xlu0 %v3150, 104
      %v3152 = vpop.permute.xlu0 %3151
      %3153 = vrot.lane.b32.xlu0 %v3150, 72
      %v3154 = vpop.permute.xlu0 %3153
      %v3156 = vsel %vm141, %v3152, 0
      %v3159 = vsel %vm141, %v3154, 0
      %3161 = vmatprep.subr.bf16.mxu0 0
      %3162 = vmatpush1.bf16.xpose.msra.mxu0 %v3159
      %3163 = vmatprep.subr.bf16.mxu0 0
      %3164 = vmatpush1.bf16.xpose.msra.mxu0 0
      %3165 = vmatprep.subr.bf16.mxu0 0
      %3166 = vmatpush1.bf16.xpose.msra.mxu0 0
      %3167 = vmatprep.subr.bf16.mxu0 0
      %3168 = vmatpush1.bf16.xpose.msra.mxu0 0
      %3169 = vmatprep.subr.bf16.mxu0 0
      %3170 = vmatpush1.bf16.xpose.msra.mxu0 0
      %3171 = vmatprep.subr.bf16.mxu0 0
      %3172 = vmatpush1.bf16.xpose.msra.mxu0 0
      %3173 = vmatprep.subr.bf16.mxu0 0
      %3174 = vmatpush1.bf16.xpose.msra.mxu0 0
      %3175 = vmatprep.subr.bf16.mxu0 0
      %3176 = vmatpush1.bf16.xpose.msra.mxu0 0
      %3177 = vmatprep.subr.bf16.mxu0 0
      %3178 = vmatpush1.bf16.xpose.msra.mxu0 0
      %3179 = vmatprep.subr.bf16.mxu0 0
      %3180 = vmatpush1.bf16.xpose.msra.mxu0 0
      %3181 = vmatprep.subr.bf16.mxu0 0
      %3182 = vmatpush1.bf16.xpose.msra.mxu0 0
      %3183 = vmatprep.subr.bf16.mxu0 0
      %3184 = vmatpush1.bf16.xpose.msra.mxu0 0
      %3185 = vmatprep.subr.bf16.mxu0 0
      %3186 = vmatpush1.bf16.xpose.msra.mxu0 0
      %3187 = vmatprep.subr.bf16.mxu0 0
      %3188 = vmatpush1.bf16.xpose.msra.mxu0 0
      %3189 = vmatprep.subr.bf16.mxu0 0
      %3190 = vmatpush1.bf16.xpose.msra.mxu0 0
      %3191 = vmatprep.subr.bf16.mxu0 0
      %3192 = vmatpush1.bf16.xpose.msra.mxu0 0
      %3193 = vmatprep.mubr.bf16.mxu0 0
      %3194 = vmatmul.mubr.bf16.gmra.mrb[0].mxu0 %v3156
      %v3195 = vpop.f32.mrb[0].mxu0
      %v3196 = vadd.f32 0.0, %v3195
      %v3197 = vpop.f32.mrb[0].mxu0
      %v3198 = vpop.f32.mrb[0].mxu0
      %v3199 = vpop.f32.mrb[0].mxu0
      %3200 = vdwg.mxu0
      %v3203 = vunpack.c.l.s4 1966171168
      %v3204 = vunpack.c.0.s8 %v3203
      %v3205 = vlaneseq
      %v3206 = vshrl.u32 %v3205, 7
      %v3207 = vsub.s32 %v3204, %v3206
      %v3208 = vrot.slane %v3129, %v3207
      %v3210 = vunpack.c.l.s4 1966171168
      %v3211 = vunpack.c.0.s8 %v3210
      %v3212 = vlaneseq
      %v3213 = vshrl.u32 %v3212, 7
      %v3214 = vsub.s32 %v3211, %v3213
      %v3215 = vrot.slane %v3208, %v3214
      %3216 = vrot.lane.b32.xlu0 %v3215, 104
      %v3217 = vpop.permute.xlu0 %3216
      %3218 = vrot.lane.b32.xlu0 %v3215, 72
      %v3219 = vpop.permute.xlu0 %3218
      %v3221 = vsel %vm141, %v3217, 0
      %v3224 = vsel %vm141, %v3219, 0
      %3226 = vmatprep.subr.bf16.mxu0 0
      %3227 = vmatpush1.bf16.xpose.msra.mxu0 %v3224
      %3228 = vmatprep.subr.bf16.mxu0 0
      %3229 = vmatpush1.bf16.xpose.msra.mxu0 0
      %3230 = vmatprep.subr.bf16.mxu0 0
      %3231 = vmatpush1.bf16.xpose.msra.mxu0 0
      %3232 = vmatprep.subr.bf16.mxu0 0
      %3233 = vmatpush1.bf16.xpose.msra.mxu0 0
      %3234 = vmatprep.subr.bf16.mxu0 0
      %3235 = vmatpush1.bf16.xpose.msra.mxu0 0
      %3236 = vmatprep.subr.bf16.mxu0 0
      %3237 = vmatpush1.bf16.xpose.msra.mxu0 0
      %3238 = vmatprep.subr.bf16.mxu0 0
      %3239 = vmatpush1.bf16.xpose.msra.mxu0 0
      %3240 = vmatprep.subr.bf16.mxu0 0
      %3241 = vmatpush1.bf16.xpose.msra.mxu0 0
      %3242 = vmatprep.subr.bf16.mxu0 0
      %3243 = vmatpush1.bf16.xpose.msra.mxu0 0
      %3244 = vmatprep.subr.bf16.mxu0 0
      %3245 = vmatpush1.bf16.xpose.msra.mxu0 0
      %3246 = vmatprep.subr.bf16.mxu0 0
      %3247 = vmatpush1.bf16.xpose.msra.mxu0 0
      %3248 = vmatprep.subr.bf16.mxu0 0
      %3249 = vmatpush1.bf16.xpose.msra.mxu0 0
      %3250 = vmatprep.subr.bf16.mxu0 0
      %3251 = vmatpush1.bf16.xpose.msra.mxu0 0
      %3252 = vmatprep.subr.bf16.mxu0 0
      %3253 = vmatpush1.bf16.xpose.msra.mxu0 0
      %3254 = vmatprep.subr.bf16.mxu0 0
      %3255 = vmatpush1.bf16.xpose.msra.mxu0 0
      %3256 = vmatprep.subr.bf16.mxu0 0
      %3257 = vmatpush1.bf16.xpose.msra.mxu0 0
      %3258 = vmatprep.mubr.bf16.mxu0 0
      %3259 = vmatmul.mubr.bf16.gmra.mrb[0].mxu0 %v3221
      %v3260 = vpop.f32.mrb[0].mxu0
      %v3261 = vadd.f32 0.0, %v3260
      %v3262 = vpop.f32.mrb[0].mxu0
      %v3263 = vpop.f32.mrb[0].mxu0
      %v3264 = vpop.f32.mrb[0].mxu0
      %3265 = vdwg.mxu0
      %v3268 = vunpack.c.l.s4 1966171168
      %v3269 = vunpack.c.0.s8 %v3268
      %v3270 = vlaneseq
      %v3271 = vshrl.u32 %v3270, 7
      %v3272 = vsub.s32 %v3269, %v3271
      %v3273 = vrot.slane %v3130, %v3272
      %v3275 = vunpack.c.l.s4 1966171168
      %v3276 = vunpack.c.0.s8 %v3275
      %v3277 = vlaneseq
      %v3278 = vshrl.u32 %v3277, 7
      %v3279 = vsub.s32 %v3276, %v3278
      %v3280 = vrot.slane %v3273, %v3279
      %3281 = vrot.lane.b32.xlu0 %v3280, 104
      %v3282 = vpop.permute.xlu0 %3281
      %3283 = vrot.lane.b32.xlu0 %v3280, 72
      %v3284 = vpop.permute.xlu0 %3283
      %v3286 = vsel %vm141, %v3282, 0
      %v3289 = vsel %vm141, %v3284, 0
      %3291 = vmatprep.subr.bf16.mxu0 0
      %3292 = vmatpush1.bf16.xpose.msra.mxu0 %v3289
      %3293 = vmatprep.subr.bf16.mxu0 0
      %3294 = vmatpush1.bf16.xpose.msra.mxu0 0
      %3295 = vmatprep.subr.bf16.mxu0 0
      %3296 = vmatpush1.bf16.xpose.msra.mxu0 0
      %3297 = vmatprep.subr.bf16.mxu0 0
      %3298 = vmatpush1.bf16.xpose.msra.mxu0 0
      %3299 = vmatprep.subr.bf16.mxu0 0
      %3300 = vmatpush1.bf16.xpose.msra.mxu0 0
      %3301 = vmatprep.subr.bf16.mxu0 0
      %3302 = vmatpush1.bf16.xpose.msra.mxu0 0
      %3303 = vmatprep.subr.bf16.mxu0 0
      %3304 = vmatpush1.bf16.xpose.msra.mxu0 0
      %3305 = vmatprep.subr.bf16.mxu0 0
      %3306 = vmatpush1.bf16.xpose.msra.mxu0 0
      %3307 = vmatprep.subr.bf16.mxu0 0
      %3308 = vmatpush1.bf16.xpose.msra.mxu0 0
      %3309 = vmatprep.subr.bf16.mxu0 0
      %3310 = vmatpush1.bf16.xpose.msra.mxu0 0
      %3311 = vmatprep.subr.bf16.mxu0 0
      %3312 = vmatpush1.bf16.xpose.msra.mxu0 0
      %3313 = vmatprep.subr.bf16.mxu0 0
      %3314 = vmatpush1.bf16.xpose.msra.mxu0 0
      %3315 = vmatprep.subr.bf16.mxu0 0
      %3316 = vmatpush1.bf16.xpose.msra.mxu0 0
      %3317 = vmatprep.subr.bf16.mxu0 0
      %3318 = vmatpush1.bf16.xpose.msra.mxu0 0
      %3319 = vmatprep.subr.bf16.mxu0 0
      %3320 = vmatpush1.bf16.xpose.msra.mxu0 0
      %3321 = vmatprep.subr.bf16.mxu0 0
      %3322 = vmatpush1.bf16.xpose.msra.mxu0 0
      %3323 = vmatprep.mubr.bf16.mxu0 0
      %3324 = vmatmul.mubr.bf16.gmra.mrb[0].mxu0 %v3286
      %v3325 = vpop.f32.mrb[0].mxu0
      %v3326 = vadd.f32 0.0, %v3325
      %v3327 = vpop.f32.mrb[0].mxu0
      %v3328 = vpop.f32.mrb[0].mxu0
      %v3329 = vpop.f32.mrb[0].mxu0
      %3330 = vdwg.mxu0
      %v3333 = vunpack.c.l.s4 1966171168
      %v3334 = vunpack.c.0.s8 %v3333
      %v3335 = vlaneseq
      %v3336 = vshrl.u32 %v3335, 7
      %v3337 = vsub.s32 %v3334, %v3336
      %v3338 = vrot.slane %v3131, %v3337
      %v3340 = vunpack.c.l.s4 1966171168
      %v3341 = vunpack.c.0.s8 %v3340
      %v3342 = vlaneseq
      %v3343 = vshrl.u32 %v3342, 7
      %v3344 = vsub.s32 %v3341, %v3343
      %v3345 = vrot.slane %v3338, %v3344
      %3346 = vrot.lane.b32.xlu0 %v3345, 104
      %v3347 = vpop.permute.xlu0 %3346
      %3348 = vrot.lane.b32.xlu0 %v3345, 72
      %v3349 = vpop.permute.xlu0 %3348
      %v3351 = vsel %vm141, %v3347, 0
      %v3354 = vsel %vm141, %v3349, 0
      %3356 = vmatprep.subr.bf16.mxu0 0
      %3357 = vmatpush1.bf16.xpose.msra.mxu0 %v3354
      %3358 = vmatprep.subr.bf16.mxu0 0
      %3359 = vmatpush1.bf16.xpose.msra.mxu0 0
      %3360 = vmatprep.subr.bf16.mxu0 0
      %3361 = vmatpush1.bf16.xpose.msra.mxu0 0
      %3362 = vmatprep.subr.bf16.mxu0 0
      %3363 = vmatpush1.bf16.xpose.msra.mxu0 0
      %3364 = vmatprep.subr.bf16.mxu0 0
      %3365 = vmatpush1.bf16.xpose.msra.mxu0 0
      %3366 = vmatprep.subr.bf16.mxu0 0
      %3367 = vmatpush1.bf16.xpose.msra.mxu0 0
      %3368 = vmatprep.subr.bf16.mxu0 0
      %3369 = vmatpush1.bf16.xpose.msra.mxu0 0
      %3370 = vmatprep.subr.bf16.mxu0 0
      %3371 = vmatpush1.bf16.xpose.msra.mxu0 0
      %3372 = vmatprep.subr.bf16.mxu0 0
      %3373 = vmatpush1.bf16.xpose.msra.mxu0 0
      %3374 = vmatprep.subr.bf16.mxu0 0
      %3375 = vmatpush1.bf16.xpose.msra.mxu0 0
      %3376 = vmatprep.subr.bf16.mxu0 0
      %3377 = vmatpush1.bf16.xpose.msra.mxu0 0
      %3378 = vmatprep.subr.bf16.mxu0 0
      %3379 = vmatpush1.bf16.xpose.msra.mxu0 0
      %3380 = vmatprep.subr.bf16.mxu0 0
      %3381 = vmatpush1.bf16.xpose.msra.mxu0 0
      %3382 = vmatprep.subr.bf16.mxu0 0
      %3383 = vmatpush1.bf16.xpose.msra.mxu0 0
      %3384 = vmatprep.subr.bf16.mxu0 0
      %3385 = vmatpush1.bf16.xpose.msra.mxu0 0
      %3386 = vmatprep.subr.bf16.mxu0 0
      %3387 = vmatpush1.bf16.xpose.msra.mxu0 0
      %3388 = vmatprep.mubr.bf16.mxu0 0
      %3389 = vmatmul.mubr.bf16.gmra.mrb[0].mxu0 %v3351
      %v3390 = vpop.f32.mrb[0].mxu0
      %v3391 = vadd.f32 0.0, %v3390
      %v3392 = vpop.f32.mrb[0].mxu0
      %v3393 = vpop.f32.mrb[0].mxu0
      %v3394 = vpop.f32.mrb[0].mxu0
      %3395 = vdwg.mxu0
      %v3398 = vunpack.c.l.s4 1966171168
      %v3399 = vunpack.c.0.s8 %v3398
      %v3400 = vlaneseq
      %v3401 = vshrl.u32 %v3400, 7
      %v3402 = vsub.s32 %v3399, %v3401
      %v3403 = vrot.slane %v3132, %v3402
      %v3405 = vunpack.c.l.s4 1966171168
      %v3406 = vunpack.c.0.s8 %v3405
      %v3407 = vlaneseq
      %v3408 = vshrl.u32 %v3407, 7
      %v3409 = vsub.s32 %v3406, %v3408
      %v3410 = vrot.slane %v3403, %v3409
      %3411 = vrot.lane.b32.xlu0 %v3410, 104
      %v3412 = vpop.permute.xlu0 %3411
      %3413 = vrot.lane.b32.xlu0 %v3410, 72
      %v3414 = vpop.permute.xlu0 %3413
      %v3416 = vsel %vm141, %v3412, 0
      %v3419 = vsel %vm141, %v3414, 0
      %3421 = vmatprep.subr.bf16.mxu0 0
      %3422 = vmatpush1.bf16.xpose.msra.mxu0 %v3419
      %3423 = vmatprep.subr.bf16.mxu0 0
      %3424 = vmatpush1.bf16.xpose.msra.mxu0 0
      %3425 = vmatprep.subr.bf16.mxu0 0
      %3426 = vmatpush1.bf16.xpose.msra.mxu0 0
      %3427 = vmatprep.subr.bf16.mxu0 0
      %3428 = vmatpush1.bf16.xpose.msra.mxu0 0
      %3429 = vmatprep.subr.bf16.mxu0 0
      %3430 = vmatpush1.bf16.xpose.msra.mxu0 0
      %3431 = vmatprep.subr.bf16.mxu0 0
      %3432 = vmatpush1.bf16.xpose.msra.mxu0 0
      %3433 = vmatprep.subr.bf16.mxu0 0
      %3434 = vmatpush1.bf16.xpose.msra.mxu0 0
      %3435 = vmatprep.subr.bf16.mxu0 0
      %3436 = vmatpush1.bf16.xpose.msra.mxu0 0
      %3437 = vmatprep.subr.bf16.mxu0 0
      %3438 = vmatpush1.bf16.xpose.msra.mxu0 0
      %3439 = vmatprep.subr.bf16.mxu0 0
      %3440 = vmatpush1.bf16.xpose.msra.mxu0 0
      %3441 = vmatprep.subr.bf16.mxu0 0
      %3442 = vmatpush1.bf16.xpose.msra.mxu0 0
      %3443 = vmatprep.subr.bf16.mxu0 0
      %3444 = vmatpush1.bf16.xpose.msra.mxu0 0
      %3445 = vmatprep.subr.bf16.mxu0 0
      %3446 = vmatpush1.bf16.xpose.msra.mxu0 0
      %3447 = vmatprep.subr.bf16.mxu0 0
      %3448 = vmatpush1.bf16.xpose.msra.mxu0 0
      %3449 = vmatprep.subr.bf16.mxu0 0
      %3450 = vmatpush1.bf16.xpose.msra.mxu0 0
      %3451 = vmatprep.subr.bf16.mxu0 0
      %3452 = vmatpush1.bf16.xpose.msra.mxu0 0
      %3453 = vmatprep.mubr.bf16.mxu0 0
      %3454 = vmatmul.mubr.bf16.gmra.mrb[0].mxu0 %v3416
      %v3455 = vpop.f32.mrb[0].mxu0
      %v3456 = vadd.f32 0.0, %v3455
      %v3457 = vpop.f32.mrb[0].mxu0
      %v3458 = vpop.f32.mrb[0].mxu0
      %v3459 = vpop.f32.mrb[0].mxu0
      %3460 = vdwg.mxu0
      %v3463 = vunpack.c.l.s4 1966171168
      %v3464 = vunpack.c.0.s8 %v3463
      %v3465 = vlaneseq
      %v3466 = vshrl.u32 %v3465, 7
      %v3467 = vsub.s32 %v3464, %v3466
      %v3468 = vrot.slane %v3133, %v3467
      %v3470 = vunpack.c.l.s4 1966171168
      %v3471 = vunpack.c.0.s8 %v3470
      %v3472 = vlaneseq
      %v3473 = vshrl.u32 %v3472, 7
      %v3474 = vsub.s32 %v3471, %v3473
      %v3475 = vrot.slane %v3468, %v3474
      %3476 = vrot.lane.b32.xlu0 %v3475, 104
      %v3477 = vpop.permute.xlu0 %3476
      %3478 = vrot.lane.b32.xlu0 %v3475, 72
      %v3479 = vpop.permute.xlu0 %3478
      %v3481 = vsel %vm141, %v3477, 0
      %v3484 = vsel %vm141, %v3479, 0
      %3486 = vmatprep.subr.bf16.mxu0 0
      %3487 = vmatpush1.bf16.xpose.msra.mxu0 %v3484
      %3488 = vmatprep.subr.bf16.mxu0 0
      %3489 = vmatpush1.bf16.xpose.msra.mxu0 0
      %3490 = vmatprep.subr.bf16.mxu0 0
      %3491 = vmatpush1.bf16.xpose.msra.mxu0 0
      %3492 = vmatprep.subr.bf16.mxu0 0
      %3493 = vmatpush1.bf16.xpose.msra.mxu0 0
      %3494 = vmatprep.subr.bf16.mxu0 0
      %3495 = vmatpush1.bf16.xpose.msra.mxu0 0
      %3496 = vmatprep.subr.bf16.mxu0 0
      %3497 = vmatpush1.bf16.xpose.msra.mxu0 0
      %3498 = vmatprep.subr.bf16.mxu0 0
      %3499 = vmatpush1.bf16.xpose.msra.mxu0 0
      %3500 = vmatprep.subr.bf16.mxu0 0
      %3501 = vmatpush1.bf16.xpose.msra.mxu0 0
      %3502 = vmatprep.subr.bf16.mxu0 0
      %3503 = vmatpush1.bf16.xpose.msra.mxu0 0
      %3504 = vmatprep.subr.bf16.mxu0 0
      %3505 = vmatpush1.bf16.xpose.msra.mxu0 0
      %3506 = vmatprep.subr.bf16.mxu0 0
      %3507 = vmatpush1.bf16.xpose.msra.mxu0 0
      %3508 = vmatprep.subr.bf16.mxu0 0
      %3509 = vmatpush1.bf16.xpose.msra.mxu0 0
      %3510 = vmatprep.subr.bf16.mxu0 0
      %3511 = vmatpush1.bf16.xpose.msra.mxu0 0
      %3512 = vmatprep.subr.bf16.mxu0 0
      %3513 = vmatpush1.bf16.xpose.msra.mxu0 0
      %3514 = vmatprep.subr.bf16.mxu0 0
      %3515 = vmatpush1.bf16.xpose.msra.mxu0 0
      %3516 = vmatprep.subr.bf16.mxu0 0
      %3517 = vmatpush1.bf16.xpose.msra.mxu0 0
      %3518 = vmatprep.mubr.bf16.mxu0 0
      %3519 = vmatmul.mubr.bf16.gmra.mrb[0].mxu0 %v3481
      %v3520 = vpop.f32.mrb[0].mxu0
      %v3521 = vadd.f32 0.0, %v3520
      %v3522 = vpop.f32.mrb[0].mxu0
      %v3523 = vpop.f32.mrb[0].mxu0
      %v3524 = vpop.f32.mrb[0].mxu0
      %3525 = vdwg.mxu0
      %v3528 = vunpack.c.l.s4 1966171168
      %v3529 = vunpack.c.0.s8 %v3528
      %v3530 = vlaneseq
      %v3531 = vshrl.u32 %v3530, 7
      %v3532 = vsub.s32 %v3529, %v3531
      %v3533 = vrot.slane %v3134, %v3532
      %v3535 = vunpack.c.l.s4 1966171168
      %v3536 = vunpack.c.0.s8 %v3535
      %v3537 = vlaneseq
      %v3538 = vshrl.u32 %v3537, 7
      %v3539 = vsub.s32 %v3536, %v3538
      %v3540 = vrot.slane %v3533, %v3539
      %3541 = vrot.lane.b32.xlu0 %v3540, 104
      %v3542 = vpop.permute.xlu0 %3541
      %3543 = vrot.lane.b32.xlu0 %v3540, 72
      %v3544 = vpop.permute.xlu0 %3543
      %v3546 = vsel %vm141, %v3542, 0
      %v3549 = vsel %vm141, %v3544, 0
      %3551 = vmatprep.subr.bf16.mxu0 0
      %3552 = vmatpush1.bf16.xpose.msra.mxu0 %v3549
      %3553 = vmatprep.subr.bf16.mxu0 0
      %3554 = vmatpush1.bf16.xpose.msra.mxu0 0
      %3555 = vmatprep.subr.bf16.mxu0 0
      %3556 = vmatpush1.bf16.xpose.msra.mxu0 0
      %3557 = vmatprep.subr.bf16.mxu0 0
      %3558 = vmatpush1.bf16.xpose.msra.mxu0 0
      %3559 = vmatprep.subr.bf16.mxu0 0
      %3560 = vmatpush1.bf16.xpose.msra.mxu0 0
      %3561 = vmatprep.subr.bf16.mxu0 0
      %3562 = vmatpush1.bf16.xpose.msra.mxu0 0
      %3563 = vmatprep.subr.bf16.mxu0 0
      %3564 = vmatpush1.bf16.xpose.msra.mxu0 0
      %3565 = vmatprep.subr.bf16.mxu0 0
      %3566 = vmatpush1.bf16.xpose.msra.mxu0 0
      %3567 = vmatprep.subr.bf16.mxu0 0
      %3568 = vmatpush1.bf16.xpose.msra.mxu0 0
      %3569 = vmatprep.subr.bf16.mxu0 0
      %3570 = vmatpush1.bf16.xpose.msra.mxu0 0
      %3571 = vmatprep.subr.bf16.mxu0 0
      %3572 = vmatpush1.bf16.xpose.msra.mxu0 0
      %3573 = vmatprep.subr.bf16.mxu0 0
      %3574 = vmatpush1.bf16.xpose.msra.mxu0 0
      %3575 = vmatprep.subr.bf16.mxu0 0
      %3576 = vmatpush1.bf16.xpose.msra.mxu0 0
      %3577 = vmatprep.subr.bf16.mxu0 0
      %3578 = vmatpush1.bf16.xpose.msra.mxu0 0
      %3579 = vmatprep.subr.bf16.mxu0 0
      %3580 = vmatpush1.bf16.xpose.msra.mxu0 0
      %3581 = vmatprep.subr.bf16.mxu0 0
      %3582 = vmatpush1.bf16.xpose.msra.mxu0 0
      %3583 = vmatprep.mubr.bf16.mxu0 0
      %3584 = vmatmul.mubr.bf16.gmra.mrb[0].mxu0 %v3546
      %v3585 = vpop.f32.mrb[0].mxu0
      %v3586 = vadd.f32 0.0, %v3585
      %v3587 = vpop.f32.mrb[0].mxu0
      %v3588 = vpop.f32.mrb[0].mxu0
      %v3589 = vpop.f32.mrb[0].mxu0
      %3590 = vdwg.mxu0
      %v3593 = vunpack.c.l.s4 1966171168
      %v3594 = vunpack.c.0.s8 %v3593
      %v3595 = vlaneseq
      %v3596 = vshrl.u32 %v3595, 7
      %v3597 = vsub.s32 %v3594, %v3596
      %v3598 = vrot.slane %v3135, %v3597
      %v3600 = vunpack.c.l.s4 1966171168
      %v3601 = vunpack.c.0.s8 %v3600
      %v3602 = vlaneseq
      %v3603 = vshrl.u32 %v3602, 7
      %v3604 = vsub.s32 %v3601, %v3603
      %v3605 = vrot.slane %v3598, %v3604
      %3606 = vrot.lane.b32.xlu0 %v3605, 104
      %v3607 = vpop.permute.xlu0 %3606
      %3608 = vrot.lane.b32.xlu0 %v3605, 72
      %v3609 = vpop.permute.xlu0 %3608
      %v3611 = vsel %vm141, %v3607, 0
      %v3614 = vsel %vm141, %v3609, 0
      %3616 = vmatprep.subr.bf16.mxu0 0
      %3617 = vmatpush1.bf16.xpose.msra.mxu0 %v3614
      %3618 = vmatprep.subr.bf16.mxu0 0
      %3619 = vmatpush1.bf16.xpose.msra.mxu0 0
      %3620 = vmatprep.subr.bf16.mxu0 0
      %3621 = vmatpush1.bf16.xpose.msra.mxu0 0
      %3622 = vmatprep.subr.bf16.mxu0 0
      %3623 = vmatpush1.bf16.xpose.msra.mxu0 0
      %3624 = vmatprep.subr.bf16.mxu0 0
      %3625 = vmatpush1.bf16.xpose.msra.mxu0 0
      %3626 = vmatprep.subr.bf16.mxu0 0
      %3627 = vmatpush1.bf16.xpose.msra.mxu0 0
      %3628 = vmatprep.subr.bf16.mxu0 0
      %3629 = vmatpush1.bf16.xpose.msra.mxu0 0
      %3630 = vmatprep.subr.bf16.mxu0 0
      %3631 = vmatpush1.bf16.xpose.msra.mxu0 0
      %3632 = vmatprep.subr.bf16.mxu0 0
      %3633 = vmatpush1.bf16.xpose.msra.mxu0 0
      %3634 = vmatprep.subr.bf16.mxu0 0
      %3635 = vmatpush1.bf16.xpose.msra.mxu0 0
      %3636 = vmatprep.subr.bf16.mxu0 0
      %3637 = vmatpush1.bf16.xpose.msra.mxu0 0
      %3638 = vmatprep.subr.bf16.mxu0 0
      %3639 = vmatpush1.bf16.xpose.msra.mxu0 0
      %3640 = vmatprep.subr.bf16.mxu0 0
      %3641 = vmatpush1.bf16.xpose.msra.mxu0 0
      %3642 = vmatprep.subr.bf16.mxu0 0
      %3643 = vmatpush1.bf16.xpose.msra.mxu0 0
      %3644 = vmatprep.subr.bf16.mxu0 0
      %3645 = vmatpush1.bf16.xpose.msra.mxu0 0
      %3646 = vmatprep.subr.bf16.mxu0 0
      %3647 = vmatpush1.bf16.xpose.msra.mxu0 0
      %3648 = vmatprep.mubr.bf16.mxu0 0
      %3649 = vmatmul.mubr.bf16.gmra.mrb[0].mxu0 %v3611
      %v3650 = vpop.f32.mrb[0].mxu0
      %v3651 = vadd.f32 0.0, %v3650
      %v3652 = vpop.f32.mrb[0].mxu0
      %v3653 = vpop.f32.mrb[0].mxu0
      %v3654 = vpop.f32.mrb[0].mxu0
      %3655 = vdwg.mxu0
      %v3656 = vsel %vm629, %v3196, -inf
      %3657 = vmax.xlane.f32.xlu0 %v3656
      %v3658 = vpop.xlane.xlu0 %3657
      %v3659 = vsel %vm629, %v3261, -inf
      %3660 = vmax.xlane.f32.xlu0 %v3659
      %v3661 = vpop.xlane.xlu0 %3660
      %v3662 = vsel %vm629, %v3326, -inf
      %3663 = vmax.xlane.f32.xlu0 %v3662
      %v3664 = vpop.xlane.xlu0 %3663
      %v3665 = vsel %vm629, %v3391, -inf
      %3666 = vmax.xlane.f32.xlu0 %v3665
      %v3667 = vpop.xlane.xlu0 %3666
      %v3668 = vsel %vm629, %v3456, -inf
      %3669 = vmax.xlane.f32.xlu0 %v3668
      %v3670 = vpop.xlane.xlu0 %3669
      %v3671 = vsel %vm629, %v3521, -inf
      %3672 = vmax.xlane.f32.xlu0 %v3671
      %v3673 = vpop.xlane.xlu0 %3672
      %v3674 = vsel %vm629, %v3586, -inf
      %3675 = vmax.xlane.f32.xlu0 %v3674
      %v3676 = vpop.xlane.xlu0 %3675
      %v3677 = vsel %vm629, %v3651, -inf
      %3678 = vmax.xlane.f32.xlu0 %v3677
      %v3679 = vpop.xlane.xlu0 %3678
      %v3680 = vsub.f32 %v3196, %v3658
      %v3681 = vsub.f32 %v3261, %v3661
      %v3682 = vsub.f32 %v3326, %v3664
      %v3683 = vsub.f32 %v3391, %v3667
      %v3684 = vsub.f32 %v3456, %v3670
      %v3685 = vsub.f32 %v3521, %v3673
      %v3686 = vsub.f32 %v3586, %v3676
      %v3687 = vsub.f32 %v3651, %v3679
      %v3688 = vmul.f32 %v3680, 1.442695
      %v3689 = vpow.pop %v3688
      %v3690 = vmul.f32 %v3681, 1.442695
      %v3691 = vpow.pop %v3690
      %v3692 = vmul.f32 %v3682, 1.442695
      %v3693 = vpow.pop %v3692
      %v3694 = vmul.f32 %v3683, 1.442695
      %v3695 = vpow.pop %v3694
      %v3696 = vmul.f32 %v3684, 1.442695
      %v3697 = vpow.pop %v3696
      %v3698 = vmul.f32 %v3685, 1.442695
      %v3699 = vpow.pop %v3698
      %v3700 = vmul.f32 %v3686, 1.442695
      %v3701 = vpow.pop %v3700
      %v3702 = vmul.f32 %v3687, 1.442695
      %v3703 = vpow.pop %v3702
      %v3704 = vsel %vm629, %v3689, 0.0
      %3705 = vadd.xlane.f32.xlu0 %v3704
      %v3706 = vpop.xlane.xlu0 %3705
      %v3707 = vsel %vm629, %v3691, 0.0
      %3708 = vadd.xlane.f32.xlu0 %v3707
      %v3709 = vpop.xlane.xlu0 %3708
      %v3710 = vsel %vm629, %v3693, 0.0
      %3711 = vadd.xlane.f32.xlu0 %v3710
      %v3712 = vpop.xlane.xlu0 %3711
      %v3713 = vsel %vm629, %v3695, 0.0
      %3714 = vadd.xlane.f32.xlu0 %v3713
      %v3715 = vpop.xlane.xlu0 %3714
      %v3716 = vsel %vm629, %v3697, 0.0
      %3717 = vadd.xlane.f32.xlu0 %v3716
      %v3718 = vpop.xlane.xlu0 %3717
      %v3719 = vsel %vm629, %v3699, 0.0
      %3720 = vadd.xlane.f32.xlu0 %v3719
      %v3721 = vpop.xlane.xlu0 %3720
      %v3722 = vsel %vm629, %v3701, 0.0
      %3723 = vadd.xlane.f32.xlu0 %v3722
      %v3724 = vpop.xlane.xlu0 %3723
      %v3725 = vsel %vm629, %v3703, 0.0
      %3726 = vadd.xlane.f32.xlu0 %v3725
      %v3727 = vpop.xlane.xlu0 %3726
      %v3728 = vrcp.pop %v3706
      %v3729 = vmul.f32 %v3689, %v3728
      %v3730 = vrcp.pop %v3709
      %v3731 = vmul.f32 %v3691, %v3730
      %v3732 = vrcp.pop %v3712
      %v3733 = vmul.f32 %v3693, %v3732
      %v3734 = vrcp.pop %v3715
      %v3735 = vmul.f32 %v3695, %v3734
      %v3736 = vrcp.pop %v3718
      %v3737 = vmul.f32 %v3697, %v3736
      %v3738 = vrcp.pop %v3721
      %v3739 = vmul.f32 %v3699, %v3738
      %v3740 = vrcp.pop %v3724
      %v3741 = vmul.f32 %v3701, %v3740
      %v3742 = vrcp.pop %v3727
      %v3743 = vmul.f32 %v3703, %v3742
      %v3744 = vpack.c.bf16 %v3729, %v3729
      %v3745 = vpack.c.bf16 %v3731, %v3731
      %v3746 = vpack.c.bf16 %v3733, %v3733
      %v3747 = vpack.c.bf16 %v3735, %v3735
      %v3748 = vpack.c.bf16 %v3737, %v3737
      %v3749 = vpack.c.bf16 %v3739, %v3739
      %v3750 = vpack.c.bf16 %v3741, %v3741
      %v3751 = vpack.c.bf16 %v3743, %v3743
      %3752 = vrot.lane.b32.xlu0 %v3150, 40
      %v3753 = vpop.permute.xlu0 %3752
      %v3755 = vsel %vm728, %v3744, 0
      %v3758 = vsel %vm732, %v3753, 0
      %3760 = vmatprep.subr.bf16.mxu0 0
      %3761 = vmatpush1.bf16.msra.mxu0 %v3758
      %3762 = vmatprep.subr.bf16.mxu0 0
      %3763 = vmatpush1.bf16.msra.mxu0 0
      %3764 = vmatprep.subr.bf16.mxu0 0
      %3765 = vmatpush1.bf16.msra.mxu0 0
      %3766 = vmatprep.subr.bf16.mxu0 0
      %3767 = vmatpush1.bf16.msra.mxu0 0
      %3768 = vmatprep.subr.bf16.mxu0 0
      %3769 = vmatpush1.bf16.msra.mxu0 0
      %3770 = vmatprep.subr.bf16.mxu0 0
      %3771 = vmatpush1.bf16.msra.mxu0 0
      %3772 = vmatprep.subr.bf16.mxu0 0
      %3773 = vmatpush1.bf16.msra.mxu0 0
      %3774 = vmatprep.subr.bf16.mxu0 0
      %3775 = vmatpush1.bf16.msra.mxu0 0
      %3776 = vmatprep.subr.bf16.mxu0 0
      %3777 = vmatpush1.bf16.msra.mxu0 0
      %3778 = vmatprep.subr.bf16.mxu0 0
      %3779 = vmatpush1.bf16.msra.mxu0 0
      %3780 = vmatprep.subr.bf16.mxu0 0
      %3781 = vmatpush1.bf16.msra.mxu0 0
      %3782 = vmatprep.subr.bf16.mxu0 0
      %3783 = vmatpush1.bf16.msra.mxu0 0
      %3784 = vmatprep.subr.bf16.mxu0 0
      %3785 = vmatpush1.bf16.msra.mxu0 0
      %3786 = vmatprep.subr.bf16.mxu0 0
      %3787 = vmatpush1.bf16.msra.mxu0 0
      %3788 = vmatprep.subr.bf16.mxu0 0
      %3789 = vmatpush1.bf16.msra.mxu0 0
      %3790 = vmatprep.subr.bf16.mxu0 0
      %3791 = vmatpush1.bf16.msra.mxu0 0
      %3792 = vmatprep.mubr.bf16.mxu0 0
      %3793 = vmatmul.mubr.bf16.gmra.mrb[0].mxu0 %v3755
      %v3794 = vpop.f32.mrb[0].mxu0
      %v3795 = vadd.f32 0.0, %v3794
      %v3796 = vpop.f32.mrb[0].mxu0
      %v3797 = vpop.f32.mrb[0].mxu0
      %v3798 = vpop.f32.mrb[0].mxu0
      %3799 = vdwg.mxu0
      %3800 = vrot.lane.b32.xlu0 %v3215, 40
      %v3801 = vpop.permute.xlu0 %3800
      %v3803 = vsel %vm728, %v3745, 0
      %v3806 = vsel %vm732, %v3801, 0
      %3808 = vmatprep.subr.bf16.mxu0 0
      %3809 = vmatpush1.bf16.msra.mxu0 %v3806
      %3810 = vmatprep.subr.bf16.mxu0 0
      %3811 = vmatpush1.bf16.msra.mxu0 0
      %3812 = vmatprep.subr.bf16.mxu0 0
      %3813 = vmatpush1.bf16.msra.mxu0 0
      %3814 = vmatprep.subr.bf16.mxu0 0
      %3815 = vmatpush1.bf16.msra.mxu0 0
      %3816 = vmatprep.subr.bf16.mxu0 0
      %3817 = vmatpush1.bf16.msra.mxu0 0
      %3818 = vmatprep.subr.bf16.mxu0 0
      %3819 = vmatpush1.bf16.msra.mxu0 0
      %3820 = vmatprep.subr.bf16.mxu0 0
      %3821 = vmatpush1.bf16.msra.mxu0 0
      %3822 = vmatprep.subr.bf16.mxu0 0
      %3823 = vmatpush1.bf16.msra.mxu0 0
      %3824 = vmatprep.subr.bf16.mxu0 0
      %3825 = vmatpush1.bf16.msra.mxu0 0
      %3826 = vmatprep.subr.bf16.mxu0 0
      %3827 = vmatpush1.bf16.msra.mxu0 0
      %3828 = vmatprep.subr.bf16.mxu0 0
      %3829 = vmatpush1.bf16.msra.mxu0 0
      %3830 = vmatprep.subr.bf16.mxu0 0
      %3831 = vmatpush1.bf16.msra.mxu0 0
      %3832 = vmatprep.subr.bf16.mxu0 0
      %3833 = vmatpush1.bf16.msra.mxu0 0
      %3834 = vmatprep.subr.bf16.mxu0 0
      %3835 = vmatpush1.bf16.msra.mxu0 0
      %3836 = vmatprep.subr.bf16.mxu0 0
      %3837 = vmatpush1.bf16.msra.mxu0 0
      %3838 = vmatprep.subr.bf16.mxu0 0
      %3839 = vmatpush1.bf16.msra.mxu0 0
      %3840 = vmatprep.mubr.bf16.mxu0 0
      %3841 = vmatmul.mubr.bf16.gmra.mrb[0].mxu0 %v3803
      %v3842 = vpop.f32.mrb[0].mxu0
      %v3843 = vadd.f32 0.0, %v3842
      %v3844 = vpop.f32.mrb[0].mxu0
      %v3845 = vpop.f32.mrb[0].mxu0
      %v3846 = vpop.f32.mrb[0].mxu0
      %3847 = vdwg.mxu0
      %3848 = vrot.lane.b32.xlu0 %v3280, 40
      %v3849 = vpop.permute.xlu0 %3848
      %v3851 = vsel %vm728, %v3746, 0
      %v3854 = vsel %vm732, %v3849, 0
      %3856 = vmatprep.subr.bf16.mxu0 0
      %3857 = vmatpush1.bf16.msra.mxu0 %v3854
      %3858 = vmatprep.subr.bf16.mxu0 0
      %3859 = vmatpush1.bf16.msra.mxu0 0
      %3860 = vmatprep.subr.bf16.mxu0 0
      %3861 = vmatpush1.bf16.msra.mxu0 0
      %3862 = vmatprep.subr.bf16.mxu0 0
      %3863 = vmatpush1.bf16.msra.mxu0 0
      %3864 = vmatprep.subr.bf16.mxu0 0
      %3865 = vmatpush1.bf16.msra.mxu0 0
      %3866 = vmatprep.subr.bf16.mxu0 0
      %3867 = vmatpush1.bf16.msra.mxu0 0
      %3868 = vmatprep.subr.bf16.mxu0 0
      %3869 = vmatpush1.bf16.msra.mxu0 0
      %3870 = vmatprep.subr.bf16.mxu0 0
      %3871 = vmatpush1.bf16.msra.mxu0 0
      %3872 = vmatprep.subr.bf16.mxu0 0
      %3873 = vmatpush1.bf16.msra.mxu0 0
      %3874 = vmatprep.subr.bf16.mxu0 0
      %3875 = vmatpush1.bf16.msra.mxu0 0
      %3876 = vmatprep.subr.bf16.mxu0 0
      %3877 = vmatpush1.bf16.msra.mxu0 0
      %3878 = vmatprep.subr.bf16.mxu0 0
      %3879 = vmatpush1.bf16.msra.mxu0 0
      %3880 = vmatprep.subr.bf16.mxu0 0
      %3881 = vmatpush1.bf16.msra.mxu0 0
      %3882 = vmatprep.subr.bf16.mxu0 0
      %3883 = vmatpush1.bf16.msra.mxu0 0
      %3884 = vmatprep.subr.bf16.mxu0 0
      %3885 = vmatpush1.bf16.msra.mxu0 0
      %3886 = vmatprep.subr.bf16.mxu0 0
      %3887 = vmatpush1.bf16.msra.mxu0 0
      %3888 = vmatprep.mubr.bf16.mxu0 0
      %3889 = vmatmul.mubr.bf16.gmra.mrb[0].mxu0 %v3851
      %v3890 = vpop.f32.mrb[0].mxu0
      %v3891 = vadd.f32 0.0, %v3890
      %v3892 = vpop.f32.mrb[0].mxu0
      %v3893 = vpop.f32.mrb[0].mxu0
      %v3894 = vpop.f32.mrb[0].mxu0
      %3895 = vdwg.mxu0
      %3896 = vrot.lane.b32.xlu0 %v3345, 40
      %v3897 = vpop.permute.xlu0 %3896
      %v3899 = vsel %vm728, %v3747, 0
      %v3902 = vsel %vm732, %v3897, 0
      %3904 = vmatprep.subr.bf16.mxu0 0
      %3905 = vmatpush1.bf16.msra.mxu0 %v3902
      %3906 = vmatprep.subr.bf16.mxu0 0
      %3907 = vmatpush1.bf16.msra.mxu0 0
      %3908 = vmatprep.subr.bf16.mxu0 0
      %3909 = vmatpush1.bf16.msra.mxu0 0
      %3910 = vmatprep.subr.bf16.mxu0 0
      %3911 = vmatpush1.bf16.msra.mxu0 0
      %3912 = vmatprep.subr.bf16.mxu0 0
      %3913 = vmatpush1.bf16.msra.mxu0 0
      %3914 = vmatprep.subr.bf16.mxu0 0
      %3915 = vmatpush1.bf16.msra.mxu0 0
      %3916 = vmatprep.subr.bf16.mxu0 0
      %3917 = vmatpush1.bf16.msra.mxu0 0
      %3918 = vmatprep.subr.bf16.mxu0 0
      %3919 = vmatpush1.bf16.msra.mxu0 0
      %3920 = vmatprep.subr.bf16.mxu0 0
      %3921 = vmatpush1.bf16.msra.mxu0 0
      %3922 = vmatprep.subr.bf16.mxu0 0
      %3923 = vmatpush1.bf16.msra.mxu0 0
      %3924 = vmatprep.subr.bf16.mxu0 0
      %3925 = vmatpush1.bf16.msra.mxu0 0
      %3926 = vmatprep.subr.bf16.mxu0 0
      %3927 = vmatpush1.bf16.msra.mxu0 0
      %3928 = vmatprep.subr.bf16.mxu0 0
      %3929 = vmatpush1.bf16.msra.mxu0 0
      %3930 = vmatprep.subr.bf16.mxu0 0
      %3931 = vmatpush1.bf16.msra.mxu0 0
      %3932 = vmatprep.subr.bf16.mxu0 0
      %3933 = vmatpush1.bf16.msra.mxu0 0
      %3934 = vmatprep.subr.bf16.mxu0 0
      %3935 = vmatpush1.bf16.msra.mxu0 0
      %3936 = vmatprep.mubr.bf16.mxu0 0
      %3937 = vmatmul.mubr.bf16.gmra.mrb[0].mxu0 %v3899
      %v3938 = vpop.f32.mrb[0].mxu0
      %v3939 = vadd.f32 0.0, %v3938
      %v3940 = vpop.f32.mrb[0].mxu0
      %v3941 = vpop.f32.mrb[0].mxu0
      %v3942 = vpop.f32.mrb[0].mxu0
      %3943 = vdwg.mxu0
      %3944 = vrot.lane.b32.xlu0 %v3410, 40
      %v3945 = vpop.permute.xlu0 %3944
      %v3947 = vsel %vm728, %v3748, 0
      %v3950 = vsel %vm732, %v3945, 0
      %3952 = vmatprep.subr.bf16.mxu0 0
      %3953 = vmatpush1.bf16.msra.mxu0 %v3950
      %3954 = vmatprep.subr.bf16.mxu0 0
      %3955 = vmatpush1.bf16.msra.mxu0 0
      %3956 = vmatprep.subr.bf16.mxu0 0
      %3957 = vmatpush1.bf16.msra.mxu0 0
      %3958 = vmatprep.subr.bf16.mxu0 0
      %3959 = vmatpush1.bf16.msra.mxu0 0
      %3960 = vmatprep.subr.bf16.mxu0 0
      %3961 = vmatpush1.bf16.msra.mxu0 0
      %3962 = vmatprep.subr.bf16.mxu0 0
      %3963 = vmatpush1.bf16.msra.mxu0 0
      %3964 = vmatprep.subr.bf16.mxu0 0
      %3965 = vmatpush1.bf16.msra.mxu0 0
      %3966 = vmatprep.subr.bf16.mxu0 0
      %3967 = vmatpush1.bf16.msra.mxu0 0
      %3968 = vmatprep.subr.bf16.mxu0 0
      %3969 = vmatpush1.bf16.msra.mxu0 0
      %3970 = vmatprep.subr.bf16.mxu0 0
      %3971 = vmatpush1.bf16.msra.mxu0 0
      %3972 = vmatprep.subr.bf16.mxu0 0
      %3973 = vmatpush1.bf16.msra.mxu0 0
      %3974 = vmatprep.subr.bf16.mxu0 0
      %3975 = vmatpush1.bf16.msra.mxu0 0
      %3976 = vmatprep.subr.bf16.mxu0 0
      %3977 = vmatpush1.bf16.msra.mxu0 0
      %3978 = vmatprep.subr.bf16.mxu0 0
      %3979 = vmatpush1.bf16.msra.mxu0 0
      %3980 = vmatprep.subr.bf16.mxu0 0
      %3981 = vmatpush1.bf16.msra.mxu0 0
      %3982 = vmatprep.subr.bf16.mxu0 0
      %3983 = vmatpush1.bf16.msra.mxu0 0
      %3984 = vmatprep.mubr.bf16.mxu0 0
      %3985 = vmatmul.mubr.bf16.gmra.mrb[0].mxu0 %v3947
      %v3986 = vpop.f32.mrb[0].mxu0
      %v3987 = vadd.f32 0.0, %v3986
      %v3988 = vpop.f32.mrb[0].mxu0
      %v3989 = vpop.f32.mrb[0].mxu0
      %v3990 = vpop.f32.mrb[0].mxu0
      %3991 = vdwg.mxu0
      %3992 = vrot.lane.b32.xlu0 %v3475, 40
      %v3993 = vpop.permute.xlu0 %3992
      %v3995 = vsel %vm728, %v3749, 0
      %v3998 = vsel %vm732, %v3993, 0
      %4000 = vmatprep.subr.bf16.mxu0 0
      %4001 = vmatpush1.bf16.msra.mxu0 %v3998
      %4002 = vmatprep.subr.bf16.mxu0 0
      %4003 = vmatpush1.bf16.msra.mxu0 0
      %4004 = vmatprep.subr.bf16.mxu0 0
      %4005 = vmatpush1.bf16.msra.mxu0 0
      %4006 = vmatprep.subr.bf16.mxu0 0
      %4007 = vmatpush1.bf16.msra.mxu0 0
      %4008 = vmatprep.subr.bf16.mxu0 0
      %4009 = vmatpush1.bf16.msra.mxu0 0
      %4010 = vmatprep.subr.bf16.mxu0 0
      %4011 = vmatpush1.bf16.msra.mxu0 0
      %4012 = vmatprep.subr.bf16.mxu0 0
      %4013 = vmatpush1.bf16.msra.mxu0 0
      %4014 = vmatprep.subr.bf16.mxu0 0
      %4015 = vmatpush1.bf16.msra.mxu0 0
      %4016 = vmatprep.subr.bf16.mxu0 0
      %4017 = vmatpush1.bf16.msra.mxu0 0
      %4018 = vmatprep.subr.bf16.mxu0 0
      %4019 = vmatpush1.bf16.msra.mxu0 0
      %4020 = vmatprep.subr.bf16.mxu0 0
      %4021 = vmatpush1.bf16.msra.mxu0 0
      %4022 = vmatprep.subr.bf16.mxu0 0
      %4023 = vmatpush1.bf16.msra.mxu0 0
      %4024 = vmatprep.subr.bf16.mxu0 0
      %4025 = vmatpush1.bf16.msra.mxu0 0
      %4026 = vmatprep.subr.bf16.mxu0 0
      %4027 = vmatpush1.bf16.msra.mxu0 0
      %4028 = vmatprep.subr.bf16.mxu0 0
      %4029 = vmatpush1.bf16.msra.mxu0 0
      %4030 = vmatprep.subr.bf16.mxu0 0
      %4031 = vmatpush1.bf16.msra.mxu0 0
      %4032 = vmatprep.mubr.bf16.mxu0 0
      %4033 = vmatmul.mubr.bf16.gmra.mrb[0].mxu0 %v3995
      %v4034 = vpop.f32.mrb[0].mxu0
      %v4035 = vadd.f32 0.0, %v4034
      %v4036 = vpop.f32.mrb[0].mxu0
      %v4037 = vpop.f32.mrb[0].mxu0
      %v4038 = vpop.f32.mrb[0].mxu0
      %4039 = vdwg.mxu0
      %4040 = vrot.lane.b32.xlu0 %v3540, 40
      %v4041 = vpop.permute.xlu0 %4040
      %v4043 = vsel %vm728, %v3750, 0
      %v4046 = vsel %vm732, %v4041, 0
      %4048 = vmatprep.subr.bf16.mxu0 0
      %4049 = vmatpush1.bf16.msra.mxu0 %v4046
      %4050 = vmatprep.subr.bf16.mxu0 0
      %4051 = vmatpush1.bf16.msra.mxu0 0
      %4052 = vmatprep.subr.bf16.mxu0 0
      %4053 = vmatpush1.bf16.msra.mxu0 0
      %4054 = vmatprep.subr.bf16.mxu0 0
      %4055 = vmatpush1.bf16.msra.mxu0 0
      %4056 = vmatprep.subr.bf16.mxu0 0
      %4057 = vmatpush1.bf16.msra.mxu0 0
      %4058 = vmatprep.subr.bf16.mxu0 0
      %4059 = vmatpush1.bf16.msra.mxu0 0
      %4060 = vmatprep.subr.bf16.mxu0 0
      %4061 = vmatpush1.bf16.msra.mxu0 0
      %4062 = vmatprep.subr.bf16.mxu0 0
      %4063 = vmatpush1.bf16.msra.mxu0 0
      %4064 = vmatprep.subr.bf16.mxu0 0
      %4065 = vmatpush1.bf16.msra.mxu0 0
      %4066 = vmatprep.subr.bf16.mxu0 0
      %4067 = vmatpush1.bf16.msra.mxu0 0
      %4068 = vmatprep.subr.bf16.mxu0 0
      %4069 = vmatpush1.bf16.msra.mxu0 0
      %4070 = vmatprep.subr.bf16.mxu0 0
      %4071 = vmatpush1.bf16.msra.mxu0 0
      %4072 = vmatprep.subr.bf16.mxu0 0
      %4073 = vmatpush1.bf16.msra.mxu0 0
      %4074 = vmatprep.subr.bf16.mxu0 0
      %4075 = vmatpush1.bf16.msra.mxu0 0
      %4076 = vmatprep.subr.bf16.mxu0 0
      %4077 = vmatpush1.bf16.msra.mxu0 0
      %4078 = vmatprep.subr.bf16.mxu0 0
      %4079 = vmatpush1.bf16.msra.mxu0 0
      %4080 = vmatprep.mubr.bf16.mxu0 0
      %4081 = vmatmul.mubr.bf16.gmra.mrb[0].mxu0 %v4043
      %v4082 = vpop.f32.mrb[0].mxu0
      %v4083 = vadd.f32 0.0, %v4082
      %v4084 = vpop.f32.mrb[0].mxu0
      %v4085 = vpop.f32.mrb[0].mxu0
      %v4086 = vpop.f32.mrb[0].mxu0
      %4087 = vdwg.mxu0
      %4088 = vrot.lane.b32.xlu0 %v3605, 40
      %v4089 = vpop.permute.xlu0 %4088
      %v4091 = vsel %vm728, %v3751, 0
      %v4094 = vsel %vm732, %v4089, 0
      %4096 = vmatprep.subr.bf16.mxu0 0
      %4097 = vmatpush1.bf16.msra.mxu0 %v4094
      %4098 = vmatprep.subr.bf16.mxu0 0
      %4099 = vmatpush1.bf16.msra.mxu0 0
      %4100 = vmatprep.subr.bf16.mxu0 0
      %4101 = vmatpush1.bf16.msra.mxu0 0
      %4102 = vmatprep.subr.bf16.mxu0 0
      %4103 = vmatpush1.bf16.msra.mxu0 0
      %4104 = vmatprep.subr.bf16.mxu0 0
      %4105 = vmatpush1.bf16.msra.mxu0 0
      %4106 = vmatprep.subr.bf16.mxu0 0
      %4107 = vmatpush1.bf16.msra.mxu0 0
      %4108 = vmatprep.subr.bf16.mxu0 0
      %4109 = vmatpush1.bf16.msra.mxu0 0
      %4110 = vmatprep.subr.bf16.mxu0 0
      %4111 = vmatpush1.bf16.msra.mxu0 0
      %4112 = vmatprep.subr.bf16.mxu0 0
      %4113 = vmatpush1.bf16.msra.mxu0 0
      %4114 = vmatprep.subr.bf16.mxu0 0
      %4115 = vmatpush1.bf16.msra.mxu0 0
      %4116 = vmatprep.subr.bf16.mxu0 0
      %4117 = vmatpush1.bf16.msra.mxu0 0
      %4118 = vmatprep.subr.bf16.mxu0 0
      %4119 = vmatpush1.bf16.msra.mxu0 0
      %4120 = vmatprep.subr.bf16.mxu0 0
      %4121 = vmatpush1.bf16.msra.mxu0 0
      %4122 = vmatprep.subr.bf16.mxu0 0
      %4123 = vmatpush1.bf16.msra.mxu0 0
      %4124 = vmatprep.subr.bf16.mxu0 0
      %4125 = vmatpush1.bf16.msra.mxu0 0
      %4126 = vmatprep.subr.bf16.mxu0 0
      %4127 = vmatpush1.bf16.msra.mxu0 0
      %4128 = vmatprep.mubr.bf16.mxu0 0
      %4129 = vmatmul.mubr.bf16.gmra.mrb[0].mxu0 %v4091
      %v4130 = vpop.f32.mrb[0].mxu0
      %v4131 = vadd.f32 0.0, %v4130
      %v4132 = vpop.f32.mrb[0].mxu0
      %v4133 = vpop.f32.mrb[0].mxu0
      %v4134 = vpop.f32.mrb[0].mxu0
      %4135 = vdwg.mxu0
      %4144 = vrot.lane.b32.xlu0 %v1779, 8
      %v4145 = vpop.permute.xlu0 %4144
      %4146 = vrot.lane.b32.xlu0 %v1827, 8
      %v4147 = vpop.permute.xlu0 %4146
      %4148 = vrot.lane.b32.xlu0 %v1875, 8
      %v4149 = vpop.permute.xlu0 %4148
      %4150 = vrot.lane.b32.xlu0 %v1923, 8
      %v4151 = vpop.permute.xlu0 %4150
      %4152 = vrot.lane.b32.xlu0 %v1971, 8
      %v4153 = vpop.permute.xlu0 %4152
      %4154 = vrot.lane.b32.xlu0 %v2019, 8
      %v4155 = vpop.permute.xlu0 %4154
      %4156 = vrot.lane.b32.xlu0 %v2067, 8
      %v4157 = vpop.permute.xlu0 %4156
      %4158 = vrot.lane.b32.xlu0 %v2115, 8
      %v4159 = vpop.permute.xlu0 %4158
      %4176 = vrot.lane.b32.xlu0 %v2787, 16
      %v4177 = vpop.permute.xlu0 %4176
      %4178 = vrot.lane.b32.xlu0 %v2835, 16
      %v4179 = vpop.permute.xlu0 %4178
      %4180 = vrot.lane.b32.xlu0 %v2883, 16
      %v4181 = vpop.permute.xlu0 %4180
      %4182 = vrot.lane.b32.xlu0 %v2931, 16
      %v4183 = vpop.permute.xlu0 %4182
      %4184 = vrot.lane.b32.xlu0 %v2979, 16
      %v4185 = vpop.permute.xlu0 %4184
      %4186 = vrot.lane.b32.xlu0 %v3027, 16
      %v4187 = vpop.permute.xlu0 %4186
      %4188 = vrot.lane.b32.xlu0 %v3075, 16
      %v4189 = vpop.permute.xlu0 %4188
      %4190 = vrot.lane.b32.xlu0 %v3123, 16
      %v4191 = vpop.permute.xlu0 %4190
      %4208 = vrot.lane.b32.xlu0 %v3795, 24
      %v4209 = vpop.permute.xlu0 %4208
      %4210 = vrot.lane.b32.xlu0 %v3843, 24
      %v4211 = vpop.permute.xlu0 %4210
      %4212 = vrot.lane.b32.xlu0 %v3891, 24
      %v4213 = vpop.permute.xlu0 %4212
      %4214 = vrot.lane.b32.xlu0 %v3939, 24
      %v4215 = vpop.permute.xlu0 %4214
      %4216 = vrot.lane.b32.xlu0 %v3987, 24
      %v4217 = vpop.permute.xlu0 %4216
      %4218 = vrot.lane.b32.xlu0 %v4035, 24
      %v4219 = vpop.permute.xlu0 %4218
      %4220 = vrot.lane.b32.xlu0 %v4083, 24
      %v4221 = vpop.permute.xlu0 %4220
      %4222 = vrot.lane.b32.xlu0 %v4131, 24
      %v4223 = vpop.permute.xlu0 %4222
      %v4232 = vsel %vm141, %v771, %v4145
      %v4233 = vsel %vm141, %v819, %v4147
      %v4234 = vsel %vm141, %v867, %v4149
      %v4235 = vsel %vm141, %v915, %v4151
      %v4236 = vsel %vm141, %v963, %v4153
      %v4237 = vsel %vm141, %v1011, %v4155
      %v4238 = vsel %vm141, %v1059, %v4157
      %v4239 = vsel %vm141, %v1107, %v4159
      %vm4240 = vcmask 130048
      %v4241 = vsel %vm4240, %v4232, %v4177
      %v4242 = vsel %vm4240, %v4233, %v4179
      %v4243 = vsel %vm4240, %v4234, %v4181
      %v4244 = vsel %vm4240, %v4235, %v4183
      %v4245 = vsel %vm4240, %v4236, %v4185
      %v4246 = vsel %vm4240, %v4237, %v4187
      %v4247 = vsel %vm4240, %v4238, %v4189
      %v4248 = vsel %vm4240, %v4239, %v4191
      %vm4249 = vcmask 195584
      %v4250 = vsel %vm4249, %v4241, %v4209
      %v4251 = vsel %vm4249, %v4242, %v4211
      %v4252 = vsel %vm4249, %v4243, %v4213
      %v4253 = vsel %vm4249, %v4244, %v4215
      %v4254 = vsel %vm4249, %v4245, %v4217
      %v4255 = vsel %vm4249, %v4246, %v4219
      %v4256 = vsel %vm4249, %v4247, %v4221
      %v4257 = vsel %vm4249, %v4248, %v4223
      %v4258 = vpack.c.bf16 %v4250, %v4250
      %v4259 = vpack.c.bf16 %v4251, %v4251
      %v4260 = vpack.c.bf16 %v4252, %v4252
      %v4261 = vpack.c.bf16 %v4253, %v4253
      %v4262 = vpack.c.bf16 %v4254, %v4254
      %v4263 = vpack.c.bf16 %v4255, %v4255
      %v4264 = vpack.c.bf16 %v4256, %v4256
      %v4265 = vpack.c.bf16 %v4257, %v4257
      %vm4266 = vcmask 253952
      %4267 = vst.msk [vmem:[%s113] sm:$0x1] %vm4266, %v4258
      %4268 = vst.msk [vmem:[%s113 + $0x1] sm:$0x1] %vm4266, %v4259
      %4269 = vst.msk [vmem:[%s113 + $0x2] sm:$0x1] %vm4266, %v4260
      %4270 = vst.msk [vmem:[%s113 + $0x3] sm:$0x1] %vm4266, %v4261
      %4271 = vst.msk [vmem:[%s113 + $0x4] sm:$0x1] %vm4266, %v4262
      %4272 = vst.msk [vmem:[%s113 + $0x5] sm:$0x1] %vm4266, %v4263
      %4273 = vst.msk [vmem:[%s113 + $0x6] sm:$0x1] %vm4266, %v4264
      %4274 = vst.msk [vmem:[%s113 + $0x7] sm:$0x1] %vm4266, %v4265
      %s4275 = smul.u32 8, %s12
      %p4276 = scmp.lt.s32.totalorder %s4275, 15
      %s4277 = scalar_select %p4276, %s4275, 15
      %s4278 = scalar_lea.vmem %s1, %s4277
      // Predicated region
      $region25: #{vit_encoder_forward.11} parent=23 // pred_check
        %p4279 = pneg %p56
      $region26: #{vit_encoder_forward.11} parent=23 // pred_check_branch
        %4281 = sbr.rel (%p4279) target = $region28
      $region27: #{vit_encoder_forward.11} parent=23 // pred_region
        %s4282 = smul.u32 8, %s12
      $region28: #{vit_encoder_forward.11} parent=23 // pred_fallthru
        _
    $region24: #{vit_encoder_forward.11} parent=5 // pred_fallthru
      _
    %p4283 = scmp.le.s32.totalorder 2, %s7
    // Predicated region
    $region29: #{vit_encoder_forward.11} parent=5 // pred_check
      %p4284 = pneg %p4283
    $region30: #{vit_encoder_forward.11} parent=5 // pred_check_branch
      %4286 = sbr.rel (%p4284) target = $region32
    $region31: #{vit_encoder_forward.11} parent=5 // pred_region
      %s4287 = ssub.s32 %s7, 2
      // Predicated region
      $region33: #{vit_encoder_forward.11} parent=31 // pred_check
        %p4288 = pneg %p62
      $region34: #{vit_encoder_forward.11} parent=31 // pred_check_branch
        %4290 = sbr.rel (%p4288) target = $region36
      $region35: #{vit_encoder_forward.11} parent=31 // pred_region
        %s4291 = smul.u32 8, %s13
        %p4292 = scmp.lt.s32.totalorder %s4291, 15
        %s4293 = scalar_select %p4292, %s4291, 15
        %s4294 = scalar_lea.vmem %s1, %s4293
      $region36: #{vit_encoder_forward.11} parent=31 // pred_fallthru
        _
    $region32: #{vit_encoder_forward.11} parent=5 // pred_fallthru
      _
  $region6: #{vit_encoder_forward.11} parent=0 // loop_footer
    %s11 = sadd.s32 1, %s7
  $region7: #{vit_encoder_forward.11} parent=0 // loop_footer_branch
    %6 = sbr.rel target = $region3
  $region8: #{vit_encoder_forward.11} parent=0 // loop_exit
    _

</llo_original>
